<compile_context>
chip_gen: v7x
topology: tpu7x:2x2x1
jax: 0.10.0
libtpu: 0.0.40
codegen_flags: <defaults>
</compile_context>

<pallas_src>
import jax
import jax.numpy as jnp
from jax.experimental import pallas as pl
from jax.experimental.pallas import tpu as pltpu

IN_DIM = 32 * 32       # 1024
LATENT = 3             # logical latent width of the reference module
LATENT_PAD = 128       # lane-dense padded latent width

# Logical layer dims of the reference module:
# encoder: 1024->128 tanh, 128->64 tanh, 64->12 tanh, 12->3
# decoder: 3->12 tanh, 12->64 tanh, 64->128 tanh, 128->1024 sigmoid
ENC_DIMS = [(IN_DIM, 128), (128, 64), (64, 12), (12, LATENT)]
DEC_DIMS = [(LATENT, 12), (12, 64), (64, 128), (128, IN_DIM)]


def _round_up(x, m):
    return (x + m - 1) // m * m


def _vmem_limit_bytes():
    """Generation-aware VMEM limit: physical capacity minus headroom, capped at 96 MiB.

    v7x (64 MiB/TC) -> ~52 MiB; v5e/v6e (128 MiB) -> 96 MiB. Never the full physical VMEM.
    """
    mib = 1024 * 1024
    try:
        cap = int(pltpu.get_tpu_info().vmem_capacity_bytes)
    except Exception:
        cap = 64 * mib  # conservative fallback (treat like v7x)
    return max(32 * mib, min(96 * mib, cap - 12 * mib))


def ae_kernel(x_ref,
              w1, b1, w2, b2, w3, b3, w4, b4,      # encoder params
              w5, b5, w6, b6, w7, b7, w8, b8,      # decoder params
              enc_ref, dec_ref):
    x = x_ref[...]                                  # (TM, 1024)
    if x.dtype != jnp.bfloat16:                     # accept bf16 x directly; cast f32 in-kernel
        x = x.astype(jnp.bfloat16)

    # ---- encoder ----
    # Layer 1: bf16 x bf16 on the MXU, f32 accumulation; activation math stays f32 (v5e-safe).
    h = jnp.dot(x, w1[...], preferred_element_type=jnp.float32) + b1[...]
    h = jnp.tanh(h)
    h = jnp.tanh(jnp.dot(h, w2[...], preferred_element_type=jnp.float32) + b2[...])
    h = jnp.tanh(jnp.dot(h, w3[...], preferred_element_type=jnp.float32) + b3[...])
    # Layer 4 (no activation). Out-dim is padded to 128 lanes; pad columns are exactly zero
    # (zero-padded w4/b4), so the lane-dense store is cheap and the wrapper slices [:, :3].
    enc = jnp.dot(h, w4[...], preferred_element_type=jnp.float32) + b4[...]
    enc_ref[...] = enc.astype(enc_ref.dtype)        # bf16 store halves enc HBM bytes

    # ---- decoder ----
    # w5's padded input rows are zero, so the padded latent columns contribute nothing.
    # The decoder consumes the full-precision f32 `enc`, not the bf16-stored copy.
    h = jnp.tanh(jnp.dot(enc, w5[...], preferred_element_type=jnp.float32) + b5[...])
    h = jnp.tanh(jnp.dot(h, w6[...], preferred_element_type=jnp.float32) + b6[...])
    h = jnp.tanh(jnp.dot(h, w7[...], preferred_element_type=jnp.float32) + b7[...])
    y = jnp.dot(h.astype(jnp.bfloat16), w8[...],
                preferred_element_type=jnp.float32) + b8[...]
    # f32 sigmoid (no bf16 EUP on v5e), bf16 store halves the dominant dec HBM stream.
    # (On v6e/v7x a bf16-EUP sigmoid is a possible second-order win once HBM is no longer binding.)
    dec_ref[...] = jax.nn.sigmoid(y).astype(dec_ref.dtype)


def init_linear(key, fan_in, fan_out):
    # Deterministic init mimicking PyTorch nn.Linear default (uniform +-1/sqrt(fan_in)).
    kw, kb = jax.random.split(key)
    bound = 1.0 / (fan_in ** 0.5)
    w = jax.random.uniform(kw, (fan_in, fan_out), jnp.float32, -bound, bound)
    b = jax.random.uniform(kb, (1, fan_out), jnp.float32, -bound, bound)
    return w, b


def init_params(key):
    raw = []
    for fan_in, fan_out in ENC_DIMS + DEC_DIMS:
        key, sub = jax.random.split(key)
        raw.append(init_linear(sub, fan_in, fan_out))

    # Pad the latent dim 3 -> 128: zero-pad w4/b4 output columns and w5 input rows.
    w4, b4 = raw[3]
    raw[3] = (jnp.pad(w4, ((0, 0), (0, LATENT_PAD - LATENT))),
              jnp.pad(b4, ((0, 0), (0, LATENT_PAD - LATENT))))
    w5, b5 = raw[4]
    raw[4] = (jnp.pad(w5, ((0, LATENT_PAD - LATENT), (0, 0))), b5)

    # bf16 for the two 1024-dim weight matrices (dominant weight bytes, full-rate MXU).
    w1, b1 = raw[0]
    raw[0] = (w1.astype(jnp.bfloat16), b1)
    w8, b8 = raw[7]
    raw[7] = (w8.astype(jnp.bfloat16), b8)
    return raw


def autoencoder_forward(x, params, *, tm=512, out_dtype=jnp.bfloat16):
    """Batch-tiled forward.

    tm: rows per grid step. Rounded to a multiple of 128, capped at 1024 (HBM-bound kernel —
    bigger tiles don't pay), and clamped so the grid has >= 2 steps whenever the batch allows
    (both v7x TensorCores get work via dimension_semantics=("parallel",)).

    out_dtype: bf16 by default (halves output HBM traffic); pass jnp.float32 for strict parity
    with the f32 PyTorch module.
    Returns (encoded (B, 3), decoded (B, 1024)) in out_dtype.
    """
    B, D = x.shape
    assert D == IN_DIM, f"expected x of shape (B, {IN_DIM}), got {x.shape}"

    # Validate/normalize tm: multiple of 128 rows (MXU-friendly, satisfies (8,128) block tiling).
    tm = max(128, _round_up(int(tm), 128))
    tm = min(tm, 1024)
    # Guarantee >= 2 grid steps when B > 128 so the batch axis can shard across 2 TCs (v7x).
    tm = min(tm, max(128, _round_up(pl.cdiv(B, 2), 128)))
    n_steps = pl.cdiv(B, tm)   # ragged tail handled by Pallas partial edge blocks (no jnp.pad)

    flat = [t for wb in params for t in wb]  # w1,b1,...,w8,b8

    # Weights/biases: full-array blocks with a constant index_map -> DMA'd once, VMEM-resident.
    # (pipeline_mode=pl.Buffered(1) would single-buffer them; unnecessary at TM <= 1024.)
    param_specs = [pl.BlockSpec(t.shape, lambda i: (0, 0)) for t in flat]
    x_spec = pl.BlockSpec((tm, IN_DIM), lambda i: (i, 0))
    enc_spec = pl.BlockSpec((tm, LATENT_PAD), lambda i: (i, 0))
    dec_spec = pl.BlockSpec((tm, IN_DIM), lambda i: (i, 0))

    # Advisory cost estimate for the XLA scheduler.
    out_itemsize = jnp.dtype(out_dtype).itemsize
    per_row_flops = 2 * sum(int(w.shape[0]) * int(w.shape[1]) for w, _ in params)
    per_row_trans = 128 + 64 + 12 + 12 + 64 + 128 + IN_DIM   # 6x tanh widths + sigmoid width
    weight_bytes = sum(int(t.size) * t.dtype.itemsize for t in flat)
    io_bytes = (B * IN_DIM * x.dtype.itemsize            # x read
                + B * LATENT_PAD * out_itemsize          # enc write
                + B * IN_DIM * out_itemsize)             # dec write
    cost = pl.CostEstimate(flops=B * per_row_flops,
                           transcendentals=B * per_row_trans,
                           bytes_accessed=weight_bytes + io_bytes)

    enc_full, decoded = pl.pallas_call(
        ae_kernel,
        grid=(n_steps,),
        in_specs=[x_spec] + param_specs,
        out_specs=(enc_spec, dec_spec),
        out_shape=(jax.ShapeDtypeStruct((B, LATENT_PAD), out_dtype),
                   jax.ShapeDtypeStruct((B, IN_DIM), out_dtype)),
        compiler_params=pltpu.CompilerParams(
            dimension_semantics=("parallel",),            # megacore-shard the batch axis
            vmem_limit_bytes=_vmem_limit_bytes()),        # generation-aware, with headroom
        cost_estimate=cost,
    )(x, *flat)

    return enc_full[:, :LATENT], decoded


def reference_forward(x, params):
    # Pure-JAX reference with identical matmul numerics (same bf16 casts for layers 1 and 8);
    # outputs stay f32 and are compared against the kernel's bf16 outputs with tolerance.
    (w1, b1), (w2, b2), (w3, b3), (w4, b4), (w5, b5), (w6, b6), (w7, b7), (w8, b8) = params
    h = jnp.tanh(jnp.dot(x.astype(jnp.bfloat16), w1, preferred_element_type=jnp.float32) + b1)
    h = jnp.tanh(jnp.dot(h, w2, preferred_element_type=jnp.float32) + b2)
    h = jnp.tanh(jnp.dot(h, w3, preferred_element_type=jnp.float32) + b3)
    enc_full = jnp.dot(h, w4, preferred_element_type=jnp.float32) + b4
    encoded = enc_full[:, :LATENT]
    h = jnp.tanh(jnp.dot(enc_full, w5, preferred_element_type=jnp.float32) + b5)
    h = jnp.tanh(jnp.dot(h, w6, preferred_element_type=jnp.float32) + b6)
    h = jnp.tanh(jnp.dot(h, w7, preferred_element_type=jnp.float32) + b7)
    decoded = jax.nn.sigmoid(
        jnp.dot(h.astype(jnp.bfloat16), w8, preferred_element_type=jnp.float32) + b8)
    return encoded, decoded


if __name__ == "__main__":
    key = jax.random.PRNGKey(0)
    k_params, k_x = jax.random.split(key)
    params = init_params(k_params)

    # B=200 with default tm: tm clamps to 128 -> 2 grid steps (both v7x TCs busy) and the
    # second step is a ragged partial block (rows 128..199) — no pad/slice HBM round trips.
    B = 200
    x = jax.random.uniform(k_x, (B, IN_DIM), jnp.float32)   # flattened 32x32 "images"

    encoded, decoded = autoencoder_forward(x, params)
    jax.block_until_ready((encoded, decoded))

    enc_ref, dec_ref = reference_forward(x, params)
    assert encoded.shape == (B, LATENT) and decoded.shape == (B, IN_DIM)
    enc_err = jnp.max(jnp.abs(encoded.astype(jnp.float32) - enc_ref))
    dec_err = jnp.max(jnp.abs(decoded.astype(jnp.float32) - dec_ref))
    assert jnp.allclose(encoded.astype(jnp.float32), enc_ref, rtol=1e-2, atol=2e-2), \
        f"enc max err {enc_err}"
    assert jnp.allclose(decoded.astype(jnp.float32), dec_ref, rtol=1e-2, atol=2e-2), \
        f"dec max err {dec_err}"

    print("KERNEL_OK")
</pallas_src>

<mosaic_0001>
module attributes {stable_mosaic.version = 11 : i64} {
  func.func @ae_kernel(%arg0: i32, %arg1: memref<128x1024xf32, #tpu.memory_space<vmem>>, %arg2: memref<1024x128xbf16, #tpu.memory_space<vmem>>, %arg3: memref<1x128xf32, #tpu.memory_space<vmem>>, %arg4: memref<128x64xf32, #tpu.memory_space<vmem>>, %arg5: memref<1x64xf32, #tpu.memory_space<vmem>>, %arg6: memref<64x12xf32, #tpu.memory_space<vmem>>, %arg7: memref<1x12xf32, #tpu.memory_space<vmem>>, %arg8: memref<12x128xf32, #tpu.memory_space<vmem>>, %arg9: memref<1x128xf32, #tpu.memory_space<vmem>>, %arg10: memref<128x12xf32, #tpu.memory_space<vmem>>, %arg11: memref<1x12xf32, #tpu.memory_space<vmem>>, %arg12: memref<12x64xf32, #tpu.memory_space<vmem>>, %arg13: memref<1x64xf32, #tpu.memory_space<vmem>>, %arg14: memref<64x128xf32, #tpu.memory_space<vmem>>, %arg15: memref<1x128xf32, #tpu.memory_space<vmem>>, %arg16: memref<128x1024xbf16, #tpu.memory_space<vmem>>, %arg17: memref<1x1024xf32, #tpu.memory_space<vmem>>, %arg18: memref<128x128xbf16, #tpu.memory_space<vmem>>, %arg19: memref<128x1024xbf16, #tpu.memory_space<vmem>>) attributes {dimension_semantics = [#tpu.dimension_semantics<parallel>], iteration_bounds = array<i64: 2>, scalar_prefetch = 0 : i64, scratch_operands = 0 : i64, tpu.core_type = #tpu.core_type<tc>, window_params = [{transform_indices = @transform_0, window_bounds = array<i64: 128, 1024>}, {pipeline_mode = #tpu.pipeline_mode<synchronous>, transform_indices = @transform_1, window_bounds = array<i64: 1024, 128>}, {pipeline_mode = #tpu.pipeline_mode<synchronous>, transform_indices = @transform_2, window_bounds = array<i64: 1, 128>}, {pipeline_mode = #tpu.pipeline_mode<synchronous>, transform_indices = @transform_3, window_bounds = array<i64: 128, 64>}, {pipeline_mode = #tpu.pipeline_mode<synchronous>, transform_indices = @transform_4, window_bounds = array<i64: 1, 64>}, {pipeline_mode = #tpu.pipeline_mode<synchronous>, transform_indices = @transform_5, window_bounds = array<i64: 64, 12>}, {pipeline_mode = #tpu.pipeline_mode<synchronous>, transform_indices = @transform_6, window_bounds = array<i64: 1, 12>}, {pipeline_mode = #tpu.pipeline_mode<synchronous>, transform_indices = @transform_7, window_bounds = array<i64: 12, 128>}, {pipeline_mode = #tpu.pipeline_mode<synchronous>, transform_indices = @transform_8, window_bounds = array<i64: 1, 128>}, {pipeline_mode = #tpu.pipeline_mode<synchronous>, transform_indices = @transform_9, window_bounds = array<i64: 128, 12>}, {pipeline_mode = #tpu.pipeline_mode<synchronous>, transform_indices = @transform_10, window_bounds = array<i64: 1, 12>}, {pipeline_mode = #tpu.pipeline_mode<synchronous>, transform_indices = @transform_11, window_bounds = array<i64: 12, 64>}, {pipeline_mode = #tpu.pipeline_mode<synchronous>, transform_indices = @transform_12, window_bounds = array<i64: 1, 64>}, {pipeline_mode = #tpu.pipeline_mode<synchronous>, transform_indices = @transform_13, window_bounds = array<i64: 64, 128>}, {pipeline_mode = #tpu.pipeline_mode<synchronous>, transform_indices = @transform_14, window_bounds = array<i64: 1, 128>}, {pipeline_mode = #tpu.pipeline_mode<synchronous>, transform_indices = @transform_15, window_bounds = array<i64: 128, 1024>}, {pipeline_mode = #tpu.pipeline_mode<synchronous>, transform_indices = @transform_16, window_bounds = array<i64: 1, 1024>}, {transform_indices = @transform_17, window_bounds = array<i64: 128, 128>}, {transform_indices = @transform_18, window_bounds = array<i64: 128, 1024>}]} {
    %c0 = arith.constant 0 : index
    %c0_0 = arith.constant 0 : index
    %0 = vector.load %arg1[%c0, %c0_0] : memref<128x1024xf32, #tpu.memory_space<vmem>>, vector<128x1024xf32>
    %1 = arith.truncf %0 : vector<128x1024xf32> to vector<128x1024xbf16>
    %c0_1 = arith.constant 0 : index
    %c0_2 = arith.constant 0 : index
    %2 = vector.load %arg2[%c0_1, %c0_2] : memref<1024x128xbf16, #tpu.memory_space<vmem>>, vector<1024x128xbf16>
    %cst = arith.constant dense<0.000000e+00> : vector<128x128xf32>
    %3 = tpu.matmul %1, %2, %cst {dimension_numbers = #tpu.dot_dimension_numbers<[1], [0], [0], [1], [0, 0, 1, 1], [], []>} : vector<128x1024xbf16>, vector<1024x128xbf16>, vector<128x128xf32> -> vector<128x128xf32>
    %c0_3 = arith.constant 0 : index
    %c0_4 = arith.constant 0 : index
    %4 = vector.load %arg3[%c0_3, %c0_4] : memref<1x128xf32, #tpu.memory_space<vmem>>, vector<1x128xf32>
    %5 = vector.broadcast %4 : vector<1x128xf32> to vector<128x128xf32>
    %6 = arith.addf %3, %5 : vector<128x128xf32>
    %7 = math.tanh %6 : vector<128x128xf32>
    %c0_5 = arith.constant 0 : index
    %c0_6 = arith.constant 0 : index
    %8 = vector.load %arg4[%c0_5, %c0_6] : memref<128x64xf32, #tpu.memory_space<vmem>>, vector<128x64xf32>
    %cst_7 = arith.constant dense<0.000000e+00> : vector<128x64xf32>
    %9 = tpu.matmul %7, %8, %cst_7 {dimension_numbers = #tpu.dot_dimension_numbers<[1], [0], [0], [1], [0, 0, 1, 1], [], []>} : vector<128x128xf32>, vector<128x64xf32>, vector<128x64xf32> -> vector<128x64xf32>
    %c0_8 = arith.constant 0 : index
    %c0_9 = arith.constant 0 : index
    %10 = vector.load %arg5[%c0_8, %c0_9] : memref<1x64xf32, #tpu.memory_space<vmem>>, vector<1x64xf32>
    %11 = vector.broadcast %10 : vector<1x64xf32> to vector<128x64xf32>
    %12 = arith.addf %9, %11 : vector<128x64xf32>
    %13 = math.tanh %12 : vector<128x64xf32>
    %c0_10 = arith.constant 0 : index
    %c0_11 = arith.constant 0 : index
    %14 = vector.load %arg6[%c0_10, %c0_11] : memref<64x12xf32, #tpu.memory_space<vmem>>, vector<64x12xf32>
    %cst_12 = arith.constant dense<0.000000e+00> : vector<128x12xf32>
    %15 = tpu.matmul %13, %14, %cst_12 {dimension_numbers = #tpu.dot_dimension_numbers<[1], [0], [0], [1], [0, 0, 1, 1], [], []>} : vector<128x64xf32>, vector<64x12xf32>, vector<128x12xf32> -> vector<128x12xf32>
    %c0_13 = arith.constant 0 : index
    %c0_14 = arith.constant 0 : index
    %16 = vector.load %arg7[%c0_13, %c0_14] : memref<1x12xf32, #tpu.memory_space<vmem>>, vector<1x12xf32>
    %17 = vector.broadcast %16 : vector<1x12xf32> to vector<128x12xf32>
    %18 = arith.addf %15, %17 : vector<128x12xf32>
    %19 = math.tanh %18 : vector<128x12xf32>
    %c0_15 = arith.constant 0 : index
    %c0_16 = arith.constant 0 : index
    %20 = vector.load %arg8[%c0_15, %c0_16] : memref<12x128xf32, #tpu.memory_space<vmem>>, vector<12x128xf32>
    %cst_17 = arith.constant dense<0.000000e+00> : vector<128x128xf32>
    %21 = tpu.matmul %19, %20, %cst_17 {dimension_numbers = #tpu.dot_dimension_numbers<[1], [0], [0], [1], [0, 0, 1, 1], [], []>} : vector<128x12xf32>, vector<12x128xf32>, vector<128x128xf32> -> vector<128x128xf32>
    %c0_18 = arith.constant 0 : index
    %c0_19 = arith.constant 0 : index
    %22 = vector.load %arg9[%c0_18, %c0_19] : memref<1x128xf32, #tpu.memory_space<vmem>>, vector<1x128xf32>
    %23 = vector.broadcast %22 : vector<1x128xf32> to vector<128x128xf32>
    %24 = arith.addf %21, %23 : vector<128x128xf32>
    %25 = arith.truncf %24 : vector<128x128xf32> to vector<128x128xbf16>
    %c0_20 = arith.constant 0 : index
    %c0_21 = arith.constant 0 : index
    %26 = vector.load %arg18[%c0_20, %c0_21] : memref<128x128xbf16, #tpu.memory_space<vmem>>, vector<128x128xbf16>
    tpu.vector_store %arg18[%c0_20, %c0_21], %25 {strides = array<i32>} : memref<128x128xbf16, #tpu.memory_space<vmem>>, vector<128x128xbf16>,
    %c0_22 = arith.constant 0 : index
    %c0_23 = arith.constant 0 : index
    %27 = vector.load %arg10[%c0_22, %c0_23] : memref<128x12xf32, #tpu.memory_space<vmem>>, vector<128x12xf32>
    %cst_24 = arith.constant dense<0.000000e+00> : vector<128x12xf32>
    %28 = tpu.matmul %24, %27, %cst_24 {dimension_numbers = #tpu.dot_dimension_numbers<[1], [0], [0], [1], [0, 0, 1, 1], [], []>} : vector<128x128xf32>, vector<128x12xf32>, vector<128x12xf32> -> vector<128x12xf32>
    %c0_25 = arith.constant 0 : index
    %c0_26 = arith.constant 0 : index
    %29 = vector.load %arg11[%c0_25, %c0_26] : memref<1x12xf32, #tpu.memory_space<vmem>>, vector<1x12xf32>
    %30 = vector.broadcast %29 : vector<1x12xf32> to vector<128x12xf32>
    %31 = arith.addf %28, %30 : vector<128x12xf32>
    %32 = math.tanh %31 : vector<128x12xf32>
    %c0_27 = arith.constant 0 : index
    %c0_28 = arith.constant 0 : index
    %33 = vector.load %arg12[%c0_27, %c0_28] : memref<12x64xf32, #tpu.memory_space<vmem>>, vector<12x64xf32>
    %cst_29 = arith.constant dense<0.000000e+00> : vector<128x64xf32>
    %34 = tpu.matmul %32, %33, %cst_29 {dimension_numbers = #tpu.dot_dimension_numbers<[1], [0], [0], [1], [0, 0, 1, 1], [], []>} : vector<128x12xf32>, vector<12x64xf32>, vector<128x64xf32> -> vector<128x64xf32>
    %c0_30 = arith.constant 0 : index
    %c0_31 = arith.constant 0 : index
    %35 = vector.load %arg13[%c0_30, %c0_31] : memref<1x64xf32, #tpu.memory_space<vmem>>, vector<1x64xf32>
    %36 = vector.broadcast %35 : vector<1x64xf32> to vector<128x64xf32>
    %37 = arith.addf %34, %36 : vector<128x64xf32>
    %38 = math.tanh %37 : vector<128x64xf32>
    %c0_32 = arith.constant 0 : index
    %c0_33 = arith.constant 0 : index
    %39 = vector.load %arg14[%c0_32, %c0_33] : memref<64x128xf32, #tpu.memory_space<vmem>>, vector<64x128xf32>
    %cst_34 = arith.constant dense<0.000000e+00> : vector<128x128xf32>
    %40 = tpu.matmul %38, %39, %cst_34 {dimension_numbers = #tpu.dot_dimension_numbers<[1], [0], [0], [1], [0, 0, 1, 1], [], []>} : vector<128x64xf32>, vector<64x128xf32>, vector<128x128xf32> -> vector<128x128xf32>
    %c0_35 = arith.constant 0 : index
    %c0_36 = arith.constant 0 : index
    %41 = vector.load %arg15[%c0_35, %c0_36] : memref<1x128xf32, #tpu.memory_space<vmem>>, vector<1x128xf32>
    %42 = vector.broadcast %41 : vector<1x128xf32> to vector<128x128xf32>
    %43 = arith.addf %40, %42 : vector<128x128xf32>
    %44 = math.tanh %43 : vector<128x128xf32>
    %45 = arith.truncf %44 : vector<128x128xf32> to vector<128x128xbf16>
    %c0_37 = arith.constant 0 : index
    %c0_38 = arith.constant 0 : index
    %46 = vector.load %arg16[%c0_37, %c0_38] : memref<128x1024xbf16, #tpu.memory_space<vmem>>, vector<128x1024xbf16>
    %cst_39 = arith.constant dense<0.000000e+00> : vector<128x1024xf32>
    %47 = tpu.matmul %45, %46, %cst_39 {dimension_numbers = #tpu.dot_dimension_numbers<[1], [0], [0], [1], [0, 0, 1, 1], [], []>} : vector<128x128xbf16>, vector<128x1024xbf16>, vector<128x1024xf32> -> vector<128x1024xf32>
    %c0_40 = arith.constant 0 : index
    %c0_41 = arith.constant 0 : index
    %48 = vector.load %arg17[%c0_40, %c0_41] : memref<1x1024xf32, #tpu.memory_space<vmem>>, vector<1x1024xf32>
    %49 = vector.broadcast %48 : vector<1x1024xf32> to vector<128x1024xf32>
    %50 = arith.addf %47, %49 : vector<128x1024xf32>
    %51 = arith.negf %50 : vector<128x1024xf32>
    %52 = math.exp %51 : vector<128x1024xf32>
    %cst_42 = arith.constant 1.000000e+00 : f32
    %53 = vector.broadcast %cst_42 : f32 to vector<128x1024xf32>
    %54 = arith.addf %53, %52 : vector<128x1024xf32>
    %55 = arith.divf %53, %54 : vector<128x1024xf32>
    %56 = arith.truncf %55 : vector<128x1024xf32> to vector<128x1024xbf16>
    %c0_43 = arith.constant 0 : index
    %c0_44 = arith.constant 0 : index
    %57 = vector.load %arg19[%c0_43, %c0_44] : memref<128x1024xbf16, #tpu.memory_space<vmem>>, vector<128x1024xbf16>
    tpu.vector_store %arg19[%c0_43, %c0_44], %56 {strides = array<i32>} : memref<128x1024xbf16, #tpu.memory_space<vmem>>, vector<128x1024xbf16>,
    return
  }
  func.func @transform_0(%arg0: i32) -> (i32, i32) {
    %c0_i32 = arith.constant 0 : i32
    %c0_i32_0 = arith.constant 0 : i32
    return %arg0, %c0_i32 : i32, i32
  }
  func.func @transform_1(%arg0: i32) -> (i32, i32) {
    %c0_i32 = arith.constant 0 : i32
    %c0_i32_0 = arith.constant 0 : i32
    %c0_i32_1 = arith.constant 0 : i32
    return %c0_i32, %c0_i32_0 : i32, i32
  }
  func.func @transform_2(%arg0: i32) -> (i32, i32) {
    %c0_i32 = arith.constant 0 : i32
    %c0_i32_0 = arith.constant 0 : i32
    %c0_i32_1 = arith.constant 0 : i32
    return %c0_i32, %c0_i32_0 : i32, i32
  }
  func.func @transform_3(%arg0: i32) -> (i32, i32) {
    %c0_i32 = arith.constant 0 : i32
    %c0_i32_0 = arith.constant 0 : i32
    %c0_i32_1 = arith.constant 0 : i32
    return %c0_i32, %c0_i32_0 : i32, i32
  }
  func.func @transform_4(%arg0: i32) -> (i32, i32) {
    %c0_i32 = arith.constant 0 : i32
    %c0_i32_0 = arith.constant 0 : i32
    %c0_i32_1 = arith.constant 0 : i32
    return %c0_i32, %c0_i32_0 : i32, i32
  }
  func.func @transform_5(%arg0: i32) -> (i32, i32) {
    %c0_i32 = arith.constant 0 : i32
    %c0_i32_0 = arith.constant 0 : i32
    %c0_i32_1 = arith.constant 0 : i32
    return %c0_i32, %c0_i32_0 : i32, i32
  }
  func.func @transform_6(%arg0: i32) -> (i32, i32) {
    %c0_i32 = arith.constant 0 : i32
    %c0_i32_0 = arith.constant 0 : i32
    %c0_i32_1 = arith.constant 0 : i32
    return %c0_i32, %c0_i32_0 : i32, i32
  }
  func.func @transform_7(%arg0: i32) -> (i32, i32) {
    %c0_i32 = arith.constant 0 : i32
    %c0_i32_0 = arith.constant 0 : i32
    %c0_i32_1 = arith.constant 0 : i32
    return %c0_i32, %c0_i32_0 : i32, i32
  }
  func.func @transform_8(%arg0: i32) -> (i32, i32) {
    %c0_i32 = arith.constant 0 : i32
    %c0_i32_0 = arith.constant 0 : i32
    %c0_i32_1 = arith.constant 0 : i32
    return %c0_i32, %c0_i32_0 : i32, i32
  }
  func.func @transform_9(%arg0: i32) -> (i32, i32) {
    %c0_i32 = arith.constant 0 : i32
    %c0_i32_0 = arith.constant 0 : i32
    %c0_i32_1 = arith.constant 0 : i32
    return %c0_i32, %c0_i32_0 : i32, i32
  }
  func.func @transform_10(%arg0: i32) -> (i32, i32) {
    %c0_i32 = arith.constant 0 : i32
    %c0_i32_0 = arith.constant 0 : i32
    %c0_i32_1 = arith.constant 0 : i32
    return %c0_i32, %c0_i32_0 : i32, i32
  }
  func.func @transform_11(%arg0: i32) -> (i32, i32) {
    %c0_i32 = arith.constant 0 : i32
    %c0_i32_0 = arith.constant 0 : i32
    %c0_i32_1 = arith.constant 0 : i32
    return %c0_i32, %c0_i32_0 : i32, i32
  }
  func.func @transform_12(%arg0: i32) -> (i32, i32) {
    %c0_i32 = arith.constant 0 : i32
    %c0_i32_0 = arith.constant 0 : i32
    %c0_i32_1 = arith.constant 0 : i32
    return %c0_i32, %c0_i32_0 : i32, i32
  }
  func.func @transform_13(%arg0: i32) -> (i32, i32) {
    %c0_i32 = arith.constant 0 : i32
    %c0_i32_0 = arith.constant 0 : i32
    %c0_i32_1 = arith.constant 0 : i32
    return %c0_i32, %c0_i32_0 : i32, i32
  }
  func.func @transform_14(%arg0: i32) -> (i32, i32) {
    %c0_i32 = arith.constant 0 : i32
    %c0_i32_0 = arith.constant 0 : i32
    %c0_i32_1 = arith.constant 0 : i32
    return %c0_i32, %c0_i32_0 : i32, i32
  }
  func.func @transform_15(%arg0: i32) -> (i32, i32) {
    %c0_i32 = arith.constant 0 : i32
    %c0_i32_0 = arith.constant 0 : i32
    %c0_i32_1 = arith.constant 0 : i32
    return %c0_i32, %c0_i32_0 : i32, i32
  }
  func.func @transform_16(%arg0: i32) -> (i32, i32) {
    %c0_i32 = arith.constant 0 : i32
    %c0_i32_0 = arith.constant 0 : i32
    %c0_i32_1 = arith.constant 0 : i32
    return %c0_i32, %c0_i32_0 : i32, i32
  }
  func.func @transform_17(%arg0: i32) -> (i32, i32) {
    %c0_i32 = arith.constant 0 : i32
    %c0_i32_0 = arith.constant 0 : i32
    return %arg0, %c0_i32 : i32, i32
  }
  func.func @transform_18(%arg0: i32) -> (i32, i32) {
    %c0_i32 = arith.constant 0 : i32
    %c0_i32_0 = arith.constant 0 : i32
    return %arg0, %c0_i32 : i32, i32
  }
}

</mosaic_0001>

<llo_original>
// kernel: tpu_custom_call.1
$region0: #{tpu_custom_call.1}
  #allocation0 [shape = 'u32[]', space=smem, size = 0x4, offset = 0x4, fixed_abs, tag = 'smem constant byte address 0x4 - core index']
  #allocation1 [shape = 'u32[144,128]{1,0:T(1,128)}', space=vmem, size = 0x12000, scoped, tag = 'internal scratch']
  %s0 = inlined_call_operand.hbm [shape: f32[200,1024], index: 0, kind: input, shape index: {}]
  %s1 = inlined_call_operand.hbm [shape: bf16[1024,128], index: 1, kind: input, shape index: {}]
  %s2 = inlined_call_operand.vmem [shape: f32[1,128], index: 2, kind: input, shape index: {}]
  %s3 = inlined_call_operand.vmem [shape: f32[128,64], index: 3, kind: input, shape index: {}]
  %s4 = inlined_call_operand.vmem [shape: f32[1,64], index: 4, kind: input, shape index: {}]
  %s5 = inlined_call_operand.vmem [shape: f32[64,12], index: 5, kind: input, shape index: {}]
  %s6 = inlined_call_operand.vmem [shape: f32[1,12], index: 6, kind: input, shape index: {}]
  %s7 = inlined_call_operand.vmem [shape: f32[12,128], index: 7, kind: input, shape index: {}]
  %s8 = inlined_call_operand.vmem [shape: f32[1,128], index: 8, kind: input, shape index: {}]
  %s9 = inlined_call_operand.vmem [shape: f32[128,12], index: 9, kind: input, shape index: {}]
  %s10 = inlined_call_operand.vmem [shape: f32[1,12], index: 10, kind: input, shape index: {}]
  %s11 = inlined_call_operand.vmem [shape: f32[12,64], index: 11, kind: input, shape index: {}]
  %s12 = inlined_call_operand.vmem [shape: f32[1,64], index: 12, kind: input, shape index: {}]
  %s13 = inlined_call_operand.vmem [shape: f32[64,128], index: 13, kind: input, shape index: {}]
  %s14 = inlined_call_operand.vmem [shape: f32[1,128], index: 14, kind: input, shape index: {}]
  %s15 = inlined_call_operand.hbm [shape: bf16[128,1024], index: 15, kind: input, shape index: {}]
  %s16 = inlined_call_operand.vmem [shape: f32[1,1024], index: 16, kind: input, shape index: {}]
  %s17 = inlined_call_operand.hbm [shape: bf16[200,128], index: 17, kind: output, shape index: {0}]
  %s18 = inlined_call_operand.hbm [shape: bf16[200,1024], index: 18, kind: output, shape index: {1}]
  %19 = xla_tuple %s17, %s18
  %s20 = sld [smem:[#allocation0]]
  $region121: #{tpu_custom_call.1} parent=0
    _
  %s22 = ssub.s32 1, %s20
  %s23 = scalar_select 0, %s22, %s20
  $region1: #{tpu_custom_call.1} parent=0
    #allocation2 [shape = 'u8[1048576]{0}', space=vmem, size = 0x100000, scoped, tag = 'input window, operand 0']
    #allocation3 [shape = 's32[2]{0}', space=sflag, size = 0x8, scoped, tag = 'scoped memory for tpu_custom_call.1']
    #allocation4 [shape = 's32[2]{0}', space=sflag, size = 0x8, scoped, tag = 'scoped memory for tpu_custom_call.1']
    #allocation5 [shape = 'u8[262144]{0}', space=vmem, size = 0x40000, scoped, tag = 'input window, operand 1, single buffered']
    #allocation6 [shape = 's32[1]{0}', space=sflag, size = 0x4, scoped, tag = 'scoped memory for tpu_custom_call.1']
    #allocation7 [shape = 'u8[262144]{0}', space=vmem, size = 0x40000, scoped, tag = 'input window, operand 15, single buffered']
    #allocation8 [shape = 'u8[65536]{0}', space=vmem, size = 0x10000, scoped, tag = 'output window, operand 0']
    #allocation9 [shape = 'u8[524288]{0}', space=vmem, size = 0x80000, scoped, tag = 'output window, operand 1']
    #allocation10 [shape = 's32[2]{0}', space=sflag, size = 0x8, scoped, tag = 'scoped memory for tpu_custom_call.1']
    %24 = vsyncpa [#allocation3], 0
    %s25 = scalar_lea.sflag [#allocation3], 1
    %26 = vsyncpa %s25, 0
    %27 = vsyncpa [#allocation6], 0
    %28 = vsyncpa [#allocation4], 0
    %s29 = scalar_lea.sflag [#allocation4], 1
    %30 = vsyncpa %s29, 0
    %31 = vsyncpa [#allocation10], 0
    %s32 = scalar_lea.sflag [#allocation10], 1
    %33 = vsyncpa %s32, 0
    loop: start=0, step=1, limit=4
    $region2: #{tpu_custom_call.1} parent=1 // loop_pre_header
      _
    $region3: #{tpu_custom_call.1} parent=1 // loop_header
      %s35 = sphi 0, %s39
      %p36 = scmp.ge.s32.totalorder %s35, 4
      %s45 = sphi 0, %s47
      %s48 = sphi 0, %s45
      %s49 = sphi 0, %s48
      %s65 = sphi 0, %s49
      %s69 = sphi 0, %s69
      %s71 = sphi 0, %s69
      %s72 = sphi 0, %s71
      %s86 = sphi 0, %s72
      %s90 = sphi 0, %s90
      %s92 = sphi 0, %s90
      %s93 = sphi 0, %s92
      %s107 = sphi 0, %s93
      %s111 = sphi 0, %s111
      %s113 = sphi 0, %s111
      %s114 = sphi 0, %s113
      %s128 = sphi 0, %s114
      %s132 = sphi 0, %s132
      %s134 = sphi 0, %s132
      %s135 = sphi 0, %s134
      %s149 = sphi 0, %s135
      %s153 = sphi 0, %s153
      %s155 = sphi 0, %s153
      %s156 = sphi 0, %s155
      %s170 = sphi 0, %s156
      %s174 = sphi 0, %s174
      %s176 = sphi 0, %s174
      %s177 = sphi 0, %s176
      %s191 = sphi 0, %s177
      %s195 = sphi 0, %s195
      %s197 = sphi 0, %s195
      %s198 = sphi 0, %s197
      %s212 = sphi 0, %s198
      %s216 = sphi 0, %s216
      %s218 = sphi 0, %s216
      %s219 = sphi 0, %s218
      %s233 = sphi 0, %s219
      %s237 = sphi 0, %s237
      %s239 = sphi 0, %s237
      %s240 = sphi 0, %s239
      %s254 = sphi 0, %s240
      %s258 = sphi 0, %s258
      %s260 = sphi 0, %s258
      %s261 = sphi 0, %s260
      %s275 = sphi 0, %s261
      %s279 = sphi 0, %s279
      %s281 = sphi 0, %s279
      %s282 = sphi 0, %s281
      %s296 = sphi 0, %s282
      %s300 = sphi 0, %s300
      %s302 = sphi 0, %s300
      %s303 = sphi 0, %s302
      %s317 = sphi 0, %s303
      %s321 = sphi 0, %s321
      %s323 = sphi 0, %s321
      %s324 = sphi 0, %s323
      %s338 = sphi 0, %s324
      %s342 = sphi 0, %s342
      %s344 = sphi 0, %s342
      %s345 = sphi 0, %s344
      %s359 = sphi 0, %s345
      %s363 = sphi 0, %s363
      %s365 = sphi 0, %s363
      %s366 = sphi 0, %s365
      %s380 = sphi 0, %s366
      %s384 = sphi 0, %s384
      %s386 = sphi 0, %s384
      %s387 = sphi 0, %s386
      %s401 = sphi 0, %s387
      %s407 = sphi 0, %s409
      %s410 = sphi 0, %s407
      %s411 = sphi 0, %s410
      %s427 = sphi 0, %s411
      %s433 = sphi 0, %s435
      %s436 = sphi 0, %s433
      %s437 = sphi 0, %s436
      %s453 = sphi 0, %s437
    $region4: #{tpu_custom_call.1} parent=1 // loop_header_branch
      %38 = sbr.rel (%p36) target = $region8
    $region5: #{tpu_custom_call.1} parent=1 // loop_body
      %s40 = ssub.s32 %s35, 1
      %s41 = ssub.s32 %s35, 2
      %s42 = sadd.s32 %s35, 1
      %s43 = ssub.s32 %s35, %s42
      %p44 = scmp.eq.s32.totalorder %s43, 0
      %s46 = sadd.s32 %s45, 1
      %s47 = scalar_select %p44, %s45, %s46
      %p50 = pneg %p44
      %p51 = scmp.eq.s32.totalorder %s35, 1
      %p52 = por %p50, %p51
      %p53 = scmp.ne.s32.totalorder %s45, %s48
      %p54 = scmp.eq.s32.totalorder %s35, 0
      %p55 = por %p53, %p54
      %p56 = scmp.ne.s32.totalorder %s45, %s48
      %p57 = scmp.eq.s32.totalorder %s40, 1
      %p58 = por %p56, %p57
      %p59 = scmp.ne.s32.totalorder %s48, %s49
      %p60 = scmp.eq.s32.totalorder %s40, 0
      %p61 = por %p59, %p60
      %p62 = scmp.ne.s32.totalorder %s48, %s49
      %p63 = scmp.eq.s32.totalorder %s41, 1
      %p64 = por %p62, %p63
      %p66 = scmp.ne.s32.totalorder %s49, %s65
      %p67 = scmp.eq.s32.totalorder %s41, 0
      %p68 = por %p66, %p67
      %s70 = sadd.s32 %s69, 1
      %p73 = scmp.eq.s32.totalorder %s35, 1
      %p74 = scmp.ne.s32.totalorder %s69, %s71
      %p75 = scmp.eq.s32.totalorder %s35, 0
      %p76 = por %p74, %p75
      %p77 = scmp.ne.s32.totalorder %s69, %s71
      %p78 = scmp.eq.s32.totalorder %s40, 1
      %p79 = por %p77, %p78
      %p80 = scmp.ne.s32.totalorder %s71, %s72
      %p81 = scmp.eq.s32.totalorder %s40, 0
      %p82 = por %p80, %p81
      %p83 = scmp.ne.s32.totalorder %s71, %s72
      %p84 = scmp.eq.s32.totalorder %s41, 1
      %p85 = por %p83, %p84
      %p87 = scmp.ne.s32.totalorder %s72, %s86
      %p88 = scmp.eq.s32.totalorder %s41, 0
      %p89 = por %p87, %p88
      %s91 = sadd.s32 %s90, 1
      %p94 = scmp.eq.s32.totalorder %s35, 1
      %p95 = scmp.ne.s32.totalorder %s90, %s92
      %p96 = scmp.eq.s32.totalorder %s35, 0
      %p97 = por %p95, %p96
      %p98 = scmp.ne.s32.totalorder %s90, %s92
      %p99 = scmp.eq.s32.totalorder %s40, 1
      %p100 = por %p98, %p99
      %p101 = scmp.ne.s32.totalorder %s92, %s93
      %p102 = scmp.eq.s32.totalorder %s40, 0
      %p103 = por %p101, %p102
      %p104 = scmp.ne.s32.totalorder %s92, %s93
      %p105 = scmp.eq.s32.totalorder %s41, 1
      %p106 = por %p104, %p105
      %p108 = scmp.ne.s32.totalorder %s93, %s107
      %p109 = scmp.eq.s32.totalorder %s41, 0
      %p110 = por %p108, %p109
      %s112 = sadd.s32 %s111, 1
      %p115 = scmp.eq.s32.totalorder %s35, 1
      %p116 = scmp.ne.s32.totalorder %s111, %s113
      %p117 = scmp.eq.s32.totalorder %s35, 0
      %p118 = por %p116, %p117
      %p119 = scmp.ne.s32.totalorder %s111, %s113
      %p120 = scmp.eq.s32.totalorder %s40, 1
      %p121 = por %p119, %p120
      %p122 = scmp.ne.s32.totalorder %s113, %s114
      %p123 = scmp.eq.s32.totalorder %s40, 0
      %p124 = por %p122, %p123
      %p125 = scmp.ne.s32.totalorder %s113, %s114
      %p126 = scmp.eq.s32.totalorder %s41, 1
      %p127 = por %p125, %p126
      %p129 = scmp.ne.s32.totalorder %s114, %s128
      %p130 = scmp.eq.s32.totalorder %s41, 0
      %p131 = por %p129, %p130
      %s133 = sadd.s32 %s132, 1
      %p136 = scmp.eq.s32.totalorder %s35, 1
      %p137 = scmp.ne.s32.totalorder %s132, %s134
      %p138 = scmp.eq.s32.totalorder %s35, 0
      %p139 = por %p137, %p138
      %p140 = scmp.ne.s32.totalorder %s132, %s134
      %p141 = scmp.eq.s32.totalorder %s40, 1
      %p142 = por %p140, %p141
      %p143 = scmp.ne.s32.totalorder %s134, %s135
      %p144 = scmp.eq.s32.totalorder %s40, 0
      %p145 = por %p143, %p144
      %p146 = scmp.ne.s32.totalorder %s134, %s135
      %p147 = scmp.eq.s32.totalorder %s41, 1
      %p148 = por %p146, %p147
      %p150 = scmp.ne.s32.totalorder %s135, %s149
      %p151 = scmp.eq.s32.totalorder %s41, 0
      %p152 = por %p150, %p151
      %s154 = sadd.s32 %s153, 1
      %p157 = scmp.eq.s32.totalorder %s35, 1
      %p158 = scmp.ne.s32.totalorder %s153, %s155
      %p159 = scmp.eq.s32.totalorder %s35, 0
      %p160 = por %p158, %p159
      %p161 = scmp.ne.s32.totalorder %s153, %s155
      %p162 = scmp.eq.s32.totalorder %s40, 1
      %p163 = por %p161, %p162
      %p164 = scmp.ne.s32.totalorder %s155, %s156
      %p165 = scmp.eq.s32.totalorder %s40, 0
      %p166 = por %p164, %p165
      %p167 = scmp.ne.s32.totalorder %s155, %s156
      %p168 = scmp.eq.s32.totalorder %s41, 1
      %p169 = por %p167, %p168
      %p171 = scmp.ne.s32.totalorder %s156, %s170
      %p172 = scmp.eq.s32.totalorder %s41, 0
      %p173 = por %p171, %p172
      %s175 = sadd.s32 %s174, 1
      %p178 = scmp.eq.s32.totalorder %s35, 1
      %p179 = scmp.ne.s32.totalorder %s174, %s176
      %p180 = scmp.eq.s32.totalorder %s35, 0
      %p181 = por %p179, %p180
      %p182 = scmp.ne.s32.totalorder %s174, %s176
      %p183 = scmp.eq.s32.totalorder %s40, 1
      %p184 = por %p182, %p183
      %p185 = scmp.ne.s32.totalorder %s176, %s177
      %p186 = scmp.eq.s32.totalorder %s40, 0
      %p187 = por %p185, %p186
      %p188 = scmp.ne.s32.totalorder %s176, %s177
      %p189 = scmp.eq.s32.totalorder %s41, 1
      %p190 = por %p188, %p189
      %p192 = scmp.ne.s32.totalorder %s177, %s191
      %p193 = scmp.eq.s32.totalorder %s41, 0
      %p194 = por %p192, %p193
      %s196 = sadd.s32 %s195, 1
      %p199 = scmp.eq.s32.totalorder %s35, 1
      %p200 = scmp.ne.s32.totalorder %s195, %s197
      %p201 = scmp.eq.s32.totalorder %s35, 0
      %p202 = por %p200, %p201
      %p203 = scmp.ne.s32.totalorder %s195, %s197
      %p204 = scmp.eq.s32.totalorder %s40, 1
      %p205 = por %p203, %p204
      %p206 = scmp.ne.s32.totalorder %s197, %s198
      %p207 = scmp.eq.s32.totalorder %s40, 0
      %p208 = por %p206, %p207
      %p209 = scmp.ne.s32.totalorder %s197, %s198
      %p210 = scmp.eq.s32.totalorder %s41, 1
      %p211 = por %p209, %p210
      %p213 = scmp.ne.s32.totalorder %s198, %s212
      %p214 = scmp.eq.s32.totalorder %s41, 0
      %p215 = por %p213, %p214
      %s217 = sadd.s32 %s216, 1
      %p220 = scmp.eq.s32.totalorder %s35, 1
      %p221 = scmp.ne.s32.totalorder %s216, %s218
      %p222 = scmp.eq.s32.totalorder %s35, 0
      %p223 = por %p221, %p222
      %p224 = scmp.ne.s32.totalorder %s216, %s218
      %p225 = scmp.eq.s32.totalorder %s40, 1
      %p226 = por %p224, %p225
      %p227 = scmp.ne.s32.totalorder %s218, %s219
      %p228 = scmp.eq.s32.totalorder %s40, 0
      %p229 = por %p227, %p228
      %p230 = scmp.ne.s32.totalorder %s218, %s219
      %p231 = scmp.eq.s32.totalorder %s41, 1
      %p232 = por %p230, %p231
      %p234 = scmp.ne.s32.totalorder %s219, %s233
      %p235 = scmp.eq.s32.totalorder %s41, 0
      %p236 = por %p234, %p235
      %s238 = sadd.s32 %s237, 1
      %p241 = scmp.eq.s32.totalorder %s35, 1
      %p242 = scmp.ne.s32.totalorder %s237, %s239
      %p243 = scmp.eq.s32.totalorder %s35, 0
      %p244 = por %p242, %p243
      %p245 = scmp.ne.s32.totalorder %s237, %s239
      %p246 = scmp.eq.s32.totalorder %s40, 1
      %p247 = por %p245, %p246
      %p248 = scmp.ne.s32.totalorder %s239, %s240
      %p249 = scmp.eq.s32.totalorder %s40, 0
      %p250 = por %p248, %p249
      %p251 = scmp.ne.s32.totalorder %s239, %s240
      %p252 = scmp.eq.s32.totalorder %s41, 1
      %p253 = por %p251, %p252
      %p255 = scmp.ne.s32.totalorder %s240, %s254
      %p256 = scmp.eq.s32.totalorder %s41, 0
      %p257 = por %p255, %p256
      %s259 = sadd.s32 %s258, 1
      %p262 = scmp.eq.s32.totalorder %s35, 1
      %p263 = scmp.ne.s32.totalorder %s258, %s260
      %p264 = scmp.eq.s32.totalorder %s35, 0
      %p265 = por %p263, %p264
      %p266 = scmp.ne.s32.totalorder %s258, %s260
      %p267 = scmp.eq.s32.totalorder %s40, 1
      %p268 = por %p266, %p267
      %p269 = scmp.ne.s32.totalorder %s260, %s261
      %p270 = scmp.eq.s32.totalorder %s40, 0
      %p271 = por %p269, %p270
      %p272 = scmp.ne.s32.totalorder %s260, %s261
      %p273 = scmp.eq.s32.totalorder %s41, 1
      %p274 = por %p272, %p273
      %p276 = scmp.ne.s32.totalorder %s261, %s275
      %p277 = scmp.eq.s32.totalorder %s41, 0
      %p278 = por %p276, %p277
      %s280 = sadd.s32 %s279, 1
      %p283 = scmp.eq.s32.totalorder %s35, 1
      %p284 = scmp.ne.s32.totalorder %s279, %s281
      %p285 = scmp.eq.s32.totalorder %s35, 0
      %p286 = por %p284, %p285
      %p287 = scmp.ne.s32.totalorder %s279, %s281
      %p288 = scmp.eq.s32.totalorder %s40, 1
      %p289 = por %p287, %p288
      %p290 = scmp.ne.s32.totalorder %s281, %s282
      %p291 = scmp.eq.s32.totalorder %s40, 0
      %p292 = por %p290, %p291
      %p293 = scmp.ne.s32.totalorder %s281, %s282
      %p294 = scmp.eq.s32.totalorder %s41, 1
      %p295 = por %p293, %p294
      %p297 = scmp.ne.s32.totalorder %s282, %s296
      %p298 = scmp.eq.s32.totalorder %s41, 0
      %p299 = por %p297, %p298
      %s301 = sadd.s32 %s300, 1
      %p304 = scmp.eq.s32.totalorder %s35, 1
      %p305 = scmp.ne.s32.totalorder %s300, %s302
      %p306 = scmp.eq.s32.totalorder %s35, 0
      %p307 = por %p305, %p306
      %p308 = scmp.ne.s32.totalorder %s300, %s302
      %p309 = scmp.eq.s32.totalorder %s40, 1
      %p310 = por %p308, %p309
      %p311 = scmp.ne.s32.totalorder %s302, %s303
      %p312 = scmp.eq.s32.totalorder %s40, 0
      %p313 = por %p311, %p312
      %p314 = scmp.ne.s32.totalorder %s302, %s303
      %p315 = scmp.eq.s32.totalorder %s41, 1
      %p316 = por %p314, %p315
      %p318 = scmp.ne.s32.totalorder %s303, %s317
      %p319 = scmp.eq.s32.totalorder %s41, 0
      %p320 = por %p318, %p319
      %s322 = sadd.s32 %s321, 1
      %p325 = scmp.eq.s32.totalorder %s35, 1
      %p326 = scmp.ne.s32.totalorder %s321, %s323
      %p327 = scmp.eq.s32.totalorder %s35, 0
      %p328 = por %p326, %p327
      %p329 = scmp.ne.s32.totalorder %s321, %s323
      %p330 = scmp.eq.s32.totalorder %s40, 1
      %p331 = por %p329, %p330
      %p332 = scmp.ne.s32.totalorder %s323, %s324
      %p333 = scmp.eq.s32.totalorder %s40, 0
      %p334 = por %p332, %p333
      %p335 = scmp.ne.s32.totalorder %s323, %s324
      %p336 = scmp.eq.s32.totalorder %s41, 1
      %p337 = por %p335, %p336
      %p339 = scmp.ne.s32.totalorder %s324, %s338
      %p340 = scmp.eq.s32.totalorder %s41, 0
      %p341 = por %p339, %p340
      %s343 = sadd.s32 %s342, 1
      %p346 = scmp.eq.s32.totalorder %s35, 1
      %p347 = scmp.ne.s32.totalorder %s342, %s344
      %p348 = scmp.eq.s32.totalorder %s35, 0
      %p349 = por %p347, %p348
      %p350 = scmp.ne.s32.totalorder %s342, %s344
      %p351 = scmp.eq.s32.totalorder %s40, 1
      %p352 = por %p350, %p351
      %p353 = scmp.ne.s32.totalorder %s344, %s345
      %p354 = scmp.eq.s32.totalorder %s40, 0
      %p355 = por %p353, %p354
      %p356 = scmp.ne.s32.totalorder %s344, %s345
      %p357 = scmp.eq.s32.totalorder %s41, 1
      %p358 = por %p356, %p357
      %p360 = scmp.ne.s32.totalorder %s345, %s359
      %p361 = scmp.eq.s32.totalorder %s41, 0
      %p362 = por %p360, %p361
      %s364 = sadd.s32 %s363, 1
      %p367 = scmp.eq.s32.totalorder %s35, 1
      %p368 = scmp.ne.s32.totalorder %s363, %s365
      %p369 = scmp.eq.s32.totalorder %s35, 0
      %p370 = por %p368, %p369
      %p371 = scmp.ne.s32.totalorder %s363, %s365
      %p372 = scmp.eq.s32.totalorder %s40, 1
      %p373 = por %p371, %p372
      %p374 = scmp.ne.s32.totalorder %s365, %s366
      %p375 = scmp.eq.s32.totalorder %s40, 0
      %p376 = por %p374, %p375
      %p377 = scmp.ne.s32.totalorder %s365, %s366
      %p378 = scmp.eq.s32.totalorder %s41, 1
      %p379 = por %p377, %p378
      %p381 = scmp.ne.s32.totalorder %s366, %s380
      %p382 = scmp.eq.s32.totalorder %s41, 0
      %p383 = por %p381, %p382
      %s385 = sadd.s32 %s384, 1
      %p388 = scmp.eq.s32.totalorder %s35, 1
      %p389 = scmp.ne.s32.totalorder %s384, %s386
      %p390 = scmp.eq.s32.totalorder %s35, 0
      %p391 = por %p389, %p390
      %p392 = scmp.ne.s32.totalorder %s384, %s386
      %p393 = scmp.eq.s32.totalorder %s40, 1
      %p394 = por %p392, %p393
      %p395 = scmp.ne.s32.totalorder %s386, %s387
      %p396 = scmp.eq.s32.totalorder %s40, 0
      %p397 = por %p395, %p396
      %p398 = scmp.ne.s32.totalorder %s386, %s387
      %p399 = scmp.eq.s32.totalorder %s41, 1
      %p400 = por %p398, %p399
      %p402 = scmp.ne.s32.totalorder %s387, %s401
      %p403 = scmp.eq.s32.totalorder %s41, 0
      %p404 = por %p402, %p403
      %s405 = ssub.s32 %s35, %s42
      %p406 = scmp.eq.s32.totalorder %s405, 0
      %s408 = sadd.s32 %s407, 1
      %s409 = scalar_select %p406, %s407, %s408
      %p412 = pneg %p406
      %p413 = scmp.eq.s32.totalorder %s35, 1
      %p414 = por %p412, %p413
      %p415 = scmp.ne.s32.totalorder %s407, %s410
      %p416 = scmp.eq.s32.totalorder %s35, 0
      %p417 = por %p415, %p416
      %p418 = scmp.ne.s32.totalorder %s407, %s410
      %p419 = scmp.eq.s32.totalorder %s40, 1
      %p420 = por %p418, %p419
      %p421 = scmp.ne.s32.totalorder %s410, %s411
      %p422 = scmp.eq.s32.totalorder %s40, 0
      %p423 = por %p421, %p422
      %p424 = scmp.ne.s32.totalorder %s410, %s411
      %p425 = scmp.eq.s32.totalorder %s41, 1
      %p426 = por %p424, %p425
      %p428 = scmp.ne.s32.totalorder %s411, %s427
      %p429 = scmp.eq.s32.totalorder %s41, 0
      %p430 = por %p428, %p429
      %s431 = ssub.s32 %s35, %s42
      %p432 = scmp.eq.s32.totalorder %s431, 0
      %s434 = sadd.s32 %s433, 1
      %s435 = scalar_select %p432, %s433, %s434
      %p438 = pneg %p432
      %p439 = scmp.eq.s32.totalorder %s35, 1
      %p440 = por %p438, %p439
      %p441 = scmp.ne.s32.totalorder %s433, %s436
      %p442 = scmp.eq.s32.totalorder %s35, 0
      %p443 = por %p441, %p442
      %p444 = scmp.ne.s32.totalorder %s433, %s436
      %p445 = scmp.eq.s32.totalorder %s40, 1
      %p446 = por %p444, %p445
      %p447 = scmp.ne.s32.totalorder %s436, %s437
      %p448 = scmp.eq.s32.totalorder %s40, 0
      %p449 = por %p447, %p448
      %p450 = scmp.ne.s32.totalorder %s436, %s437
      %p451 = scmp.eq.s32.totalorder %s41, 1
      %p452 = por %p450, %p451
      %p454 = scmp.ne.s32.totalorder %s437, %s453
      %p455 = scmp.eq.s32.totalorder %s41, 0
      %p456 = por %p454, %p455
      %p457 = scmp.le.s32.totalorder 1, %s35
      %p458 = scmp.lt.s32.totalorder %s35, 3
      %p459 = pnand %p457, %p458
      %p460 = pneg %p459
      // Predicated region
      $region9: #{tpu_custom_call.1} parent=5 // pred_check
        _
      $region10: #{tpu_custom_call.1} parent=5 // pred_check_branch
        %462 = sbr.rel (%p459) target = $region12
      $region11: #{tpu_custom_call.1} parent=5 // pred_region
        %s463 = ssub.s32 %s35, 1
        // Predicated region
        $region13: #{tpu_custom_call.1} parent=11 // pred_check
          %p464 = pneg %p82
        $region14: #{tpu_custom_call.1} parent=11 // pred_check_branch
          %466 = sbr.rel (%p464) target = $region16
        $region15: #{tpu_custom_call.1} parent=11 // pred_region
          %s468 = ssub.s32 8192, 8192
          %469 = vsyncadd [#allocation6], %s468
          %s470 = sshll.u32 [#allocation5], 4
          %s471 = int_to_ptr.vmem [resolvable:$true] %s470
          %476 = dma.hbm_to_vmem [thread:$0]  %s1, 8192, %s471, [#allocation6], 64, 64, 4
        $region16: #{tpu_custom_call.1} parent=11 // pred_fallthru
          _
        // Predicated region
        $region17: #{tpu_custom_call.1} parent=11 // pred_check
          %p477 = pneg %p103
        $region18: #{tpu_custom_call.1} parent=11 // pred_check_branch
          %479 = sbr.rel (%p477) target = $region20
        $region19: #{tpu_custom_call.1} parent=11 // pred_region
          _
        $region20: #{tpu_custom_call.1} parent=11 // pred_fallthru
          _
        // Predicated region
        $region21: #{tpu_custom_call.1} parent=11 // pred_check
          %p480 = pneg %p124
        $region22: #{tpu_custom_call.1} parent=11 // pred_check_branch
          %482 = sbr.rel (%p480) target = $region24
        $region23: #{tpu_custom_call.1} parent=11 // pred_region
          _
        $region24: #{tpu_custom_call.1} parent=11 // pred_fallthru
          _
        // Predicated region
        $region25: #{tpu_custom_call.1} parent=11 // pred_check
          %p483 = pneg %p145
        $region26: #{tpu_custom_call.1} parent=11 // pred_check_branch
          %485 = sbr.rel (%p483) target = $region28
        $region27: #{tpu_custom_call.1} parent=11 // pred_region
          _
        $region28: #{tpu_custom_call.1} parent=11 // pred_fallthru
          _
        // Predicated region
        $region29: #{tpu_custom_call.1} parent=11 // pred_check
          %p486 = pneg %p166
        $region30: #{tpu_custom_call.1} parent=11 // pred_check_branch
          %488 = sbr.rel (%p486) target = $region32
        $region31: #{tpu_custom_call.1} parent=11 // pred_region
          _
        $region32: #{tpu_custom_call.1} parent=11 // pred_fallthru
          _
        // Predicated region
        $region33: #{tpu_custom_call.1} parent=11 // pred_check
          %p489 = pneg %p187
        $region34: #{tpu_custom_call.1} parent=11 // pred_check_branch
          %491 = sbr.rel (%p489) target = $region36
        $region35: #{tpu_custom_call.1} parent=11 // pred_region
          _
        $region36: #{tpu_custom_call.1} parent=11 // pred_fallthru
          _
        // Predicated region
        $region37: #{tpu_custom_call.1} parent=11 // pred_check
          %p492 = pneg %p208
        $region38: #{tpu_custom_call.1} parent=11 // pred_check_branch
          %494 = sbr.rel (%p492) target = $region40
        $region39: #{tpu_custom_call.1} parent=11 // pred_region
          _
        $region40: #{tpu_custom_call.1} parent=11 // pred_fallthru
          _
        // Predicated region
        $region41: #{tpu_custom_call.1} parent=11 // pred_check
          %p495 = pneg %p229
        $region42: #{tpu_custom_call.1} parent=11 // pred_check_branch
          %497 = sbr.rel (%p495) target = $region44
        $region43: #{tpu_custom_call.1} parent=11 // pred_region
          _
        $region44: #{tpu_custom_call.1} parent=11 // pred_fallthru
          _
        // Predicated region
        $region45: #{tpu_custom_call.1} parent=11 // pred_check
          %p498 = pneg %p250
        $region46: #{tpu_custom_call.1} parent=11 // pred_check_branch
          %500 = sbr.rel (%p498) target = $region48
        $region47: #{tpu_custom_call.1} parent=11 // pred_region
          _
        $region48: #{tpu_custom_call.1} parent=11 // pred_fallthru
          _
        // Predicated region
        $region49: #{tpu_custom_call.1} parent=11 // pred_check
          %p501 = pneg %p271
        $region50: #{tpu_custom_call.1} parent=11 // pred_check_branch
          %503 = sbr.rel (%p501) target = $region52
        $region51: #{tpu_custom_call.1} parent=11 // pred_region
          _
        $region52: #{tpu_custom_call.1} parent=11 // pred_fallthru
          _
        // Predicated region
        $region53: #{tpu_custom_call.1} parent=11 // pred_check
          %p504 = pneg %p292
        $region54: #{tpu_custom_call.1} parent=11 // pred_check_branch
          %506 = sbr.rel (%p504) target = $region56
        $region55: #{tpu_custom_call.1} parent=11 // pred_region
          _
        $region56: #{tpu_custom_call.1} parent=11 // pred_fallthru
          _
        // Predicated region
        $region57: #{tpu_custom_call.1} parent=11 // pred_check
          %p507 = pneg %p313
        $region58: #{tpu_custom_call.1} parent=11 // pred_check_branch
          %509 = sbr.rel (%p507) target = $region60
        $region59: #{tpu_custom_call.1} parent=11 // pred_region
          _
        $region60: #{tpu_custom_call.1} parent=11 // pred_fallthru
          _
        // Predicated region
        $region61: #{tpu_custom_call.1} parent=11 // pred_check
          %p510 = pneg %p334
        $region62: #{tpu_custom_call.1} parent=11 // pred_check_branch
          %512 = sbr.rel (%p510) target = $region64
        $region63: #{tpu_custom_call.1} parent=11 // pred_region
          _
        $region64: #{tpu_custom_call.1} parent=11 // pred_fallthru
          _
        // Predicated region
        $region65: #{tpu_custom_call.1} parent=11 // pred_check
          %p513 = pneg %p355
        $region66: #{tpu_custom_call.1} parent=11 // pred_check_branch
          %515 = sbr.rel (%p513) target = $region68
        $region67: #{tpu_custom_call.1} parent=11 // pred_region
          _
        $region68: #{tpu_custom_call.1} parent=11 // pred_fallthru
          _
        // Predicated region
        $region69: #{tpu_custom_call.1} parent=11 // pred_check
          %p516 = pneg %p376
        $region70: #{tpu_custom_call.1} parent=11 // pred_check_branch
          %518 = sbr.rel (%p516) target = $region72
        $region71: #{tpu_custom_call.1} parent=11 // pred_region
          %s520 = ssub.s32 8192, 8192
          %521 = vsyncadd [#allocation6], %s520
          %s522 = sshll.u32 [#allocation7], 4
          %s523 = int_to_ptr.vmem [resolvable:$true] %s522
          %528 = dma.hbm_to_vmem [thread:$0]  %s15, 8192, %s523, [#allocation6], 512, 512, 32
        $region72: #{tpu_custom_call.1} parent=11 // pred_fallthru
          _
        // Predicated region
        $region73: #{tpu_custom_call.1} parent=11 // pred_check
          %p529 = pneg %p397
        $region74: #{tpu_custom_call.1} parent=11 // pred_check_branch
          %531 = sbr.rel (%p529) target = $region76
        $region75: #{tpu_custom_call.1} parent=11 // pred_region
          _
        $region76: #{tpu_custom_call.1} parent=11 // pred_fallthru
          _
      $region12: #{tpu_custom_call.1} parent=5 // pred_fallthru
        _
      %p532 = scmp.lt.s32.totalorder %s35, 2
      // Predicated region
      $region77: #{tpu_custom_call.1} parent=5 // pred_check
        %p533 = pneg %p532
      $region78: #{tpu_custom_call.1} parent=5 // pred_check_branch
        %535 = sbr.rel (%p533) target = $region80
      $region79: #{tpu_custom_call.1} parent=5 // pred_region
        // Predicated region
        $region81: #{tpu_custom_call.1} parent=79 // pred_check
          %p536 = pneg %p55
        $region82: #{tpu_custom_call.1} parent=79 // pred_check_branch
          %538 = sbr.rel (%p536) target = $region84
        $region83: #{tpu_custom_call.1} parent=79 // pred_region
          %s539 = sand.u32 %s45, 1
          %s540 = scalar_lea.sflag [#allocation3], %s539
          %s541 = sand.u32 %s45, 1
          %s542 = smul.addr %s541, 1024
          %s543 = scalar_lea.vmem [#allocation2], %s542
          %s544 = smul.u32 16, %s35
          %s545 = ssub.s32 25, %s544
          %p546 = scmp.lt.s32.totalorder %s545, 16
          %s547 = scalar_select %p546, %s545, 16
          %s548 = smul.u32 128, %s547
          %s549 = smul.u32 %s548, 8
          %s551 = ssub.s32 16384, %s549
          %552 = vsyncadd %s540, %s551
          %p553 = scmp.ne.s32.totalorder 0, %s549
          %s554 = smul.addr %s544, 8
          %s555 = smul.addr %s554, 128
          %s556 = scalar_lea.hbm %s0, %s555
          %s557 = smul.u32 64, %s547
          %s558 = sshll.u32 %s543, 4
          %s559 = int_to_ptr.vmem [resolvable:$true] %s558
          %s560 = sshll.u32 %s557, 4
          %564 = dma.hbm_to_vmem [thread:$0]  (%p553), %s556, %s560, %s559, %s540, 1024, 1024, 64
        $region84: #{tpu_custom_call.1} parent=79 // pred_fallthru
          _
      $region80: #{tpu_custom_call.1} parent=5 // pred_fallthru
        _
      %p565 = scmp.le.s32.totalorder 1, %s35
      %p566 = scmp.lt.s32.totalorder %s35, 3
      %p567 = pnand %p565, %p566
      %p568 = pneg %p567
      // Predicated region
      $region85: #{tpu_custom_call.1} parent=5 // pred_check
        _
      $region86: #{tpu_custom_call.1} parent=5 // pred_check_branch
        %570 = sbr.rel (%p567) target = $region88
      $region87: #{tpu_custom_call.1} parent=5 // pred_region
        %s571 = ssub.s32 %s35, 1
        %s572 = sand.u32 %s48, 1
        %s573 = scalar_lea.sflag [#allocation3], %s572
        %s574 = sand.u32 %s48, 1
        %s575 = smul.addr %s574, 1024
        %s576 = scalar_lea.vmem [#allocation2], %s575
        // Predicated region
        $region89: #{tpu_custom_call.1} parent=87 // pred_check
          %p577 = pneg %p61
        $region90: #{tpu_custom_call.1} parent=87 // pred_check_branch
          %579 = sbr.rel (%p577) target = $region92
        $region91: #{tpu_custom_call.1} parent=87 // pred_region
          %580 = dma.done %s573, 16384
        $region92: #{tpu_custom_call.1} parent=87 // pred_fallthru
          _
        // Predicated region
        $region93: #{tpu_custom_call.1} parent=87 // pred_check
          %p581 = pneg %p82
        $region94: #{tpu_custom_call.1} parent=87 // pred_check_branch
          %583 = sbr.rel (%p581) target = $region96
        $region95: #{tpu_custom_call.1} parent=87 // pred_region
          %584 = dma.done [#allocation6], 8192
        $region96: #{tpu_custom_call.1} parent=87 // pred_fallthru
          _
        // Predicated region
        $region97: #{tpu_custom_call.1} parent=87 // pred_check
          %p585 = pneg %p376
        $region98: #{tpu_custom_call.1} parent=87 // pred_check_branch
          %587 = sbr.rel (%p585) target = $region100
        $region99: #{tpu_custom_call.1} parent=87 // pred_region
          %588 = dma.done [#allocation6], 8192
        $region100: #{tpu_custom_call.1} parent=87 // pred_fallthru
          _
        %s589 = sand.u32 %s48, 1
        %s590 = scalar_lea.sflag [#allocation3], %s589
        %s591 = sand.u32 %s48, 1
        %s592 = smul.addr %s591, 1024
        %s593 = scalar_lea.vmem [#allocation2], %s592
        %p594 = pneg %p61
        %p595 = pneg %p58
        %p596 = pneg %p82
        %p597 = pneg %p79
        %p598 = pneg %p103
        %p599 = pneg %p100
        %p600 = pneg %p124
        %p601 = pneg %p121
        %p602 = pneg %p145
        %p603 = pneg %p142
        %p604 = pneg %p166
        %p605 = pneg %p163
        %p606 = pneg %p187
        %p607 = pneg %p184
        %p608 = pneg %p208
        %p609 = pneg %p205
        %p610 = pneg %p229
        %p611 = pneg %p226
        %p612 = pneg %p250
        %p613 = pneg %p247
        %p614 = pneg %p271
        %p615 = pneg %p268
        %p616 = pneg %p292
        %p617 = pneg %p289
        %p618 = pneg %p313
        %p619 = pneg %p310
        %p620 = pneg %p334
        %p621 = pneg %p331
        %p622 = pneg %p355
        %p623 = pneg %p352
        %p624 = pneg %p376
        %p625 = pneg %p373
        %p626 = pneg %p397
        %p627 = pneg %p394
        %p628 = pneg %p423
        %p629 = pneg %p420
        %s630 = sand.u32 %s410, 1
        %s631 = scalar_lea.sflag [#allocation4], %s630
        %s632 = sand.u32 %s410, 1
        %s633 = smul.addr %s632, 64
        %s634 = scalar_lea.vmem [#allocation8], %s633
        %p635 = pneg %p449
        %p636 = pneg %p446
        %s637 = sand.u32 %s436, 1
        %s638 = scalar_lea.sflag [#allocation10], %s637
        %s639 = sand.u32 %s436, 1
        %s640 = smul.addr %s639, 512
        %s641 = scalar_lea.vmem [#allocation9], %s640
        %s642 = smul.u32 16, %s40
        %s643 = ssub.s32 25, %s642
        %p644 = scmp.lt.s32.totalorder %s643, 16
        %s645 = scalar_select %p644, %s643, 16
        %s646 = smul.u32 128, %s645
        %s647 = smul.u32 %s646, 8
        %s648 = smul.u32 16, %s40
        %s649 = ssub.s32 25, %s648
        %p650 = scmp.lt.s32.totalorder %s649, 16
        %s651 = scalar_select %p650, %s649, 16
        %s652 = smul.u32 64, %s651
        %s653 = smul.u32 16, %s40
        %s654 = ssub.s32 25, %s653
        %p655 = scmp.lt.s32.totalorder %s654, 16
        %s656 = scalar_select %p655, %s654, 16
        %s657 = smul.u32 64, %s656
        %s658 = smul.u32 %s657, 8
        %v660 = vld [vmem:[%s576] sm:$0xff]
        %v661 = vld [vmem:[%s576 + $0x8] sm:$0xff]
        %v662 = vld [vmem:[%s576 + $0x10] sm:$0xff]
        %v663 = vld [vmem:[%s576 + $0x18] sm:$0xff]
        %v664 = vld [vmem:[%s576 + $0x20] sm:$0xff]
        %v665 = vld [vmem:[%s576 + $0x28] sm:$0xff]
        %v666 = vld [vmem:[%s576 + $0x30] sm:$0xff]
        %v667 = vld [vmem:[%s576 + $0x38] sm:$0xff]
        %v668 = vld [vmem:[%s576 + $0x40] sm:$0xff]
        %v669 = vld [vmem:[%s576 + $0x48] sm:$0xff]
        %v670 = vld [vmem:[%s576 + $0x50] sm:$0xff]
        %v671 = vld [vmem:[%s576 + $0x58] sm:$0xff]
        %v672 = vld [vmem:[%s576 + $0x60] sm:$0xff]
        %v673 = vld [vmem:[%s576 + $0x68] sm:$0xff]
        %v674 = vld [vmem:[%s576 + $0x70] sm:$0xff]
        %v675 = vld [vmem:[%s576 + $0x78] sm:$0xff]
        %v676 = vld [vmem:[%s576 + $0x80] sm:$0xff]
        %v677 = vld [vmem:[%s576 + $0x88] sm:$0xff]
        %v678 = vld [vmem:[%s576 + $0x90] sm:$0xff]
        %v679 = vld [vmem:[%s576 + $0x98] sm:$0xff]
        %v680 = vld [vmem:[%s576 + $0xa0] sm:$0xff]
        %v681 = vld [vmem:[%s576 + $0xa8] sm:$0xff]
        %v682 = vld [vmem:[%s576 + $0xb0] sm:$0xff]
        %v683 = vld [vmem:[%s576 + $0xb8] sm:$0xff]
        %v684 = vld [vmem:[%s576 + $0xc0] sm:$0xff]
        %v685 = vld [vmem:[%s576 + $0xc8] sm:$0xff]
        %v686 = vld [vmem:[%s576 + $0xd0] sm:$0xff]
        %v687 = vld [vmem:[%s576 + $0xd8] sm:$0xff]
        %v688 = vld [vmem:[%s576 + $0xe0] sm:$0xff]
        %v689 = vld [vmem:[%s576 + $0xe8] sm:$0xff]
        %v690 = vld [vmem:[%s576 + $0xf0] sm:$0xff]
        %v691 = vld [vmem:[%s576 + $0xf8] sm:$0xff]
        %v692 = vld [vmem:[%s576 + $0x100] sm:$0xff]
        %v693 = vld [vmem:[%s576 + $0x108] sm:$0xff]
        %v694 = vld [vmem:[%s576 + $0x110] sm:$0xff]
        %v695 = vld [vmem:[%s576 + $0x118] sm:$0xff]
        %v696 = vld [vmem:[%s576 + $0x120] sm:$0xff]
        %v697 = vld [vmem:[%s576 + $0x128] sm:$0xff]
        %v698 = vld [vmem:[%s576 + $0x130] sm:$0xff]
        %v699 = vld [vmem:[%s576 + $0x138] sm:$0xff]
        %v700 = vld [vmem:[%s576 + $0x140] sm:$0xff]
        %v701 = vld [vmem:[%s576 + $0x148] sm:$0xff]
        %v702 = vld [vmem:[%s576 + $0x150] sm:$0xff]
        %v703 = vld [vmem:[%s576 + $0x158] sm:$0xff]
        %v704 = vld [vmem:[%s576 + $0x160] sm:$0xff]
        %v705 = vld [vmem:[%s576 + $0x168] sm:$0xff]
        %v706 = vld [vmem:[%s576 + $0x170] sm:$0xff]
        %v707 = vld [vmem:[%s576 + $0x178] sm:$0xff]
        %v708 = vld [vmem:[%s576 + $0x180] sm:$0xff]
        %v709 = vld [vmem:[%s576 + $0x188] sm:$0xff]
        %v710 = vld [vmem:[%s576 + $0x190] sm:$0xff]
        %v711 = vld [vmem:[%s576 + $0x198] sm:$0xff]
        %v712 = vld [vmem:[%s576 + $0x1a0] sm:$0xff]
        %v713 = vld [vmem:[%s576 + $0x1a8] sm:$0xff]
        %v714 = vld [vmem:[%s576 + $0x1b0] sm:$0xff]
        %v715 = vld [vmem:[%s576 + $0x1b8] sm:$0xff]
        %v716 = vld [vmem:[%s576 + $0x1c0] sm:$0xff]
        %v717 = vld [vmem:[%s576 + $0x1c8] sm:$0xff]
        %v718 = vld [vmem:[%s576 + $0x1d0] sm:$0xff]
        %v719 = vld [vmem:[%s576 + $0x1d8] sm:$0xff]
        %v720 = vld [vmem:[%s576 + $0x1e0] sm:$0xff]
        %v721 = vld [vmem:[%s576 + $0x1e8] sm:$0xff]
        %v722 = vld [vmem:[%s576 + $0x1f0] sm:$0xff]
        %v723 = vld [vmem:[%s576 + $0x1f8] sm:$0xff]
        %v724 = vld [vmem:[%s576 + $0x200] sm:$0xff]
        %v725 = vld [vmem:[%s576 + $0x208] sm:$0xff]
        %v726 = vld [vmem:[%s576 + $0x210] sm:$0xff]
        %v727 = vld [vmem:[%s576 + $0x218] sm:$0xff]
        %v728 = vld [vmem:[%s576 + $0x220] sm:$0xff]
        %v729 = vld [vmem:[%s576 + $0x228] sm:$0xff]
        %v730 = vld [vmem:[%s576 + $0x230] sm:$0xff]
        %v731 = vld [vmem:[%s576 + $0x238] sm:$0xff]
        %v732 = vld [vmem:[%s576 + $0x240] sm:$0xff]
        %v733 = vld [vmem:[%s576 + $0x248] sm:$0xff]
        %v734 = vld [vmem:[%s576 + $0x250] sm:$0xff]
        %v735 = vld [vmem:[%s576 + $0x258] sm:$0xff]
        %v736 = vld [vmem:[%s576 + $0x260] sm:$0xff]
        %v737 = vld [vmem:[%s576 + $0x268] sm:$0xff]
        %v738 = vld [vmem:[%s576 + $0x270] sm:$0xff]
        %v739 = vld [vmem:[%s576 + $0x278] sm:$0xff]
        %v740 = vld [vmem:[%s576 + $0x280] sm:$0xff]
        %v741 = vld [vmem:[%s576 + $0x288] sm:$0xff]
        %v742 = vld [vmem:[%s576 + $0x290] sm:$0xff]
        %v743 = vld [vmem:[%s576 + $0x298] sm:$0xff]
        %v744 = vld [vmem:[%s576 + $0x2a0] sm:$0xff]
        %v745 = vld [vmem:[%s576 + $0x2a8] sm:$0xff]
        %v746 = vld [vmem:[%s576 + $0x2b0] sm:$0xff]
        %v747 = vld [vmem:[%s576 + $0x2b8] sm:$0xff]
        %v748 = vld [vmem:[%s576 + $0x2c0] sm:$0xff]
        %v749 = vld [vmem:[%s576 + $0x2c8] sm:$0xff]
        %v750 = vld [vmem:[%s576 + $0x2d0] sm:$0xff]
        %v751 = vld [vmem:[%s576 + $0x2d8] sm:$0xff]
        %v752 = vld [vmem:[%s576 + $0x2e0] sm:$0xff]
        %v753 = vld [vmem:[%s576 + $0x2e8] sm:$0xff]
        %v754 = vld [vmem:[%s576 + $0x2f0] sm:$0xff]
        %v755 = vld [vmem:[%s576 + $0x2f8] sm:$0xff]
        %v756 = vld [vmem:[%s576 + $0x300] sm:$0xff]
        %v757 = vld [vmem:[%s576 + $0x308] sm:$0xff]
        %v758 = vld [vmem:[%s576 + $0x310] sm:$0xff]
        %v759 = vld [vmem:[%s576 + $0x318] sm:$0xff]
        %v760 = vld [vmem:[%s576 + $0x320] sm:$0xff]
        %v761 = vld [vmem:[%s576 + $0x328] sm:$0xff]
        %v762 = vld [vmem:[%s576 + $0x330] sm:$0xff]
        %v763 = vld [vmem:[%s576 + $0x338] sm:$0xff]
        %v764 = vld [vmem:[%s576 + $0x340] sm:$0xff]
        %v765 = vld [vmem:[%s576 + $0x348] sm:$0xff]
        %v766 = vld [vmem:[%s576 + $0x350] sm:$0xff]
        %v767 = vld [vmem:[%s576 + $0x358] sm:$0xff]
        %v768 = vld [vmem:[%s576 + $0x360] sm:$0xff]
        %v769 = vld [vmem:[%s576 + $0x368] sm:$0xff]
        %v770 = vld [vmem:[%s576 + $0x370] sm:$0xff]
        %v771 = vld [vmem:[%s576 + $0x378] sm:$0xff]
        %v772 = vld [vmem:[%s576 + $0x380] sm:$0xff]
        %v773 = vld [vmem:[%s576 + $0x388] sm:$0xff]
        %v774 = vld [vmem:[%s576 + $0x390] sm:$0xff]
        %v775 = vld [vmem:[%s576 + $0x398] sm:$0xff]
        %v776 = vld [vmem:[%s576 + $0x3a0] sm:$0xff]
        %v777 = vld [vmem:[%s576 + $0x3a8] sm:$0xff]
        %v778 = vld [vmem:[%s576 + $0x3b0] sm:$0xff]
        %v779 = vld [vmem:[%s576 + $0x3b8] sm:$0xff]
        %v780 = vld [vmem:[%s576 + $0x3c0] sm:$0xff]
        %v781 = vld [vmem:[%s576 + $0x3c8] sm:$0xff]
        %v782 = vld [vmem:[%s576 + $0x3d0] sm:$0xff]
        %v783 = vld [vmem:[%s576 + $0x3d8] sm:$0xff]
        %v784 = vld [vmem:[%s576 + $0x3e0] sm:$0xff]
        %v785 = vld [vmem:[%s576 + $0x3e8] sm:$0xff]
        %v786 = vld [vmem:[%s576 + $0x3f0] sm:$0xff]
        %v787 = vld [vmem:[%s576 + $0x3f8] sm:$0xff]
        %v788 = vpack.c.bf16 %v668, %v660
        %v789 = vpack.c.bf16 %v669, %v661
        %v790 = vpack.c.bf16 %v670, %v662
        %v791 = vpack.c.bf16 %v671, %v663
        %v792 = vpack.c.bf16 %v672, %v664
        %v793 = vpack.c.bf16 %v673, %v665
        %v794 = vpack.c.bf16 %v674, %v666
        %v795 = vpack.c.bf16 %v675, %v667
        %v796 = vpack.c.bf16 %v684, %v676
        %v797 = vpack.c.bf16 %v685, %v677
        %v798 = vpack.c.bf16 %v686, %v678
        %v799 = vpack.c.bf16 %v687, %v679
        %v800 = vpack.c.bf16 %v688, %v680
        %v801 = vpack.c.bf16 %v689, %v681
        %v802 = vpack.c.bf16 %v690, %v682
        %v803 = vpack.c.bf16 %v691, %v683
        %v804 = vpack.c.bf16 %v700, %v692
        %v805 = vpack.c.bf16 %v701, %v693
        %v806 = vpack.c.bf16 %v702, %v694
        %v807 = vpack.c.bf16 %v703, %v695
        %v808 = vpack.c.bf16 %v704, %v696
        %v809 = vpack.c.bf16 %v705, %v697
        %v810 = vpack.c.bf16 %v706, %v698
        %v811 = vpack.c.bf16 %v707, %v699
        %v812 = vpack.c.bf16 %v716, %v708
        %v813 = vpack.c.bf16 %v717, %v709
        %v814 = vpack.c.bf16 %v718, %v710
        %v815 = vpack.c.bf16 %v719, %v711
        %v816 = vpack.c.bf16 %v720, %v712
        %v817 = vpack.c.bf16 %v721, %v713
        %v818 = vpack.c.bf16 %v722, %v714
        %v819 = vpack.c.bf16 %v723, %v715
        %v820 = vpack.c.bf16 %v732, %v724
        %v821 = vpack.c.bf16 %v733, %v725
        %v822 = vpack.c.bf16 %v734, %v726
        %v823 = vpack.c.bf16 %v735, %v727
        %v824 = vpack.c.bf16 %v736, %v728
        %v825 = vpack.c.bf16 %v737, %v729
        %v826 = vpack.c.bf16 %v738, %v730
        %v827 = vpack.c.bf16 %v739, %v731
        %v828 = vpack.c.bf16 %v748, %v740
        %v829 = vpack.c.bf16 %v749, %v741
        %v830 = vpack.c.bf16 %v750, %v742
        %v831 = vpack.c.bf16 %v751, %v743
        %v832 = vpack.c.bf16 %v752, %v744
        %v833 = vpack.c.bf16 %v753, %v745
        %v834 = vpack.c.bf16 %v754, %v746
        %v835 = vpack.c.bf16 %v755, %v747
        %v836 = vpack.c.bf16 %v764, %v756
        %v837 = vpack.c.bf16 %v765, %v757
        %v838 = vpack.c.bf16 %v766, %v758
        %v839 = vpack.c.bf16 %v767, %v759
        %v840 = vpack.c.bf16 %v768, %v760
        %v841 = vpack.c.bf16 %v769, %v761
        %v842 = vpack.c.bf16 %v770, %v762
        %v843 = vpack.c.bf16 %v771, %v763
        %v844 = vpack.c.bf16 %v780, %v772
        %v845 = vpack.c.bf16 %v781, %v773
        %v846 = vpack.c.bf16 %v782, %v774
        %v847 = vpack.c.bf16 %v783, %v775
        %v848 = vpack.c.bf16 %v784, %v776
        %v849 = vpack.c.bf16 %v785, %v777
        %v850 = vpack.c.bf16 %v786, %v778
        %v851 = vpack.c.bf16 %v787, %v779
        %v852 = vld [vmem:[#allocation5] sm:$0xf]
        %v853 = vld [vmem:[#allocation5 + $0x4] sm:$0xf]
        %v854 = vld [vmem:[#allocation5 + $0x8] sm:$0xf]
        %v855 = vld [vmem:[#allocation5 + $0xc] sm:$0xf]
        %v856 = vld [vmem:[#allocation5 + $0x10] sm:$0xf]
        %v857 = vld [vmem:[#allocation5 + $0x14] sm:$0xf]
        %v858 = vld [vmem:[#allocation5 + $0x18] sm:$0xf]
        %v859 = vld [vmem:[#allocation5 + $0x1c] sm:$0xf]
        %v860 = vld [vmem:[#allocation5 + $0x20] sm:$0xf]
        %v861 = vld [vmem:[#allocation5 + $0x24] sm:$0xf]
        %v862 = vld [vmem:[#allocation5 + $0x28] sm:$0xf]
        %v863 = vld [vmem:[#allocation5 + $0x2c] sm:$0xf]
        %v864 = vld [vmem:[#allocation5 + $0x30] sm:$0xf]
        %v865 = vld [vmem:[#allocation5 + $0x34] sm:$0xf]
        %v866 = vld [vmem:[#allocation5 + $0x38] sm:$0xf]
        %v867 = vld [vmem:[#allocation5 + $0x3c] sm:$0xf]
        %v868 = vld [vmem:[#allocation5 + $0x40] sm:$0xf]
        %v869 = vld [vmem:[#allocation5 + $0x44] sm:$0xf]
        %v870 = vld [vmem:[#allocation5 + $0x48] sm:$0xf]
        %v871 = vld [vmem:[#allocation5 + $0x4c] sm:$0xf]
        %v872 = vld [vmem:[#allocation5 + $0x50] sm:$0xf]
        %v873 = vld [vmem:[#allocation5 + $0x54] sm:$0xf]
        %v874 = vld [vmem:[#allocation5 + $0x58] sm:$0xf]
        %v875 = vld [vmem:[#allocation5 + $0x5c] sm:$0xf]
        %v876 = vld [vmem:[#allocation5 + $0x60] sm:$0xf]
        %v877 = vld [vmem:[#allocation5 + $0x64] sm:$0xf]
        %v878 = vld [vmem:[#allocation5 + $0x68] sm:$0xf]
        %v879 = vld [vmem:[#allocation5 + $0x6c] sm:$0xf]
        %v880 = vld [vmem:[#allocation5 + $0x70] sm:$0xf]
        %v881 = vld [vmem:[#allocation5 + $0x74] sm:$0xf]
        %v882 = vld [vmem:[#allocation5 + $0x78] sm:$0xf]
        %v883 = vld [vmem:[#allocation5 + $0x7c] sm:$0xf]
        %v884 = vld [vmem:[#allocation5 + $0x80] sm:$0xf]
        %v885 = vld [vmem:[#allocation5 + $0x84] sm:$0xf]
        %v886 = vld [vmem:[#allocation5 + $0x88] sm:$0xf]
        %v887 = vld [vmem:[#allocation5 + $0x8c] sm:$0xf]
        %v888 = vld [vmem:[#allocation5 + $0x90] sm:$0xf]
        %v889 = vld [vmem:[#allocation5 + $0x94] sm:$0xf]
        %v890 = vld [vmem:[#allocation5 + $0x98] sm:$0xf]
        %v891 = vld [vmem:[#allocation5 + $0x9c] sm:$0xf]
        %v892 = vld [vmem:[#allocation5 + $0xa0] sm:$0xf]
        %v893 = vld [vmem:[#allocation5 + $0xa4] sm:$0xf]
        %v894 = vld [vmem:[#allocation5 + $0xa8] sm:$0xf]
        %v895 = vld [vmem:[#allocation5 + $0xac] sm:$0xf]
        %v896 = vld [vmem:[#allocation5 + $0xb0] sm:$0xf]
        %v897 = vld [vmem:[#allocation5 + $0xb4] sm:$0xf]
        %v898 = vld [vmem:[#allocation5 + $0xb8] sm:$0xf]
        %v899 = vld [vmem:[#allocation5 + $0xbc] sm:$0xf]
        %v900 = vld [vmem:[#allocation5 + $0xc0] sm:$0xf]
        %v901 = vld [vmem:[#allocation5 + $0xc4] sm:$0xf]
        %v902 = vld [vmem:[#allocation5 + $0xc8] sm:$0xf]
        %v903 = vld [vmem:[#allocation5 + $0xcc] sm:$0xf]
        %v904 = vld [vmem:[#allocation5 + $0xd0] sm:$0xf]
        %v905 = vld [vmem:[#allocation5 + $0xd4] sm:$0xf]
        %v906 = vld [vmem:[#allocation5 + $0xd8] sm:$0xf]
        %v907 = vld [vmem:[#allocation5 + $0xdc] sm:$0xf]
        %v908 = vld [vmem:[#allocation5 + $0xe0] sm:$0xf]
        %v909 = vld [vmem:[#allocation5 + $0xe4] sm:$0xf]
        %v910 = vld [vmem:[#allocation5 + $0xe8] sm:$0xf]
        %v911 = vld [vmem:[#allocation5 + $0xec] sm:$0xf]
        %v912 = vld [vmem:[#allocation5 + $0xf0] sm:$0xf]
        %v913 = vld [vmem:[#allocation5 + $0xf4] sm:$0xf]
        %v914 = vld [vmem:[#allocation5 + $0xf8] sm:$0xf]
        %v915 = vld [vmem:[#allocation5 + $0xfc] sm:$0xf]
        %v916 = vld [vmem:[#allocation5 + $0x100] sm:$0xf]
        %v917 = vld [vmem:[#allocation5 + $0x104] sm:$0xf]
        %v918 = vld [vmem:[#allocation5 + $0x108] sm:$0xf]
        %v919 = vld [vmem:[#allocation5 + $0x10c] sm:$0xf]
        %v920 = vld [vmem:[#allocation5 + $0x110] sm:$0xf]
        %v921 = vld [vmem:[#allocation5 + $0x114] sm:$0xf]
        %v922 = vld [vmem:[#allocation5 + $0x118] sm:$0xf]
        %v923 = vld [vmem:[#allocation5 + $0x11c] sm:$0xf]
        %v924 = vld [vmem:[#allocation5 + $0x120] sm:$0xf]
        %v925 = vld [vmem:[#allocation5 + $0x124] sm:$0xf]
        %v926 = vld [vmem:[#allocation5 + $0x128] sm:$0xf]
        %v927 = vld [vmem:[#allocation5 + $0x12c] sm:$0xf]
        %v928 = vld [vmem:[#allocation5 + $0x130] sm:$0xf]
        %v929 = vld [vmem:[#allocation5 + $0x134] sm:$0xf]
        %v930 = vld [vmem:[#allocation5 + $0x138] sm:$0xf]
        %v931 = vld [vmem:[#allocation5 + $0x13c] sm:$0xf]
        %v932 = vld [vmem:[#allocation5 + $0x140] sm:$0xf]
        %v933 = vld [vmem:[#allocation5 + $0x144] sm:$0xf]
        %v934 = vld [vmem:[#allocation5 + $0x148] sm:$0xf]
        %v935 = vld [vmem:[#allocation5 + $0x14c] sm:$0xf]
        %v936 = vld [vmem:[#allocation5 + $0x150] sm:$0xf]
        %v937 = vld [vmem:[#allocation5 + $0x154] sm:$0xf]
        %v938 = vld [vmem:[#allocation5 + $0x158] sm:$0xf]
        %v939 = vld [vmem:[#allocation5 + $0x15c] sm:$0xf]
        %v940 = vld [vmem:[#allocation5 + $0x160] sm:$0xf]
        %v941 = vld [vmem:[#allocation5 + $0x164] sm:$0xf]
        %v942 = vld [vmem:[#allocation5 + $0x168] sm:$0xf]
        %v943 = vld [vmem:[#allocation5 + $0x16c] sm:$0xf]
        %v944 = vld [vmem:[#allocation5 + $0x170] sm:$0xf]
        %v945 = vld [vmem:[#allocation5 + $0x174] sm:$0xf]
        %v946 = vld [vmem:[#allocation5 + $0x178] sm:$0xf]
        %v947 = vld [vmem:[#allocation5 + $0x17c] sm:$0xf]
        %v948 = vld [vmem:[#allocation5 + $0x180] sm:$0xf]
        %v949 = vld [vmem:[#allocation5 + $0x184] sm:$0xf]
        %v950 = vld [vmem:[#allocation5 + $0x188] sm:$0xf]
        %v951 = vld [vmem:[#allocation5 + $0x18c] sm:$0xf]
        %v952 = vld [vmem:[#allocation5 + $0x190] sm:$0xf]
        %v953 = vld [vmem:[#allocation5 + $0x194] sm:$0xf]
        %v954 = vld [vmem:[#allocation5 + $0x198] sm:$0xf]
        %v955 = vld [vmem:[#allocation5 + $0x19c] sm:$0xf]
        %v956 = vld [vmem:[#allocation5 + $0x1a0] sm:$0xf]
        %v957 = vld [vmem:[#allocation5 + $0x1a4] sm:$0xf]
        %v958 = vld [vmem:[#allocation5 + $0x1a8] sm:$0xf]
        %v959 = vld [vmem:[#allocation5 + $0x1ac] sm:$0xf]
        %v960 = vld [vmem:[#allocation5 + $0x1b0] sm:$0xf]
        %v961 = vld [vmem:[#allocation5 + $0x1b4] sm:$0xf]
        %v962 = vld [vmem:[#allocation5 + $0x1b8] sm:$0xf]
        %v963 = vld [vmem:[#allocation5 + $0x1bc] sm:$0xf]
        %v964 = vld [vmem:[#allocation5 + $0x1c0] sm:$0xf]
        %v965 = vld [vmem:[#allocation5 + $0x1c4] sm:$0xf]
        %v966 = vld [vmem:[#allocation5 + $0x1c8] sm:$0xf]
        %v967 = vld [vmem:[#allocation5 + $0x1cc] sm:$0xf]
        %v968 = vld [vmem:[#allocation5 + $0x1d0] sm:$0xf]
        %v969 = vld [vmem:[#allocation5 + $0x1d4] sm:$0xf]
        %v970 = vld [vmem:[#allocation5 + $0x1d8] sm:$0xf]
        %v971 = vld [vmem:[#allocation5 + $0x1dc] sm:$0xf]
        %v972 = vld [vmem:[#allocation5 + $0x1e0] sm:$0xf]
        %v973 = vld [vmem:[#allocation5 + $0x1e4] sm:$0xf]
        %v974 = vld [vmem:[#allocation5 + $0x1e8] sm:$0xf]
        %v975 = vld [vmem:[#allocation5 + $0x1ec] sm:$0xf]
        %v976 = vld [vmem:[#allocation5 + $0x1f0] sm:$0xf]
        %v977 = vld [vmem:[#allocation5 + $0x1f4] sm:$0xf]
        %v978 = vld [vmem:[#allocation5 + $0x1f8] sm:$0xf]
        %v979 = vld [vmem:[#allocation5 + $0x1fc] sm:$0xf]
        %v980 = vld [vmem:[%s2] sm:$0x1]
        %v982 = vlaneseq
        %v983 = vshrl.u32 %v982, 7
        %v984 = vsub.s32 0, %v983
        %v985 = vrot.slane %v980, %v984
        %v1115 = vunpack.c.l.b16 %v852
        %v1116 = vunpack.c.l.b16 %v853
        %v1117 = vunpack.c.l.b16 %v854
        %v1118 = vunpack.c.l.b16 %v855
        %v1119 = vunpack.c.l.b16 %v856
        %v1120 = vunpack.c.l.b16 %v857
        %v1121 = vunpack.c.l.b16 %v858
        %v1122 = vunpack.c.l.b16 %v859
        %v1123 = vunpack.c.l.b16 %v860
        %v1124 = vunpack.c.l.b16 %v861
        %v1125 = vunpack.c.l.b16 %v862
        %v1126 = vunpack.c.l.b16 %v863
        %v1127 = vunpack.c.l.b16 %v864
        %v1128 = vunpack.c.l.b16 %v865
        %v1129 = vunpack.c.l.b16 %v866
        %v1130 = vunpack.c.l.b16 %v867
        %v1131 = vunpack.c.l.b16 %v868
        %v1132 = vunpack.c.l.b16 %v869
        %v1133 = vunpack.c.l.b16 %v870
        %v1134 = vunpack.c.l.b16 %v871
        %v1135 = vunpack.c.l.b16 %v872
        %v1136 = vunpack.c.l.b16 %v873
        %v1137 = vunpack.c.l.b16 %v874
        %v1138 = vunpack.c.l.b16 %v875
        %v1139 = vunpack.c.l.b16 %v876
        %v1140 = vunpack.c.l.b16 %v877
        %v1141 = vunpack.c.l.b16 %v878
        %v1142 = vunpack.c.l.b16 %v879
        %v1143 = vunpack.c.l.b16 %v880
        %v1144 = vunpack.c.l.b16 %v881
        %v1145 = vunpack.c.l.b16 %v882
        %v1146 = vunpack.c.l.b16 %v883
        %v1147 = vunpack.c.l.b16 %v884
        %v1148 = vunpack.c.l.b16 %v885
        %v1149 = vunpack.c.l.b16 %v886
        %v1150 = vunpack.c.l.b16 %v887
        %v1151 = vunpack.c.l.b16 %v888
        %v1152 = vunpack.c.l.b16 %v889
        %v1153 = vunpack.c.l.b16 %v890
        %v1154 = vunpack.c.l.b16 %v891
        %v1155 = vunpack.c.l.b16 %v892
        %v1156 = vunpack.c.l.b16 %v893
        %v1157 = vunpack.c.l.b16 %v894
        %v1158 = vunpack.c.l.b16 %v895
        %v1159 = vunpack.c.l.b16 %v896
        %v1160 = vunpack.c.l.b16 %v897
        %v1161 = vunpack.c.l.b16 %v898
        %v1162 = vunpack.c.l.b16 %v899
        %v1163 = vunpack.c.l.b16 %v900
        %v1164 = vunpack.c.l.b16 %v901
        %v1165 = vunpack.c.l.b16 %v902
        %v1166 = vunpack.c.l.b16 %v903
        %v1167 = vunpack.c.l.b16 %v904
        %v1168 = vunpack.c.l.b16 %v905
        %v1169 = vunpack.c.l.b16 %v906
        %v1170 = vunpack.c.l.b16 %v907
        %v1171 = vunpack.c.l.b16 %v908
        %v1172 = vunpack.c.l.b16 %v909
        %v1173 = vunpack.c.l.b16 %v910
        %v1174 = vunpack.c.l.b16 %v911
        %v1175 = vunpack.c.l.b16 %v912
        %v1176 = vunpack.c.l.b16 %v913
        %v1177 = vunpack.c.l.b16 %v914
        %v1178 = vunpack.c.l.b16 %v915
        %v1179 = vunpack.c.l.b16 %v916
        %v1180 = vunpack.c.l.b16 %v917
        %v1181 = vunpack.c.l.b16 %v918
        %v1182 = vunpack.c.l.b16 %v919
        %v1183 = vunpack.c.l.b16 %v920
        %v1184 = vunpack.c.l.b16 %v921
        %v1185 = vunpack.c.l.b16 %v922
        %v1186 = vunpack.c.l.b16 %v923
        %v1187 = vunpack.c.l.b16 %v924
        %v1188 = vunpack.c.l.b16 %v925
        %v1189 = vunpack.c.l.b16 %v926
        %v1190 = vunpack.c.l.b16 %v927
        %v1191 = vunpack.c.l.b16 %v928
        %v1192 = vunpack.c.l.b16 %v929
        %v1193 = vunpack.c.l.b16 %v930
        %v1194 = vunpack.c.l.b16 %v931
        %v1195 = vunpack.c.l.b16 %v932
        %v1196 = vunpack.c.l.b16 %v933
        %v1197 = vunpack.c.l.b16 %v934
        %v1198 = vunpack.c.l.b16 %v935
        %v1199 = vunpack.c.l.b16 %v936
        %v1200 = vunpack.c.l.b16 %v937
        %v1201 = vunpack.c.l.b16 %v938
        %v1202 = vunpack.c.l.b16 %v939
        %v1203 = vunpack.c.l.b16 %v940
        %v1204 = vunpack.c.l.b16 %v941
        %v1205 = vunpack.c.l.b16 %v942
        %v1206 = vunpack.c.l.b16 %v943
        %v1207 = vunpack.c.l.b16 %v944
        %v1208 = vunpack.c.l.b16 %v945
        %v1209 = vunpack.c.l.b16 %v946
        %v1210 = vunpack.c.l.b16 %v947
        %v1211 = vunpack.c.l.b16 %v948
        %v1212 = vunpack.c.l.b16 %v949
        %v1213 = vunpack.c.l.b16 %v950
        %v1214 = vunpack.c.l.b16 %v951
        %v1215 = vunpack.c.l.b16 %v952
        %v1216 = vunpack.c.l.b16 %v953
        %v1217 = vunpack.c.l.b16 %v954
        %v1218 = vunpack.c.l.b16 %v955
        %v1219 = vunpack.c.l.b16 %v956
        %v1220 = vunpack.c.l.b16 %v957
        %v1221 = vunpack.c.l.b16 %v958
        %v1222 = vunpack.c.l.b16 %v959
        %v1223 = vunpack.c.l.b16 %v960
        %v1224 = vunpack.c.l.b16 %v961
        %v1225 = vunpack.c.l.b16 %v962
        %v1226 = vunpack.c.l.b16 %v963
        %v1227 = vunpack.c.l.b16 %v964
        %v1228 = vunpack.c.l.b16 %v965
        %v1229 = vunpack.c.l.b16 %v966
        %v1230 = vunpack.c.l.b16 %v967
        %v1231 = vunpack.c.l.b16 %v968
        %v1232 = vunpack.c.l.b16 %v969
        %v1233 = vunpack.c.l.b16 %v970
        %v1234 = vunpack.c.l.b16 %v971
        %v1235 = vunpack.c.l.b16 %v972
        %v1236 = vunpack.c.l.b16 %v973
        %v1237 = vunpack.c.l.b16 %v974
        %v1238 = vunpack.c.l.b16 %v975
        %v1239 = vunpack.c.l.b16 %v976
        %v1240 = vunpack.c.l.b16 %v977
        %v1241 = vunpack.c.l.b16 %v978
        %v1242 = vunpack.c.l.b16 %v979
        %v1243 = vpack.c.b16 %v1116, %v1115
        %v1244 = vpack.c.b16 %v1118, %v1117
        %v1245 = vpack.c.b16 %v1120, %v1119
        %v1246 = vpack.c.b16 %v1122, %v1121
        %v1247 = vpack.c.b16 %v1124, %v1123
        %v1248 = vpack.c.b16 %v1126, %v1125
        %v1249 = vpack.c.b16 %v1128, %v1127
        %v1250 = vpack.c.b16 %v1130, %v1129
        %v1251 = vpack.c.b16 %v1132, %v1131
        %v1252 = vpack.c.b16 %v1134, %v1133
        %v1253 = vpack.c.b16 %v1136, %v1135
        %v1254 = vpack.c.b16 %v1138, %v1137
        %v1255 = vpack.c.b16 %v1140, %v1139
        %v1256 = vpack.c.b16 %v1142, %v1141
        %v1257 = vpack.c.b16 %v1144, %v1143
        %v1258 = vpack.c.b16 %v1146, %v1145
        %v1259 = vpack.c.b16 %v1148, %v1147
        %v1260 = vpack.c.b16 %v1150, %v1149
        %v1261 = vpack.c.b16 %v1152, %v1151
        %v1262 = vpack.c.b16 %v1154, %v1153
        %v1263 = vpack.c.b16 %v1156, %v1155
        %v1264 = vpack.c.b16 %v1158, %v1157
        %v1265 = vpack.c.b16 %v1160, %v1159
        %v1266 = vpack.c.b16 %v1162, %v1161
        %v1267 = vpack.c.b16 %v1164, %v1163
        %v1268 = vpack.c.b16 %v1166, %v1165
        %v1269 = vpack.c.b16 %v1168, %v1167
        %v1270 = vpack.c.b16 %v1170, %v1169
        %v1271 = vpack.c.b16 %v1172, %v1171
        %v1272 = vpack.c.b16 %v1174, %v1173
        %v1273 = vpack.c.b16 %v1176, %v1175
        %v1274 = vpack.c.b16 %v1178, %v1177
        %v1275 = vpack.c.b16 %v1180, %v1179
        %v1276 = vpack.c.b16 %v1182, %v1181
        %v1277 = vpack.c.b16 %v1184, %v1183
        %v1278 = vpack.c.b16 %v1186, %v1185
        %v1279 = vpack.c.b16 %v1188, %v1187
        %v1280 = vpack.c.b16 %v1190, %v1189
        %v1281 = vpack.c.b16 %v1192, %v1191
        %v1282 = vpack.c.b16 %v1194, %v1193
        %v1283 = vpack.c.b16 %v1196, %v1195
        %v1284 = vpack.c.b16 %v1198, %v1197
        %v1285 = vpack.c.b16 %v1200, %v1199
        %v1286 = vpack.c.b16 %v1202, %v1201
        %v1287 = vpack.c.b16 %v1204, %v1203
        %v1288 = vpack.c.b16 %v1206, %v1205
        %v1289 = vpack.c.b16 %v1208, %v1207
        %v1290 = vpack.c.b16 %v1210, %v1209
        %v1291 = vpack.c.b16 %v1212, %v1211
        %v1292 = vpack.c.b16 %v1214, %v1213
        %v1293 = vpack.c.b16 %v1216, %v1215
        %v1294 = vpack.c.b16 %v1218, %v1217
        %v1295 = vpack.c.b16 %v1220, %v1219
        %v1296 = vpack.c.b16 %v1222, %v1221
        %v1297 = vpack.c.b16 %v1224, %v1223
        %v1298 = vpack.c.b16 %v1226, %v1225
        %v1299 = vpack.c.b16 %v1228, %v1227
        %v1300 = vpack.c.b16 %v1230, %v1229
        %v1301 = vpack.c.b16 %v1232, %v1231
        %v1302 = vpack.c.b16 %v1234, %v1233
        %v1303 = vpack.c.b16 %v1236, %v1235
        %v1304 = vpack.c.b16 %v1238, %v1237
        %v1305 = vpack.c.b16 %v1240, %v1239
        %v1306 = vpack.c.b16 %v1242, %v1241
        %1371 = vmatprep.subr.bf16.mxu0 0
        %1372 = vmatpush1.bf16.msra.mxu0 %v1243
        %1373 = vmatprep.subr.bf16.mxu0 0
        %1374 = vmatpush1.bf16.msra.mxu0 %v1244
        %1375 = vmatprep.subr.bf16.mxu0 0
        %1376 = vmatpush1.bf16.msra.mxu0 %v1245
        %1377 = vmatprep.subr.bf16.mxu0 0
        %1378 = vmatpush1.bf16.msra.mxu0 %v1246
        %1379 = vmatprep.subr.bf16.mxu0 0
        %1380 = vmatpush1.bf16.msra.mxu0 %v1247
        %1381 = vmatprep.subr.bf16.mxu0 0
        %1382 = vmatpush1.bf16.msra.mxu0 %v1248
        %1383 = vmatprep.subr.bf16.mxu0 0
        %1384 = vmatpush1.bf16.msra.mxu0 %v1249
        %1385 = vmatprep.subr.bf16.mxu0 0
        %1386 = vmatpush1.bf16.msra.mxu0 %v1250
        %1387 = vmatprep.subr.bf16.mxu0 0
        %1388 = vmatpush1.bf16.msra.mxu0 %v1251
        %1389 = vmatprep.subr.bf16.mxu0 0
        %1390 = vmatpush1.bf16.msra.mxu0 %v1252
        %1391 = vmatprep.subr.bf16.mxu0 0
        %1392 = vmatpush1.bf16.msra.mxu0 %v1253
        %1393 = vmatprep.subr.bf16.mxu0 0
        %1394 = vmatpush1.bf16.msra.mxu0 %v1254
        %1395 = vmatprep.subr.bf16.mxu0 0
        %1396 = vmatpush1.bf16.msra.mxu0 %v1255
        %1397 = vmatprep.subr.bf16.mxu0 0
        %1398 = vmatpush1.bf16.msra.mxu0 %v1256
        %1399 = vmatprep.subr.bf16.mxu0 0
        %1400 = vmatpush1.bf16.msra.mxu0 %v1257
        %1401 = vmatprep.subr.bf16.mxu0 0
        %1402 = vmatpush1.bf16.msra.mxu0 %v1258
        %1403 = vmatprep.mubr.bf16.mxu0 %v789
        %1404 = vmatmul.mubr.bf16.gmra.mrb[0].mxu0 %v788
        %v1405 = vpop.f32.mrb[0].mxu0
        %v1406 = vadd.f32 %v985, %v1405
        %v1407 = vpop.f32.mrb[0].mxu0
        %v1408 = vpop.f32.mrb[0].mxu0
        %v1409 = vadd.f32 %v985, %v1408
        %v1410 = vpop.f32.mrb[0].mxu0
        %1411 = vmatprep.mubr.bf16.mxu0 %v797
        %1412 = vmatmul.mubr.bf16.gmra.mrb[0].mxu0 %v796
        %v1413 = vpop.f32.mrb[0].mxu0
        %v1414 = vadd.f32 %v985, %v1413
        %v1415 = vpop.f32.mrb[0].mxu0
        %v1416 = vpop.f32.mrb[0].mxu0
        %v1417 = vadd.f32 %v985, %v1416
        %v1418 = vpop.f32.mrb[0].mxu0
        %1419 = vmatprep.mubr.bf16.mxu0 %v805
        %1420 = vmatmul.mubr.bf16.gmra.mrb[0].mxu0 %v804
        %v1421 = vpop.f32.mrb[0].mxu0
        %v1422 = vadd.f32 %v985, %v1421
        %v1423 = vpop.f32.mrb[0].mxu0
        %v1424 = vpop.f32.mrb[0].mxu0
        %v1425 = vadd.f32 %v985, %v1424
        %v1426 = vpop.f32.mrb[0].mxu0
        %1427 = vmatprep.mubr.bf16.mxu0 %v813
        %1428 = vmatmul.mubr.bf16.gmra.mrb[0].mxu0 %v812
        %v1429 = vpop.f32.mrb[0].mxu0
        %v1430 = vadd.f32 %v985, %v1429
        %v1431 = vpop.f32.mrb[0].mxu0
        %v1432 = vpop.f32.mrb[0].mxu0
        %v1433 = vadd.f32 %v985, %v1432
        %v1434 = vpop.f32.mrb[0].mxu0
        %1435 = vmatprep.mubr.bf16.mxu0 %v821
        %1436 = vmatmul.mubr.bf16.gmra.mrb[0].mxu0 %v820
        %v1437 = vpop.f32.mrb[0].mxu0
        %v1438 = vadd.f32 %v985, %v1437
        %v1439 = vpop.f32.mrb[0].mxu0
        %v1440 = vpop.f32.mrb[0].mxu0
        %v1441 = vadd.f32 %v985, %v1440
        %v1442 = vpop.f32.mrb[0].mxu0
        %1443 = vmatprep.mubr.bf16.mxu0 %v829
        %1444 = vmatmul.mubr.bf16.gmra.mrb[0].mxu0 %v828
        %v1445 = vpop.f32.mrb[0].mxu0
        %v1446 = vadd.f32 %v985, %v1445
        %v1447 = vpop.f32.mrb[0].mxu0
        %v1448 = vpop.f32.mrb[0].mxu0
        %v1449 = vadd.f32 %v985, %v1448
        %v1450 = vpop.f32.mrb[0].mxu0
        %1451 = vmatprep.mubr.bf16.mxu0 %v837
        %1452 = vmatmul.mubr.bf16.gmra.mrb[0].mxu0 %v836
        %v1453 = vpop.f32.mrb[0].mxu0
        %v1454 = vadd.f32 %v985, %v1453
        %v1455 = vpop.f32.mrb[0].mxu0
        %v1456 = vpop.f32.mrb[0].mxu0
        %v1457 = vadd.f32 %v985, %v1456
        %v1458 = vpop.f32.mrb[0].mxu0
        %1459 = vmatprep.mubr.bf16.mxu0 %v845
        %1460 = vmatmul.mubr.bf16.gmra.mrb[0].mxu0 %v844
        %v1461 = vpop.f32.mrb[0].mxu0
        %v1462 = vadd.f32 %v985, %v1461
        %v1463 = vpop.f32.mrb[0].mxu0
        %v1464 = vpop.f32.mrb[0].mxu0
        %v1465 = vadd.f32 %v985, %v1464
        %v1466 = vpop.f32.mrb[0].mxu0
        %1467 = vdwg.mxu0
        %1468 = vmatprep.subr.bf16.mxu0 0
        %1469 = vmatpush1.bf16.msra.mxu0 %v1259
        %1470 = vmatprep.subr.bf16.mxu0 0
        %1471 = vmatpush1.bf16.msra.mxu0 %v1260
        %1472 = vmatprep.subr.bf16.mxu0 0
        %1473 = vmatpush1.bf16.msra.mxu0 %v1261
        %1474 = vmatprep.subr.bf16.mxu0 0
        %1475 = vmatpush1.bf16.msra.mxu0 %v1262
        %1476 = vmatprep.subr.bf16.mxu0 0
        %1477 = vmatpush1.bf16.msra.mxu0 %v1263
        %1478 = vmatprep.subr.bf16.mxu0 0
        %1479 = vmatpush1.bf16.msra.mxu0 %v1264
        %1480 = vmatprep.subr.bf16.mxu0 0
        %1481 = vmatpush1.bf16.msra.mxu0 %v1265
        %1482 = vmatprep.subr.bf16.mxu0 0
        %1483 = vmatpush1.bf16.msra.mxu0 %v1266
        %1484 = vmatprep.subr.bf16.mxu0 0
        %1485 = vmatpush1.bf16.msra.mxu0 %v1267
        %1486 = vmatprep.subr.bf16.mxu0 0
        %1487 = vmatpush1.bf16.msra.mxu0 %v1268
        %1488 = vmatprep.subr.bf16.mxu0 0
        %1489 = vmatpush1.bf16.msra.mxu0 %v1269
        %1490 = vmatprep.subr.bf16.mxu0 0
        %1491 = vmatpush1.bf16.msra.mxu0 %v1270
        %1492 = vmatprep.subr.bf16.mxu0 0
        %1493 = vmatpush1.bf16.msra.mxu0 %v1271
        %1494 = vmatprep.subr.bf16.mxu0 0
        %1495 = vmatpush1.bf16.msra.mxu0 %v1272
        %1496 = vmatprep.subr.bf16.mxu0 0
        %1497 = vmatpush1.bf16.msra.mxu0 %v1273
        %1498 = vmatprep.subr.bf16.mxu0 0
        %1499 = vmatpush1.bf16.msra.mxu0 %v1274
        %1500 = vmatprep.mubr.bf16.mxu0 %v791
        %1501 = vmatmul.mubr.bf16.gmra.mrb[0].mxu0 %v790
        %v1502 = vpop.f32.mrb[0].mxu0
        %v1503 = vadd.f32 %v1406, %v1502
        %v1504 = vpop.f32.mrb[0].mxu0
        %v1505 = vpop.f32.mrb[0].mxu0
        %v1506 = vadd.f32 %v1409, %v1505
        %v1507 = vpop.f32.mrb[0].mxu0
        %1508 = vmatprep.mubr.bf16.mxu0 %v799
        %1509 = vmatmul.mubr.bf16.gmra.mrb[0].mxu0 %v798
        %v1510 = vpop.f32.mrb[0].mxu0
        %v1511 = vadd.f32 %v1414, %v1510
        %v1512 = vpop.f32.mrb[0].mxu0
        %v1513 = vpop.f32.mrb[0].mxu0
        %v1514 = vadd.f32 %v1417, %v1513
        %v1515 = vpop.f32.mrb[0].mxu0
        %1516 = vmatprep.mubr.bf16.mxu0 %v807
        %1517 = vmatmul.mubr.bf16.gmra.mrb[0].mxu0 %v806
        %v1518 = vpop.f32.mrb[0].mxu0
        %v1519 = vadd.f32 %v1422, %v1518
        %v1520 = vpop.f32.mrb[0].mxu0
        %v1521 = vpop.f32.mrb[0].mxu0
        %v1522 = vadd.f32 %v1425, %v1521
        %v1523 = vpop.f32.mrb[0].mxu0
        %1524 = vmatprep.mubr.bf16.mxu0 %v815
        %1525 = vmatmul.mubr.bf16.gmra.mrb[0].mxu0 %v814
        %v1526 = vpop.f32.mrb[0].mxu0
        %v1527 = vadd.f32 %v1430, %v1526
        %v1528 = vpop.f32.mrb[0].mxu0
        %v1529 = vpop.f32.mrb[0].mxu0
        %v1530 = vadd.f32 %v1433, %v1529
        %v1531 = vpop.f32.mrb[0].mxu0
        %1532 = vmatprep.mubr.bf16.mxu0 %v823
        %1533 = vmatmul.mubr.bf16.gmra.mrb[0].mxu0 %v822
        %v1534 = vpop.f32.mrb[0].mxu0
        %v1535 = vadd.f32 %v1438, %v1534
        %v1536 = vpop.f32.mrb[0].mxu0
        %v1537 = vpop.f32.mrb[0].mxu0
        %v1538 = vadd.f32 %v1441, %v1537
        %v1539 = vpop.f32.mrb[0].mxu0
        %1540 = vmatprep.mubr.bf16.mxu0 %v831
        %1541 = vmatmul.mubr.bf16.gmra.mrb[0].mxu0 %v830
        %v1542 = vpop.f32.mrb[0].mxu0
        %v1543 = vadd.f32 %v1446, %v1542
        %v1544 = vpop.f32.mrb[0].mxu0
        %v1545 = vpop.f32.mrb[0].mxu0
        %v1546 = vadd.f32 %v1449, %v1545
        %v1547 = vpop.f32.mrb[0].mxu0
        %1548 = vmatprep.mubr.bf16.mxu0 %v839
        %1549 = vmatmul.mubr.bf16.gmra.mrb[0].mxu0 %v838
        %v1550 = vpop.f32.mrb[0].mxu0
        %v1551 = vadd.f32 %v1454, %v1550
        %v1552 = vpop.f32.mrb[0].mxu0
        %v1553 = vpop.f32.mrb[0].mxu0
        %v1554 = vadd.f32 %v1457, %v1553
        %v1555 = vpop.f32.mrb[0].mxu0
        %1556 = vmatprep.mubr.bf16.mxu0 %v847
        %1557 = vmatmul.mubr.bf16.gmra.mrb[0].mxu0 %v846
        %v1558 = vpop.f32.mrb[0].mxu0
        %v1559 = vadd.f32 %v1462, %v1558
        %v1560 = vpop.f32.mrb[0].mxu0
        %v1561 = vpop.f32.mrb[0].mxu0
        %v1562 = vadd.f32 %v1465, %v1561
        %v1563 = vpop.f32.mrb[0].mxu0
        %1564 = vdwg.mxu0
        %1565 = vmatprep.subr.bf16.mxu0 0
        %1566 = vmatpush1.bf16.msra.mxu0 %v1275
        %1567 = vmatprep.subr.bf16.mxu0 0
        %1568 = vmatpush1.bf16.msra.mxu0 %v1276
        %1569 = vmatprep.subr.bf16.mxu0 0
        %1570 = vmatpush1.bf16.msra.mxu0 %v1277
        %1571 = vmatprep.subr.bf16.mxu0 0
        %1572 = vmatpush1.bf16.msra.mxu0 %v1278
        %1573 = vmatprep.subr.bf16.mxu0 0
        %1574 = vmatpush1.bf16.msra.mxu0 %v1279
        %1575 = vmatprep.subr.bf16.mxu0 0
        %1576 = vmatpush1.bf16.msra.mxu0 %v1280
        %1577 = vmatprep.subr.bf16.mxu0 0
        %1578 = vmatpush1.bf16.msra.mxu0 %v1281
        %1579 = vmatprep.subr.bf16.mxu0 0
        %1580 = vmatpush1.bf16.msra.mxu0 %v1282
        %1581 = vmatprep.subr.bf16.mxu0 0
        %1582 = vmatpush1.bf16.msra.mxu0 %v1283
        %1583 = vmatprep.subr.bf16.mxu0 0
        %1584 = vmatpush1.bf16.msra.mxu0 %v1284
        %1585 = vmatprep.subr.bf16.mxu0 0
        %1586 = vmatpush1.bf16.msra.mxu0 %v1285
        %1587 = vmatprep.subr.bf16.mxu0 0
        %1588 = vmatpush1.bf16.msra.mxu0 %v1286
        %1589 = vmatprep.subr.bf16.mxu0 0
        %1590 = vmatpush1.bf16.msra.mxu0 %v1287
        %1591 = vmatprep.subr.bf16.mxu0 0
        %1592 = vmatpush1.bf16.msra.mxu0 %v1288
        %1593 = vmatprep.subr.bf16.mxu0 0
        %1594 = vmatpush1.bf16.msra.mxu0 %v1289
        %1595 = vmatprep.subr.bf16.mxu0 0
        %1596 = vmatpush1.bf16.msra.mxu0 %v1290
        %1597 = vmatprep.mubr.bf16.mxu0 %v793
        %1598 = vmatmul.mubr.bf16.gmra.mrb[0].mxu0 %v792
        %v1599 = vpop.f32.mrb[0].mxu0
        %v1600 = vadd.f32 %v1503, %v1599
        %v1601 = vpop.f32.mrb[0].mxu0
        %v1602 = vpop.f32.mrb[0].mxu0
        %v1603 = vadd.f32 %v1506, %v1602
        %v1604 = vpop.f32.mrb[0].mxu0
        %1605 = vmatprep.mubr.bf16.mxu0 %v801
        %1606 = vmatmul.mubr.bf16.gmra.mrb[0].mxu0 %v800
        %v1607 = vpop.f32.mrb[0].mxu0
        %v1608 = vadd.f32 %v1511, %v1607
        %v1609 = vpop.f32.mrb[0].mxu0
        %v1610 = vpop.f32.mrb[0].mxu0
        %v1611 = vadd.f32 %v1514, %v1610
        %v1612 = vpop.f32.mrb[0].mxu0
        %1613 = vmatprep.mubr.bf16.mxu0 %v809
        %1614 = vmatmul.mubr.bf16.gmra.mrb[0].mxu0 %v808
        %v1615 = vpop.f32.mrb[0].mxu0
        %v1616 = vadd.f32 %v1519, %v1615
        %v1617 = vpop.f32.mrb[0].mxu0
        %v1618 = vpop.f32.mrb[0].mxu0
        %v1619 = vadd.f32 %v1522, %v1618
        %v1620 = vpop.f32.mrb[0].mxu0
        %1621 = vmatprep.mubr.bf16.mxu0 %v817
        %1622 = vmatmul.mubr.bf16.gmra.mrb[0].mxu0 %v816
        %v1623 = vpop.f32.mrb[0].mxu0
        %v1624 = vadd.f32 %v1527, %v1623
        %v1625 = vpop.f32.mrb[0].mxu0
        %v1626 = vpop.f32.mrb[0].mxu0
        %v1627 = vadd.f32 %v1530, %v1626
        %v1628 = vpop.f32.mrb[0].mxu0
        %1629 = vmatprep.mubr.bf16.mxu0 %v825
        %1630 = vmatmul.mubr.bf16.gmra.mrb[0].mxu0 %v824
        %v1631 = vpop.f32.mrb[0].mxu0
        %v1632 = vadd.f32 %v1535, %v1631
        %v1633 = vpop.f32.mrb[0].mxu0
        %v1634 = vpop.f32.mrb[0].mxu0
        %v1635 = vadd.f32 %v1538, %v1634
        %v1636 = vpop.f32.mrb[0].mxu0
        %1637 = vmatprep.mubr.bf16.mxu0 %v833
        %1638 = vmatmul.mubr.bf16.gmra.mrb[0].mxu0 %v832
        %v1639 = vpop.f32.mrb[0].mxu0
        %v1640 = vadd.f32 %v1543, %v1639
        %v1641 = vpop.f32.mrb[0].mxu0
        %v1642 = vpop.f32.mrb[0].mxu0
        %v1643 = vadd.f32 %v1546, %v1642
        %v1644 = vpop.f32.mrb[0].mxu0
        %1645 = vmatprep.mubr.bf16.mxu0 %v841
        %1646 = vmatmul.mubr.bf16.gmra.mrb[0].mxu0 %v840
        %v1647 = vpop.f32.mrb[0].mxu0
        %v1648 = vadd.f32 %v1551, %v1647
        %v1649 = vpop.f32.mrb[0].mxu0
        %v1650 = vpop.f32.mrb[0].mxu0
        %v1651 = vadd.f32 %v1554, %v1650
        %v1652 = vpop.f32.mrb[0].mxu0
        %1653 = vmatprep.mubr.bf16.mxu0 %v849
        %1654 = vmatmul.mubr.bf16.gmra.mrb[0].mxu0 %v848
        %v1655 = vpop.f32.mrb[0].mxu0
        %v1656 = vadd.f32 %v1559, %v1655
        %v1657 = vpop.f32.mrb[0].mxu0
        %v1658 = vpop.f32.mrb[0].mxu0
        %v1659 = vadd.f32 %v1562, %v1658
        %v1660 = vpop.f32.mrb[0].mxu0
        %1661 = vdwg.mxu0
        %1662 = vmatprep.subr.bf16.mxu0 0
        %1663 = vmatpush1.bf16.msra.mxu0 %v1291
        %1664 = vmatprep.subr.bf16.mxu0 0
        %1665 = vmatpush1.bf16.msra.mxu0 %v1292
        %1666 = vmatprep.subr.bf16.mxu0 0
        %1667 = vmatpush1.bf16.msra.mxu0 %v1293
        %1668 = vmatprep.subr.bf16.mxu0 0
        %1669 = vmatpush1.bf16.msra.mxu0 %v1294
        %1670 = vmatprep.subr.bf16.mxu0 0
        %1671 = vmatpush1.bf16.msra.mxu0 %v1295
        %1672 = vmatprep.subr.bf16.mxu0 0
        %1673 = vmatpush1.bf16.msra.mxu0 %v1296
        %1674 = vmatprep.subr.bf16.mxu0 0
        %1675 = vmatpush1.bf16.msra.mxu0 %v1297
        %1676 = vmatprep.subr.bf16.mxu0 0
        %1677 = vmatpush1.bf16.msra.mxu0 %v1298
        %1678 = vmatprep.subr.bf16.mxu0 0
        %1679 = vmatpush1.bf16.msra.mxu0 %v1299
        %1680 = vmatprep.subr.bf16.mxu0 0
        %1681 = vmatpush1.bf16.msra.mxu0 %v1300
        %1682 = vmatprep.subr.bf16.mxu0 0
        %1683 = vmatpush1.bf16.msra.mxu0 %v1301
        %1684 = vmatprep.subr.bf16.mxu0 0
        %1685 = vmatpush1.bf16.msra.mxu0 %v1302
        %1686 = vmatprep.subr.bf16.mxu0 0
        %1687 = vmatpush1.bf16.msra.mxu0 %v1303
        %1688 = vmatprep.subr.bf16.mxu0 0
        %1689 = vmatpush1.bf16.msra.mxu0 %v1304
        %1690 = vmatprep.subr.bf16.mxu0 0
        %1691 = vmatpush1.bf16.msra.mxu0 %v1305
        %1692 = vmatprep.subr.bf16.mxu0 0
        %1693 = vmatpush1.bf16.msra.mxu0 %v1306
        %1694 = vmatprep.mubr.bf16.mxu0 %v795
        %1695 = vmatmul.mubr.bf16.gmra.mrb[0].mxu0 %v794
        %v1696 = vpop.f32.mrb[0].mxu0
        %v1697 = vadd.f32 %v1600, %v1696
        %v1698 = vpop.f32.mrb[0].mxu0
        %v1699 = vpop.f32.mrb[0].mxu0
        %v1700 = vadd.f32 %v1603, %v1699
        %v1701 = vpop.f32.mrb[0].mxu0
        %1702 = vmatprep.mubr.bf16.mxu0 %v803
        %1703 = vmatmul.mubr.bf16.gmra.mrb[0].mxu0 %v802
        %v1704 = vpop.f32.mrb[0].mxu0
        %v1705 = vadd.f32 %v1608, %v1704
        %v1706 = vpop.f32.mrb[0].mxu0
        %v1707 = vpop.f32.mrb[0].mxu0
        %v1708 = vadd.f32 %v1611, %v1707
        %v1709 = vpop.f32.mrb[0].mxu0
        %1710 = vmatprep.mubr.bf16.mxu0 %v811
        %1711 = vmatmul.mubr.bf16.gmra.mrb[0].mxu0 %v810
        %v1712 = vpop.f32.mrb[0].mxu0
        %v1713 = vadd.f32 %v1616, %v1712
        %v1714 = vpop.f32.mrb[0].mxu0
        %v1715 = vpop.f32.mrb[0].mxu0
        %v1716 = vadd.f32 %v1619, %v1715
        %v1717 = vpop.f32.mrb[0].mxu0
        %1718 = vmatprep.mubr.bf16.mxu0 %v819
        %1719 = vmatmul.mubr.bf16.gmra.mrb[0].mxu0 %v818
        %v1720 = vpop.f32.mrb[0].mxu0
        %v1721 = vadd.f32 %v1624, %v1720
        %v1722 = vpop.f32.mrb[0].mxu0
        %v1723 = vpop.f32.mrb[0].mxu0
        %v1724 = vadd.f32 %v1627, %v1723
        %v1725 = vpop.f32.mrb[0].mxu0
        %1726 = vmatprep.mubr.bf16.mxu0 %v827
        %1727 = vmatmul.mubr.bf16.gmra.mrb[0].mxu0 %v826
        %v1728 = vpop.f32.mrb[0].mxu0
        %v1729 = vadd.f32 %v1632, %v1728
        %v1730 = vpop.f32.mrb[0].mxu0
        %v1731 = vpop.f32.mrb[0].mxu0
        %v1732 = vadd.f32 %v1635, %v1731
        %v1733 = vpop.f32.mrb[0].mxu0
        %1734 = vmatprep.mubr.bf16.mxu0 %v835
        %1735 = vmatmul.mubr.bf16.gmra.mrb[0].mxu0 %v834
        %v1736 = vpop.f32.mrb[0].mxu0
        %v1737 = vadd.f32 %v1640, %v1736
        %v1738 = vpop.f32.mrb[0].mxu0
        %v1739 = vpop.f32.mrb[0].mxu0
        %v1740 = vadd.f32 %v1643, %v1739
        %v1741 = vpop.f32.mrb[0].mxu0
        %1742 = vmatprep.mubr.bf16.mxu0 %v843
        %1743 = vmatmul.mubr.bf16.gmra.mrb[0].mxu0 %v842
        %v1744 = vpop.f32.mrb[0].mxu0
        %v1745 = vadd.f32 %v1648, %v1744
        %v1746 = vpop.f32.mrb[0].mxu0
        %v1747 = vpop.f32.mrb[0].mxu0
        %v1748 = vadd.f32 %v1651, %v1747
        %v1749 = vpop.f32.mrb[0].mxu0
        %1750 = vmatprep.mubr.bf16.mxu0 %v851
        %1751 = vmatmul.mubr.bf16.gmra.mrb[0].mxu0 %v850
        %v1752 = vpop.f32.mrb[0].mxu0
        %v1753 = vadd.f32 %v1656, %v1752
        %v1754 = vpop.f32.mrb[0].mxu0
        %v1755 = vpop.f32.mrb[0].mxu0
        %v1756 = vadd.f32 %v1659, %v1755
        %v1757 = vpop.f32.mrb[0].mxu0
        %1758 = vdwg.mxu0
        %v1759 = vtanh.pop %v1697
        %v1760 = vtanh.pop %v1700
        %v1761 = vtanh.pop %v1705
        %v1762 = vtanh.pop %v1708
        %v1763 = vtanh.pop %v1713
        %v1764 = vtanh.pop %v1716
        %v1765 = vtanh.pop %v1721
        %v1766 = vtanh.pop %v1724
        %v1767 = vtanh.pop %v1729
        %v1768 = vtanh.pop %v1732
        %v1769 = vtanh.pop %v1737
        %v1770 = vtanh.pop %v1740
        %v1771 = vtanh.pop %v1745
        %v1772 = vtanh.pop %v1748
        %v1773 = vtanh.pop %v1753
        %v1774 = vtanh.pop %v1756
        %v1775 = vld [vmem:[%s3] sm:$0xff]
        %v1776 = vld [vmem:[%s3 + $0x8] sm:$0xff]
        %v1777 = vld [vmem:[%s3 + $0x10] sm:$0xff]
        %v1778 = vld [vmem:[%s3 + $0x18] sm:$0xff]
        %v1779 = vld [vmem:[%s3 + $0x20] sm:$0xff]
        %v1780 = vld [vmem:[%s3 + $0x28] sm:$0xff]
        %v1781 = vld [vmem:[%s3 + $0x30] sm:$0xff]
        %v1782 = vld [vmem:[%s3 + $0x38] sm:$0xff]
        %v1783 = vld [vmem:[%s3 + $0x40] sm:$0xff]
        %v1784 = vld [vmem:[%s3 + $0x48] sm:$0xff]
        %v1785 = vld [vmem:[%s3 + $0x50] sm:$0xff]
        %v1786 = vld [vmem:[%s3 + $0x58] sm:$0xff]
        %v1787 = vld [vmem:[%s3 + $0x60] sm:$0xff]
        %v1788 = vld [vmem:[%s3 + $0x68] sm:$0xff]
        %v1789 = vld [vmem:[%s3 + $0x70] sm:$0xff]
        %v1790 = vld [vmem:[%s3 + $0x78] sm:$0xff]
        %v1791 = vld [vmem:[%s4] sm:$0x1]
        %v1793 = vlaneseq
        %v1794 = vshrl.u32 %v1793, 7
        %v1795 = vsub.s32 0, %v1794
        %v1796 = vrot.slane %v1791, %v1795
        %1798 = vmatprep.subr.mxu0 0.0
        %1799 = vmatpush1.msra.mxu0 %v1775
        %1800 = vmatprep.subr.mxu0 0.0
        %1801 = vmatpush1.msra.mxu0 %v1776
        %1802 = vmatprep.subr.mxu0 0.0
        %1803 = vmatpush1.msra.mxu0 %v1777
        %1804 = vmatprep.subr.mxu0 0.0
        %1805 = vmatpush1.msra.mxu0 %v1778
        %1806 = vmatprep.subr.mxu0 0.0
        %1807 = vmatpush1.msra.mxu0 %v1779
        %1808 = vmatprep.subr.mxu0 0.0
        %1809 = vmatpush1.msra.mxu0 %v1780
        %1810 = vmatprep.subr.mxu0 0.0
        %1811 = vmatpush1.msra.mxu0 %v1781
        %1812 = vmatprep.subr.mxu0 0.0
        %1813 = vmatpush1.msra.mxu0 %v1782
        %1814 = vmatprep.subr.mxu0 0.0
        %1815 = vmatpush1.msra.mxu0 %v1783
        %1816 = vmatprep.subr.mxu0 0.0
        %1817 = vmatpush1.msra.mxu0 %v1784
        %1818 = vmatprep.subr.mxu0 0.0
        %1819 = vmatpush1.msra.mxu0 %v1785
        %1820 = vmatprep.subr.mxu0 0.0
        %1821 = vmatpush1.msra.mxu0 %v1786
        %1822 = vmatprep.subr.mxu0 0.0
        %1823 = vmatpush1.msra.mxu0 %v1787
        %1824 = vmatprep.subr.mxu0 0.0
        %1825 = vmatpush1.msra.mxu0 %v1788
        %1826 = vmatprep.subr.mxu0 0.0
        %1827 = vmatpush1.msra.mxu0 %v1789
        %1828 = vmatprep.subr.mxu0 0.0
        %1829 = vmatpush1.msra.mxu0 %v1790
        %1830 = vmatprep.subr.mxu0 0.0
        %1831 = vmatpush1.msra.mxu0 0.0
        %1832 = vmatprep.subr.mxu0 0.0
        %1833 = vmatpush1.msra.mxu0 0.0
        %1834 = vmatprep.subr.mxu0 0.0
        %1835 = vmatpush1.msra.mxu0 0.0
        %1836 = vmatprep.subr.mxu0 0.0
        %1837 = vmatpush1.msra.mxu0 0.0
        %1838 = vmatprep.subr.mxu0 0.0
        %1839 = vmatpush1.msra.mxu0 0.0
        %1840 = vmatprep.subr.mxu0 0.0
        %1841 = vmatpush1.msra.mxu0 0.0
        %1842 = vmatprep.subr.mxu0 0.0
        %1843 = vmatpush1.msra.mxu0 0.0
        %1844 = vmatprep.subr.mxu0 0.0
        %1845 = vmatpush1.msra.mxu0 0.0
        %1846 = vmatprep.subr.mxu0 0.0
        %1847 = vmatpush1.msra.mxu0 0.0
        %1848 = vmatprep.subr.mxu0 0.0
        %1849 = vmatpush1.msra.mxu0 0.0
        %1850 = vmatprep.subr.mxu0 0.0
        %1851 = vmatpush1.msra.mxu0 0.0
        %1852 = vmatprep.subr.mxu0 0.0
        %1853 = vmatpush1.msra.mxu0 0.0
        %1854 = vmatprep.subr.mxu0 0.0
        %1855 = vmatpush1.msra.mxu0 0.0
        %1856 = vmatprep.subr.mxu0 0.0
        %1857 = vmatpush1.msra.mxu0 0.0
        %1858 = vmatprep.subr.mxu0 0.0
        %1859 = vmatpush1.msra.mxu0 0.0
        %1860 = vmatprep.subr.mxu0 0.0
        %1861 = vmatpush1.msra.mxu0 0.0
        %1862 = vmatprep.mubr.f32.mxu0 0.0
        %1863 = vmatmul.mubr.f32.gmra.mrb[0].mxu0 %v1759
        %v1864 = vpop.f32.mrb[0].mxu0
        %v1865 = vadd.f32 %v1796, %v1864
        %v1866 = vpop.f32.mrb[0].mxu0
        %1867 = vmatprep.mubr.f32.mxu0 0.0
        %1868 = vmatmul.mubr.f32.gmra.mrb[0].mxu0 %v1760
        %v1869 = vpop.f32.mrb[0].mxu0
        %v1870 = vadd.f32 %v1796, %v1869
        %v1871 = vpop.f32.mrb[0].mxu0
        %1872 = vmatprep.mubr.f32.mxu0 0.0
        %1873 = vmatmul.mubr.f32.gmra.mrb[0].mxu0 %v1761
        %v1874 = vpop.f32.mrb[0].mxu0
        %v1875 = vadd.f32 %v1796, %v1874
        %v1876 = vpop.f32.mrb[0].mxu0
        %1877 = vmatprep.mubr.f32.mxu0 0.0
        %1878 = vmatmul.mubr.f32.gmra.mrb[0].mxu0 %v1762
        %v1879 = vpop.f32.mrb[0].mxu0
        %v1880 = vadd.f32 %v1796, %v1879
        %v1881 = vpop.f32.mrb[0].mxu0
        %1882 = vmatprep.mubr.f32.mxu0 0.0
        %1883 = vmatmul.mubr.f32.gmra.mrb[0].mxu0 %v1763
        %v1884 = vpop.f32.mrb[0].mxu0
        %v1885 = vadd.f32 %v1796, %v1884
        %v1886 = vpop.f32.mrb[0].mxu0
        %1887 = vmatprep.mubr.f32.mxu0 0.0
        %1888 = vmatmul.mubr.f32.gmra.mrb[0].mxu0 %v1764
        %v1889 = vpop.f32.mrb[0].mxu0
        %v1890 = vadd.f32 %v1796, %v1889
        %v1891 = vpop.f32.mrb[0].mxu0
        %1892 = vmatprep.mubr.f32.mxu0 0.0
        %1893 = vmatmul.mubr.f32.gmra.mrb[0].mxu0 %v1765
        %v1894 = vpop.f32.mrb[0].mxu0
        %v1895 = vadd.f32 %v1796, %v1894
        %v1896 = vpop.f32.mrb[0].mxu0
        %1897 = vmatprep.mubr.f32.mxu0 0.0
        %1898 = vmatmul.mubr.f32.gmra.mrb[0].mxu0 %v1766
        %v1899 = vpop.f32.mrb[0].mxu0
        %v1900 = vadd.f32 %v1796, %v1899
        %v1901 = vpop.f32.mrb[0].mxu0
        %1902 = vmatprep.mubr.f32.mxu0 0.0
        %1903 = vmatmul.mubr.f32.gmra.mrb[0].mxu0 %v1767
        %v1904 = vpop.f32.mrb[0].mxu0
        %v1905 = vadd.f32 %v1796, %v1904
        %v1906 = vpop.f32.mrb[0].mxu0
        %1907 = vmatprep.mubr.f32.mxu0 0.0
        %1908 = vmatmul.mubr.f32.gmra.mrb[0].mxu0 %v1768
        %v1909 = vpop.f32.mrb[0].mxu0
        %v1910 = vadd.f32 %v1796, %v1909
        %v1911 = vpop.f32.mrb[0].mxu0
        %1912 = vmatprep.mubr.f32.mxu0 0.0
        %1913 = vmatmul.mubr.f32.gmra.mrb[0].mxu0 %v1769
        %v1914 = vpop.f32.mrb[0].mxu0
        %v1915 = vadd.f32 %v1796, %v1914
        %v1916 = vpop.f32.mrb[0].mxu0
        %1917 = vmatprep.mubr.f32.mxu0 0.0
        %1918 = vmatmul.mubr.f32.gmra.mrb[0].mxu0 %v1770
        %v1919 = vpop.f32.mrb[0].mxu0
        %v1920 = vadd.f32 %v1796, %v1919
        %v1921 = vpop.f32.mrb[0].mxu0
        %1922 = vmatprep.mubr.f32.mxu0 0.0
        %1923 = vmatmul.mubr.f32.gmra.mrb[0].mxu0 %v1771
        %v1924 = vpop.f32.mrb[0].mxu0
        %v1925 = vadd.f32 %v1796, %v1924
        %v1926 = vpop.f32.mrb[0].mxu0
        %1927 = vmatprep.mubr.f32.mxu0 0.0
        %1928 = vmatmul.mubr.f32.gmra.mrb[0].mxu0 %v1772
        %v1929 = vpop.f32.mrb[0].mxu0
        %v1930 = vadd.f32 %v1796, %v1929
        %v1931 = vpop.f32.mrb[0].mxu0
        %1932 = vmatprep.mubr.f32.mxu0 0.0
        %1933 = vmatmul.mubr.f32.gmra.mrb[0].mxu0 %v1773
        %v1934 = vpop.f32.mrb[0].mxu0
        %v1935 = vadd.f32 %v1796, %v1934
        %v1936 = vpop.f32.mrb[0].mxu0
        %1937 = vmatprep.mubr.f32.mxu0 0.0
        %1938 = vmatmul.mubr.f32.gmra.mrb[0].mxu0 %v1774
        %v1939 = vpop.f32.mrb[0].mxu0
        %v1940 = vadd.f32 %v1796, %v1939
        %v1941 = vpop.f32.mrb[0].mxu0
        %1942 = vdwg.mxu0
        %v1943 = vtanh.pop %v1865
        %v1944 = vtanh.pop %v1870
        %v1945 = vtanh.pop %v1875
        %v1946 = vtanh.pop %v1880
        %v1947 = vtanh.pop %v1885
        %v1948 = vtanh.pop %v1890
        %v1949 = vtanh.pop %v1895
        %v1950 = vtanh.pop %v1900
        %v1951 = vtanh.pop %v1905
        %v1952 = vtanh.pop %v1910
        %v1953 = vtanh.pop %v1915
        %v1954 = vtanh.pop %v1920
        %v1955 = vtanh.pop %v1925
        %v1956 = vtanh.pop %v1930
        %v1957 = vtanh.pop %v1935
        %v1958 = vtanh.pop %v1940
        %v1959 = vld [vmem:[%s5] sm:$0xff]
        %v1960 = vld [vmem:[%s5 + $0x8] sm:$0xff]
        %v1961 = vld [vmem:[%s5 + $0x10] sm:$0xff]
        %v1962 = vld [vmem:[%s5 + $0x18] sm:$0xff]
        %v1963 = vld [vmem:[%s5 + $0x20] sm:$0xff]
        %v1964 = vld [vmem:[%s5 + $0x28] sm:$0xff]
        %v1965 = vld [vmem:[%s5 + $0x30] sm:$0xff]
        %v1966 = vld [vmem:[%s5 + $0x38] sm:$0xff]
        %v1967 = vld [vmem:[%s6] sm:$0x1]
        %v1969 = vlaneseq
        %v1970 = vshrl.u32 %v1969, 7
        %v1971 = vsub.s32 0, %v1970
        %v1972 = vrot.slane %v1967, %v1971
        %vm1974 = vcmask 523264
        %v1976 = vsel %vm1974, %v1943, 0
        %v1979 = vsel %vm1974, %v1944, 0
        %v1982 = vsel %vm1974, %v1945, 0
        %v1985 = vsel %vm1974, %v1946, 0
        %v1988 = vsel %vm1974, %v1947, 0
        %v1991 = vsel %vm1974, %v1948, 0
        %v1994 = vsel %vm1974, %v1949, 0
        %v1997 = vsel %vm1974, %v1950, 0
        %v2000 = vsel %vm1974, %v1951, 0
        %v2003 = vsel %vm1974, %v1952, 0
        %v2006 = vsel %vm1974, %v1953, 0
        %v2009 = vsel %vm1974, %v1954, 0
        %v2012 = vsel %vm1974, %v1955, 0
        %v2015 = vsel %vm1974, %v1956, 0
        %v2018 = vsel %vm1974, %v1957, 0
        %v2021 = vsel %vm1974, %v1958, 0
        %2023 = vmatprep.subr.mxu0 0.0
        %2024 = vmatpush1.msra.mxu0 %v1959
        %2025 = vmatprep.subr.mxu0 0.0
        %2026 = vmatpush1.msra.mxu0 %v1960
        %2027 = vmatprep.subr.mxu0 0.0
        %2028 = vmatpush1.msra.mxu0 %v1961
        %2029 = vmatprep.subr.mxu0 0.0
        %2030 = vmatpush1.msra.mxu0 %v1962
        %2031 = vmatprep.subr.mxu0 0.0
        %2032 = vmatpush1.msra.mxu0 %v1963
        %2033 = vmatprep.subr.mxu0 0.0
        %2034 = vmatpush1.msra.mxu0 %v1964
        %2035 = vmatprep.subr.mxu0 0.0
        %2036 = vmatpush1.msra.mxu0 %v1965
        %2037 = vmatprep.subr.mxu0 0.0
        %2038 = vmatpush1.msra.mxu0 %v1966
        %2039 = vmatprep.subr.mxu0 0.0
        %2040 = vmatpush1.msra.mxu0 0.0
        %2041 = vmatprep.subr.mxu0 0.0
        %2042 = vmatpush1.msra.mxu0 0.0
        %2043 = vmatprep.subr.mxu0 0.0
        %2044 = vmatpush1.msra.mxu0 0.0
        %2045 = vmatprep.subr.mxu0 0.0
        %2046 = vmatpush1.msra.mxu0 0.0
        %2047 = vmatprep.subr.mxu0 0.0
        %2048 = vmatpush1.msra.mxu0 0.0
        %2049 = vmatprep.subr.mxu0 0.0
        %2050 = vmatpush1.msra.mxu0 0.0
        %2051 = vmatprep.subr.mxu0 0.0
        %2052 = vmatpush1.msra.mxu0 0.0
        %2053 = vmatprep.subr.mxu0 0.0
        %2054 = vmatpush1.msra.mxu0 0.0
        %2055 = vmatprep.subr.mxu0 0.0
        %2056 = vmatpush1.msra.mxu0 0.0
        %2057 = vmatprep.subr.mxu0 0.0
        %2058 = vmatpush1.msra.mxu0 0.0
        %2059 = vmatprep.subr.mxu0 0.0
        %2060 = vmatpush1.msra.mxu0 0.0
        %2061 = vmatprep.subr.mxu0 0.0
        %2062 = vmatpush1.msra.mxu0 0.0
        %2063 = vmatprep.subr.mxu0 0.0
        %2064 = vmatpush1.msra.mxu0 0.0
        %2065 = vmatprep.subr.mxu0 0.0
        %2066 = vmatpush1.msra.mxu0 0.0
        %2067 = vmatprep.subr.mxu0 0.0
        %2068 = vmatpush1.msra.mxu0 0.0
        %2069 = vmatprep.subr.mxu0 0.0
        %2070 = vmatpush1.msra.mxu0 0.0
        %2071 = vmatprep.subr.mxu0 0.0
        %2072 = vmatpush1.msra.mxu0 0.0
        %2073 = vmatprep.subr.mxu0 0.0
        %2074 = vmatpush1.msra.mxu0 0.0
        %2075 = vmatprep.subr.mxu0 0.0
        %2076 = vmatpush1.msra.mxu0 0.0
        %2077 = vmatprep.subr.mxu0 0.0
        %2078 = vmatpush1.msra.mxu0 0.0
        %2079 = vmatprep.subr.mxu0 0.0
        %2080 = vmatpush1.msra.mxu0 0.0
        %2081 = vmatprep.subr.mxu0 0.0
        %2082 = vmatpush1.msra.mxu0 0.0
        %2083 = vmatprep.subr.mxu0 0.0
        %2084 = vmatpush1.msra.mxu0 0.0
        %2085 = vmatprep.subr.mxu0 0.0
        %2086 = vmatpush1.msra.mxu0 0.0
        %2087 = vmatprep.mubr.f32.mxu0 0.0
        %2088 = vmatmul.mubr.f32.gmra.mrb[0].mxu0 %v1976
        %v2089 = vpop.f32.mrb[0].mxu0
        %v2090 = vadd.f32 %v1972, %v2089
        %v2091 = vpop.f32.mrb[0].mxu0
        %2092 = vmatprep.mubr.f32.mxu0 0.0
        %2093 = vmatmul.mubr.f32.gmra.mrb[0].mxu0 %v1979
        %v2094 = vpop.f32.mrb[0].mxu0
        %v2095 = vadd.f32 %v1972, %v2094
        %v2096 = vpop.f32.mrb[0].mxu0
        %2097 = vmatprep.mubr.f32.mxu0 0.0
        %2098 = vmatmul.mubr.f32.gmra.mrb[0].mxu0 %v1982
        %v2099 = vpop.f32.mrb[0].mxu0
        %v2100 = vadd.f32 %v1972, %v2099
        %v2101 = vpop.f32.mrb[0].mxu0
        %2102 = vmatprep.mubr.f32.mxu0 0.0
        %2103 = vmatmul.mubr.f32.gmra.mrb[0].mxu0 %v1985
        %v2104 = vpop.f32.mrb[0].mxu0
        %v2105 = vadd.f32 %v1972, %v2104
        %v2106 = vpop.f32.mrb[0].mxu0
        %2107 = vmatprep.mubr.f32.mxu0 0.0
        %2108 = vmatmul.mubr.f32.gmra.mrb[0].mxu0 %v1988
        %v2109 = vpop.f32.mrb[0].mxu0
        %v2110 = vadd.f32 %v1972, %v2109
        %v2111 = vpop.f32.mrb[0].mxu0
        %2112 = vmatprep.mubr.f32.mxu0 0.0
        %2113 = vmatmul.mubr.f32.gmra.mrb[0].mxu0 %v1991
        %v2114 = vpop.f32.mrb[0].mxu0
        %v2115 = vadd.f32 %v1972, %v2114
        %v2116 = vpop.f32.mrb[0].mxu0
        %2117 = vmatprep.mubr.f32.mxu0 0.0
        %2118 = vmatmul.mubr.f32.gmra.mrb[0].mxu0 %v1994
        %v2119 = vpop.f32.mrb[0].mxu0
        %v2120 = vadd.f32 %v1972, %v2119
        %v2121 = vpop.f32.mrb[0].mxu0
        %2122 = vmatprep.mubr.f32.mxu0 0.0
        %2123 = vmatmul.mubr.f32.gmra.mrb[0].mxu0 %v1997
        %v2124 = vpop.f32.mrb[0].mxu0
        %v2125 = vadd.f32 %v1972, %v2124
        %v2126 = vpop.f32.mrb[0].mxu0
        %2127 = vmatprep.mubr.f32.mxu0 0.0
        %2128 = vmatmul.mubr.f32.gmra.mrb[0].mxu0 %v2000
        %v2129 = vpop.f32.mrb[0].mxu0
        %v2130 = vadd.f32 %v1972, %v2129
        %v2131 = vpop.f32.mrb[0].mxu0
        %2132 = vmatprep.mubr.f32.mxu0 0.0
        %2133 = vmatmul.mubr.f32.gmra.mrb[0].mxu0 %v2003
        %v2134 = vpop.f32.mrb[0].mxu0
        %v2135 = vadd.f32 %v1972, %v2134
        %v2136 = vpop.f32.mrb[0].mxu0
        %2137 = vmatprep.mubr.f32.mxu0 0.0
        %2138 = vmatmul.mubr.f32.gmra.mrb[0].mxu0 %v2006
        %v2139 = vpop.f32.mrb[0].mxu0
        %v2140 = vadd.f32 %v1972, %v2139
        %v2141 = vpop.f32.mrb[0].mxu0
        %2142 = vmatprep.mubr.f32.mxu0 0.0
        %2143 = vmatmul.mubr.f32.gmra.mrb[0].mxu0 %v2009
        %v2144 = vpop.f32.mrb[0].mxu0
        %v2145 = vadd.f32 %v1972, %v2144
        %v2146 = vpop.f32.mrb[0].mxu0
        %2147 = vmatprep.mubr.f32.mxu0 0.0
        %2148 = vmatmul.mubr.f32.gmra.mrb[0].mxu0 %v2012
        %v2149 = vpop.f32.mrb[0].mxu0
        %v2150 = vadd.f32 %v1972, %v2149
        %v2151 = vpop.f32.mrb[0].mxu0
        %2152 = vmatprep.mubr.f32.mxu0 0.0
        %2153 = vmatmul.mubr.f32.gmra.mrb[0].mxu0 %v2015
        %v2154 = vpop.f32.mrb[0].mxu0
        %v2155 = vadd.f32 %v1972, %v2154
        %v2156 = vpop.f32.mrb[0].mxu0
        %2157 = vmatprep.mubr.f32.mxu0 0.0
        %2158 = vmatmul.mubr.f32.gmra.mrb[0].mxu0 %v2018
        %v2159 = vpop.f32.mrb[0].mxu0
        %v2160 = vadd.f32 %v1972, %v2159
        %v2161 = vpop.f32.mrb[0].mxu0
        %2162 = vmatprep.mubr.f32.mxu0 0.0
        %2163 = vmatmul.mubr.f32.gmra.mrb[0].mxu0 %v2021
        %v2164 = vpop.f32.mrb[0].mxu0
        %v2165 = vadd.f32 %v1972, %v2164
        %v2166 = vpop.f32.mrb[0].mxu0
        %2167 = vdwg.mxu0
        %v2168 = vtanh.pop %v2090
        %v2169 = vtanh.pop %v2095
        %v2170 = vtanh.pop %v2100
        %v2171 = vtanh.pop %v2105
        %v2172 = vtanh.pop %v2110
        %v2173 = vtanh.pop %v2115
        %v2174 = vtanh.pop %v2120
        %v2175 = vtanh.pop %v2125
        %v2176 = vtanh.pop %v2130
        %v2177 = vtanh.pop %v2135
        %v2178 = vtanh.pop %v2140
        %v2179 = vtanh.pop %v2145
        %v2180 = vtanh.pop %v2150
        %v2181 = vtanh.pop %v2155
        %v2182 = vtanh.pop %v2160
        %v2183 = vtanh.pop %v2165
        %v2184 = vld [vmem:[%s7] sm:$0xff]
        %v2185 = vld [vmem:[%s7 + $0x8] sm:$0xf]
        %v2186 = vld [vmem:[%s8] sm:$0x1]
        %v2188 = vlaneseq
        %v2189 = vshrl.u32 %v2188, 7
        %v2190 = vsub.s32 0, %v2189
        %v2191 = vrot.slane %v2186, %v2190
        %vm2193 = vcmask 97280
        %v2195 = vsel %vm2193, %v2168, 0
        %v2198 = vsel %vm2193, %v2169, 0
        %v2201 = vsel %vm2193, %v2170, 0
        %v2204 = vsel %vm2193, %v2171, 0
        %v2207 = vsel %vm2193, %v2172, 0
        %v2210 = vsel %vm2193, %v2173, 0
        %v2213 = vsel %vm2193, %v2174, 0
        %v2216 = vsel %vm2193, %v2175, 0
        %v2219 = vsel %vm2193, %v2176, 0
        %v2222 = vsel %vm2193, %v2177, 0
        %v2225 = vsel %vm2193, %v2178, 0
        %v2228 = vsel %vm2193, %v2179, 0
        %v2231 = vsel %vm2193, %v2180, 0
        %v2234 = vsel %vm2193, %v2181, 0
        %v2237 = vsel %vm2193, %v2182, 0
        %v2240 = vsel %vm2193, %v2183, 0
        %vm2242 = vcmask 1043456
        %v2244 = vsel %vm2242, %v2185, 0
        %2246 = vmatprep.subr.mxu0 0.0
        %2247 = vmatpush1.msra.mxu0 %v2184
        %2248 = vmatprep.subr.mxu0 0.0
        %2249 = vmatpush1.msra.mxu0 %v2244
        %2250 = vmatprep.subr.mxu0 0.0
        %2251 = vmatpush1.msra.mxu0 0.0
        %2252 = vmatprep.subr.mxu0 0.0
        %2253 = vmatpush1.msra.mxu0 0.0
        %2254 = vmatprep.subr.mxu0 0.0
        %2255 = vmatpush1.msra.mxu0 0.0
        %2256 = vmatprep.subr.mxu0 0.0
        %2257 = vmatpush1.msra.mxu0 0.0
        %2258 = vmatprep.subr.mxu0 0.0
        %2259 = vmatpush1.msra.mxu0 0.0
        %2260 = vmatprep.subr.mxu0 0.0
        %2261 = vmatpush1.msra.mxu0 0.0
        %2262 = vmatprep.subr.mxu0 0.0
        %2263 = vmatpush1.msra.mxu0 0.0
        %2264 = vmatprep.subr.mxu0 0.0
        %2265 = vmatpush1.msra.mxu0 0.0
        %2266 = vmatprep.subr.mxu0 0.0
        %2267 = vmatpush1.msra.mxu0 0.0
        %2268 = vmatprep.subr.mxu0 0.0
        %2269 = vmatpush1.msra.mxu0 0.0
        %2270 = vmatprep.subr.mxu0 0.0
        %2271 = vmatpush1.msra.mxu0 0.0
        %2272 = vmatprep.subr.mxu0 0.0
        %2273 = vmatpush1.msra.mxu0 0.0
        %2274 = vmatprep.subr.mxu0 0.0
        %2275 = vmatpush1.msra.mxu0 0.0
        %2276 = vmatprep.subr.mxu0 0.0
        %2277 = vmatpush1.msra.mxu0 0.0
        %2278 = vmatprep.subr.mxu0 0.0
        %2279 = vmatpush1.msra.mxu0 0.0
        %2280 = vmatprep.subr.mxu0 0.0
        %2281 = vmatpush1.msra.mxu0 0.0
        %2282 = vmatprep.subr.mxu0 0.0
        %2283 = vmatpush1.msra.mxu0 0.0
        %2284 = vmatprep.subr.mxu0 0.0
        %2285 = vmatpush1.msra.mxu0 0.0
        %2286 = vmatprep.subr.mxu0 0.0
        %2287 = vmatpush1.msra.mxu0 0.0
        %2288 = vmatprep.subr.mxu0 0.0
        %2289 = vmatpush1.msra.mxu0 0.0
        %2290 = vmatprep.subr.mxu0 0.0
        %2291 = vmatpush1.msra.mxu0 0.0
        %2292 = vmatprep.subr.mxu0 0.0
        %2293 = vmatpush1.msra.mxu0 0.0
        %2294 = vmatprep.subr.mxu0 0.0
        %2295 = vmatpush1.msra.mxu0 0.0
        %2296 = vmatprep.subr.mxu0 0.0
        %2297 = vmatpush1.msra.mxu0 0.0
        %2298 = vmatprep.subr.mxu0 0.0
        %2299 = vmatpush1.msra.mxu0 0.0
        %2300 = vmatprep.subr.mxu0 0.0
        %2301 = vmatpush1.msra.mxu0 0.0
        %2302 = vmatprep.subr.mxu0 0.0
        %2303 = vmatpush1.msra.mxu0 0.0
        %2304 = vmatprep.subr.mxu0 0.0
        %2305 = vmatpush1.msra.mxu0 0.0
        %2306 = vmatprep.subr.mxu0 0.0
        %2307 = vmatpush1.msra.mxu0 0.0
        %2308 = vmatprep.subr.mxu0 0.0
        %2309 = vmatpush1.msra.mxu0 0.0
        %2310 = vmatprep.mubr.f32.mxu0 0.0
        %2311 = vmatmul.mubr.f32.gmra.mrb[0].mxu0 %v2195
        %v2312 = vpop.f32.mrb[0].mxu0
        %v2313 = vadd.f32 %v2191, %v2312
        %v2314 = vpop.f32.mrb[0].mxu0
        %2315 = vmatprep.mubr.f32.mxu0 0.0
        %2316 = vmatmul.mubr.f32.gmra.mrb[0].mxu0 %v2198
        %v2317 = vpop.f32.mrb[0].mxu0
        %v2318 = vadd.f32 %v2191, %v2317
        %v2319 = vpop.f32.mrb[0].mxu0
        %2320 = vmatprep.mubr.f32.mxu0 0.0
        %2321 = vmatmul.mubr.f32.gmra.mrb[0].mxu0 %v2201
        %v2322 = vpop.f32.mrb[0].mxu0
        %v2323 = vadd.f32 %v2191, %v2322
        %v2324 = vpop.f32.mrb[0].mxu0
        %2325 = vmatprep.mubr.f32.mxu0 0.0
        %2326 = vmatmul.mubr.f32.gmra.mrb[0].mxu0 %v2204
        %v2327 = vpop.f32.mrb[0].mxu0
        %v2328 = vadd.f32 %v2191, %v2327
        %v2329 = vpop.f32.mrb[0].mxu0
        %2330 = vmatprep.mubr.f32.mxu0 0.0
        %2331 = vmatmul.mubr.f32.gmra.mrb[0].mxu0 %v2207
        %v2332 = vpop.f32.mrb[0].mxu0
        %v2333 = vadd.f32 %v2191, %v2332
        %v2334 = vpop.f32.mrb[0].mxu0
        %2335 = vmatprep.mubr.f32.mxu0 0.0
        %2336 = vmatmul.mubr.f32.gmra.mrb[0].mxu0 %v2210
        %v2337 = vpop.f32.mrb[0].mxu0
        %v2338 = vadd.f32 %v2191, %v2337
        %v2339 = vpop.f32.mrb[0].mxu0
        %2340 = vmatprep.mubr.f32.mxu0 0.0
        %2341 = vmatmul.mubr.f32.gmra.mrb[0].mxu0 %v2213
        %v2342 = vpop.f32.mrb[0].mxu0
        %v2343 = vadd.f32 %v2191, %v2342
        %v2344 = vpop.f32.mrb[0].mxu0
        %2345 = vmatprep.mubr.f32.mxu0 0.0
        %2346 = vmatmul.mubr.f32.gmra.mrb[0].mxu0 %v2216
        %v2347 = vpop.f32.mrb[0].mxu0
        %v2348 = vadd.f32 %v2191, %v2347
        %v2349 = vpop.f32.mrb[0].mxu0
        %2350 = vmatprep.mubr.f32.mxu0 0.0
        %2351 = vmatmul.mubr.f32.gmra.mrb[0].mxu0 %v2219
        %v2352 = vpop.f32.mrb[0].mxu0
        %v2353 = vadd.f32 %v2191, %v2352
        %v2354 = vpop.f32.mrb[0].mxu0
        %2355 = vmatprep.mubr.f32.mxu0 0.0
        %2356 = vmatmul.mubr.f32.gmra.mrb[0].mxu0 %v2222
        %v2357 = vpop.f32.mrb[0].mxu0
        %v2358 = vadd.f32 %v2191, %v2357
        %v2359 = vpop.f32.mrb[0].mxu0
        %2360 = vmatprep.mubr.f32.mxu0 0.0
        %2361 = vmatmul.mubr.f32.gmra.mrb[0].mxu0 %v2225
        %v2362 = vpop.f32.mrb[0].mxu0
        %v2363 = vadd.f32 %v2191, %v2362
        %v2364 = vpop.f32.mrb[0].mxu0
        %2365 = vmatprep.mubr.f32.mxu0 0.0
        %2366 = vmatmul.mubr.f32.gmra.mrb[0].mxu0 %v2228
        %v2367 = vpop.f32.mrb[0].mxu0
        %v2368 = vadd.f32 %v2191, %v2367
        %v2369 = vpop.f32.mrb[0].mxu0
        %2370 = vmatprep.mubr.f32.mxu0 0.0
        %2371 = vmatmul.mubr.f32.gmra.mrb[0].mxu0 %v2231
        %v2372 = vpop.f32.mrb[0].mxu0
        %v2373 = vadd.f32 %v2191, %v2372
        %v2374 = vpop.f32.mrb[0].mxu0
        %2375 = vmatprep.mubr.f32.mxu0 0.0
        %2376 = vmatmul.mubr.f32.gmra.mrb[0].mxu0 %v2234
        %v2377 = vpop.f32.mrb[0].mxu0
        %v2378 = vadd.f32 %v2191, %v2377
        %v2379 = vpop.f32.mrb[0].mxu0
        %2380 = vmatprep.mubr.f32.mxu0 0.0
        %2381 = vmatmul.mubr.f32.gmra.mrb[0].mxu0 %v2237
        %v2382 = vpop.f32.mrb[0].mxu0
        %v2383 = vadd.f32 %v2191, %v2382
        %v2384 = vpop.f32.mrb[0].mxu0
        %2385 = vmatprep.mubr.f32.mxu0 0.0
        %2386 = vmatmul.mubr.f32.gmra.mrb[0].mxu0 %v2240
        %v2387 = vpop.f32.mrb[0].mxu0
        %v2388 = vadd.f32 %v2191, %v2387
        %v2389 = vpop.f32.mrb[0].mxu0
        %2390 = vdwg.mxu0
        %v2391 = vpack.c.bf16 %v2318, %v2313
        %v2392 = vpack.c.bf16 %v2328, %v2323
        %v2393 = vpack.c.bf16 %v2338, %v2333
        %v2394 = vpack.c.bf16 %v2348, %v2343
        %v2395 = vpack.c.bf16 %v2358, %v2353
        %v2396 = vpack.c.bf16 %v2368, %v2363
        %v2397 = vpack.c.bf16 %v2378, %v2373
        %v2398 = vpack.c.bf16 %v2388, %v2383
        %v2407 = vunpack.c.l.b16 %v2391
        %v2408 = vunpack.c.h.b16 %v2391
        %v2409 = vunpack.c.l.b16 %v2392
        %v2410 = vunpack.c.h.b16 %v2392
        %v2411 = vunpack.c.l.b16 %v2393
        %v2412 = vunpack.c.h.b16 %v2393
        %v2413 = vunpack.c.l.b16 %v2394
        %v2414 = vunpack.c.h.b16 %v2394
        %v2415 = vunpack.c.l.b16 %v2395
        %v2416 = vunpack.c.h.b16 %v2395
        %v2417 = vunpack.c.l.b16 %v2396
        %v2418 = vunpack.c.h.b16 %v2396
        %v2419 = vunpack.c.l.b16 %v2397
        %v2420 = vunpack.c.h.b16 %v2397
        %v2421 = vunpack.c.l.b16 %v2398
        %v2422 = vunpack.c.h.b16 %v2398
        %v2423 = vpack.c.b16 %v2407, %v2407
        %v2424 = vpack.c.b16 %v2408, %v2408
        %v2425 = vpack.c.b16 %v2409, %v2409
        %v2426 = vpack.c.b16 %v2410, %v2410
        %v2427 = vpack.c.b16 %v2411, %v2411
        %v2428 = vpack.c.b16 %v2412, %v2412
        %v2429 = vpack.c.b16 %v2413, %v2413
        %v2430 = vpack.c.b16 %v2414, %v2414
        %v2431 = vpack.c.b16 %v2415, %v2415
        %v2432 = vpack.c.b16 %v2416, %v2416
        %v2433 = vpack.c.b16 %v2417, %v2417
        %v2434 = vpack.c.b16 %v2418, %v2418
        %v2435 = vpack.c.b16 %v2419, %v2419
        %v2436 = vpack.c.b16 %v2420, %v2420
        %v2437 = vpack.c.b16 %v2421, %v2421
        %v2438 = vpack.c.b16 %v2422, %v2422
        %2455 = vst [vmem:[%s634] sm:$0xf] %v2423
        %2456 = vst [vmem:[%s634 + $0x4] sm:$0xf] %v2424
        %2457 = vst [vmem:[%s634 + $0x8] sm:$0xf] %v2425
        %2458 = vst [vmem:[%s634 + $0xc] sm:$0xf] %v2426
        %2459 = vst [vmem:[%s634 + $0x10] sm:$0xf] %v2427
        %2460 = vst [vmem:[%s634 + $0x14] sm:$0xf] %v2428
        %2461 = vst [vmem:[%s634 + $0x18] sm:$0xf] %v2429
        %2462 = vst [vmem:[%s634 + $0x1c] sm:$0xf] %v2430
        %2463 = vst [vmem:[%s634 + $0x20] sm:$0xf] %v2431
        %2464 = vst [vmem:[%s634 + $0x24] sm:$0xf] %v2432
        %2465 = vst [vmem:[%s634 + $0x28] sm:$0xf] %v2433
        %2466 = vst [vmem:[%s634 + $0x2c] sm:$0xf] %v2434
        %2467 = vst [vmem:[%s634 + $0x30] sm:$0xf] %v2435
        %2468 = vst [vmem:[%s634 + $0x34] sm:$0xf] %v2436
        %2469 = vst [vmem:[%s634 + $0x38] sm:$0xf] %v2437
        %2470 = vst [vmem:[%s634 + $0x3c] sm:$0xf] %v2438
        %v2471 = vld [vmem:[%s9] sm:$0xff]
        %v2472 = vld [vmem:[%s9 + $0x8] sm:$0xff]
        %v2473 = vld [vmem:[%s9 + $0x10] sm:$0xff]
        %v2474 = vld [vmem:[%s9 + $0x18] sm:$0xff]
        %v2475 = vld [vmem:[%s9 + $0x20] sm:$0xff]
        %v2476 = vld [vmem:[%s9 + $0x28] sm:$0xff]
        %v2477 = vld [vmem:[%s9 + $0x30] sm:$0xff]
        %v2478 = vld [vmem:[%s9 + $0x38] sm:$0xff]
        %v2479 = vld [vmem:[%s9 + $0x40] sm:$0xff]
        %v2480 = vld [vmem:[%s9 + $0x48] sm:$0xff]
        %v2481 = vld [vmem:[%s9 + $0x50] sm:$0xff]
        %v2482 = vld [vmem:[%s9 + $0x58] sm:$0xff]
        %v2483 = vld [vmem:[%s9 + $0x60] sm:$0xff]
        %v2484 = vld [vmem:[%s9 + $0x68] sm:$0xff]
        %v2485 = vld [vmem:[%s9 + $0x70] sm:$0xff]
        %v2486 = vld [vmem:[%s9 + $0x78] sm:$0xff]
        %v2487 = vld [vmem:[%s10] sm:$0x1]
        %v2489 = vlaneseq
        %v2490 = vshrl.u32 %v2489, 7
        %v2491 = vsub.s32 0, %v2490
        %v2492 = vrot.slane %v2487, %v2491
        %2494 = vmatprep.subr.mxu0 0.0
        %2495 = vmatpush1.msra.mxu0 %v2471
        %2496 = vmatprep.subr.mxu0 0.0
        %2497 = vmatpush1.msra.mxu0 %v2472
        %2498 = vmatprep.subr.mxu0 0.0
        %2499 = vmatpush1.msra.mxu0 %v2473
        %2500 = vmatprep.subr.mxu0 0.0
        %2501 = vmatpush1.msra.mxu0 %v2474
        %2502 = vmatprep.subr.mxu0 0.0
        %2503 = vmatpush1.msra.mxu0 %v2475
        %2504 = vmatprep.subr.mxu0 0.0
        %2505 = vmatpush1.msra.mxu0 %v2476
        %2506 = vmatprep.subr.mxu0 0.0
        %2507 = vmatpush1.msra.mxu0 %v2477
        %2508 = vmatprep.subr.mxu0 0.0
        %2509 = vmatpush1.msra.mxu0 %v2478
        %2510 = vmatprep.subr.mxu0 0.0
        %2511 = vmatpush1.msra.mxu0 %v2479
        %2512 = vmatprep.subr.mxu0 0.0
        %2513 = vmatpush1.msra.mxu0 %v2480
        %2514 = vmatprep.subr.mxu0 0.0
        %2515 = vmatpush1.msra.mxu0 %v2481
        %2516 = vmatprep.subr.mxu0 0.0
        %2517 = vmatpush1.msra.mxu0 %v2482
        %2518 = vmatprep.subr.mxu0 0.0
        %2519 = vmatpush1.msra.mxu0 %v2483
        %2520 = vmatprep.subr.mxu0 0.0
        %2521 = vmatpush1.msra.mxu0 %v2484
        %2522 = vmatprep.subr.mxu0 0.0
        %2523 = vmatpush1.msra.mxu0 %v2485
        %2524 = vmatprep.subr.mxu0 0.0
        %2525 = vmatpush1.msra.mxu0 %v2486
        %2526 = vmatprep.subr.mxu0 0.0
        %2527 = vmatpush1.msra.mxu0 0.0
        %2528 = vmatprep.subr.mxu0 0.0
        %2529 = vmatpush1.msra.mxu0 0.0
        %2530 = vmatprep.subr.mxu0 0.0
        %2531 = vmatpush1.msra.mxu0 0.0
        %2532 = vmatprep.subr.mxu0 0.0
        %2533 = vmatpush1.msra.mxu0 0.0
        %2534 = vmatprep.subr.mxu0 0.0
        %2535 = vmatpush1.msra.mxu0 0.0
        %2536 = vmatprep.subr.mxu0 0.0
        %2537 = vmatpush1.msra.mxu0 0.0
        %2538 = vmatprep.subr.mxu0 0.0
        %2539 = vmatpush1.msra.mxu0 0.0
        %2540 = vmatprep.subr.mxu0 0.0
        %2541 = vmatpush1.msra.mxu0 0.0
        %2542 = vmatprep.subr.mxu0 0.0
        %2543 = vmatpush1.msra.mxu0 0.0
        %2544 = vmatprep.subr.mxu0 0.0
        %2545 = vmatpush1.msra.mxu0 0.0
        %2546 = vmatprep.subr.mxu0 0.0
        %2547 = vmatpush1.msra.mxu0 0.0
        %2548 = vmatprep.subr.mxu0 0.0
        %2549 = vmatpush1.msra.mxu0 0.0
        %2550 = vmatprep.subr.mxu0 0.0
        %2551 = vmatpush1.msra.mxu0 0.0
        %2552 = vmatprep.subr.mxu0 0.0
        %2553 = vmatpush1.msra.mxu0 0.0
        %2554 = vmatprep.subr.mxu0 0.0
        %2555 = vmatpush1.msra.mxu0 0.0
        %2556 = vmatprep.subr.mxu0 0.0
        %2557 = vmatpush1.msra.mxu0 0.0
        %2558 = vmatprep.mubr.f32.mxu0 0.0
        %2559 = vmatmul.mubr.f32.gmra.mrb[0].mxu0 %v2313
        %v2560 = vpop.f32.mrb[0].mxu0
        %v2561 = vadd.f32 %v2492, %v2560
        %v2562 = vpop.f32.mrb[0].mxu0
        %2563 = vmatprep.mubr.f32.mxu0 0.0
        %2564 = vmatmul.mubr.f32.gmra.mrb[0].mxu0 %v2318
        %v2565 = vpop.f32.mrb[0].mxu0
        %v2566 = vadd.f32 %v2492, %v2565
        %v2567 = vpop.f32.mrb[0].mxu0
        %2568 = vmatprep.mubr.f32.mxu0 0.0
        %2569 = vmatmul.mubr.f32.gmra.mrb[0].mxu0 %v2323
        %v2570 = vpop.f32.mrb[0].mxu0
        %v2571 = vadd.f32 %v2492, %v2570
        %v2572 = vpop.f32.mrb[0].mxu0
        %2573 = vmatprep.mubr.f32.mxu0 0.0
        %2574 = vmatmul.mubr.f32.gmra.mrb[0].mxu0 %v2328
        %v2575 = vpop.f32.mrb[0].mxu0
        %v2576 = vadd.f32 %v2492, %v2575
        %v2577 = vpop.f32.mrb[0].mxu0
        %2578 = vmatprep.mubr.f32.mxu0 0.0
        %2579 = vmatmul.mubr.f32.gmra.mrb[0].mxu0 %v2333
        %v2580 = vpop.f32.mrb[0].mxu0
        %v2581 = vadd.f32 %v2492, %v2580
        %v2582 = vpop.f32.mrb[0].mxu0
        %2583 = vmatprep.mubr.f32.mxu0 0.0
        %2584 = vmatmul.mubr.f32.gmra.mrb[0].mxu0 %v2338
        %v2585 = vpop.f32.mrb[0].mxu0
        %v2586 = vadd.f32 %v2492, %v2585
        %v2587 = vpop.f32.mrb[0].mxu0
        %2588 = vmatprep.mubr.f32.mxu0 0.0
        %2589 = vmatmul.mubr.f32.gmra.mrb[0].mxu0 %v2343
        %v2590 = vpop.f32.mrb[0].mxu0
        %v2591 = vadd.f32 %v2492, %v2590
        %v2592 = vpop.f32.mrb[0].mxu0
        %2593 = vmatprep.mubr.f32.mxu0 0.0
        %2594 = vmatmul.mubr.f32.gmra.mrb[0].mxu0 %v2348
        %v2595 = vpop.f32.mrb[0].mxu0
        %v2596 = vadd.f32 %v2492, %v2595
        %v2597 = vpop.f32.mrb[0].mxu0
        %2598 = vmatprep.mubr.f32.mxu0 0.0
        %2599 = vmatmul.mubr.f32.gmra.mrb[0].mxu0 %v2353
        %v2600 = vpop.f32.mrb[0].mxu0
        %v2601 = vadd.f32 %v2492, %v2600
        %v2602 = vpop.f32.mrb[0].mxu0
        %2603 = vmatprep.mubr.f32.mxu0 0.0
        %2604 = vmatmul.mubr.f32.gmra.mrb[0].mxu0 %v2358
        %v2605 = vpop.f32.mrb[0].mxu0
        %v2606 = vadd.f32 %v2492, %v2605
        %v2607 = vpop.f32.mrb[0].mxu0
        %2608 = vmatprep.mubr.f32.mxu0 0.0
        %2609 = vmatmul.mubr.f32.gmra.mrb[0].mxu0 %v2363
        %v2610 = vpop.f32.mrb[0].mxu0
        %v2611 = vadd.f32 %v2492, %v2610
        %v2612 = vpop.f32.mrb[0].mxu0
        %2613 = vmatprep.mubr.f32.mxu0 0.0
        %2614 = vmatmul.mubr.f32.gmra.mrb[0].mxu0 %v2368
        %v2615 = vpop.f32.mrb[0].mxu0
        %v2616 = vadd.f32 %v2492, %v2615
        %v2617 = vpop.f32.mrb[0].mxu0
        %2618 = vmatprep.mubr.f32.mxu0 0.0
        %2619 = vmatmul.mubr.f32.gmra.mrb[0].mxu0 %v2373
        %v2620 = vpop.f32.mrb[0].mxu0
        %v2621 = vadd.f32 %v2492, %v2620
        %v2622 = vpop.f32.mrb[0].mxu0
        %2623 = vmatprep.mubr.f32.mxu0 0.0
        %2624 = vmatmul.mubr.f32.gmra.mrb[0].mxu0 %v2378
        %v2625 = vpop.f32.mrb[0].mxu0
        %v2626 = vadd.f32 %v2492, %v2625
        %v2627 = vpop.f32.mrb[0].mxu0
        %2628 = vmatprep.mubr.f32.mxu0 0.0
        %2629 = vmatmul.mubr.f32.gmra.mrb[0].mxu0 %v2383
        %v2630 = vpop.f32.mrb[0].mxu0
        %v2631 = vadd.f32 %v2492, %v2630
        %v2632 = vpop.f32.mrb[0].mxu0
        %2633 = vmatprep.mubr.f32.mxu0 0.0
        %2634 = vmatmul.mubr.f32.gmra.mrb[0].mxu0 %v2388
        %v2635 = vpop.f32.mrb[0].mxu0
        %v2636 = vadd.f32 %v2492, %v2635
        %v2637 = vpop.f32.mrb[0].mxu0
        %2638 = vdwg.mxu0
        %v2639 = vtanh.pop %v2561
        %v2640 = vtanh.pop %v2566
        %v2641 = vtanh.pop %v2571
        %v2642 = vtanh.pop %v2576
        %v2643 = vtanh.pop %v2581
        %v2644 = vtanh.pop %v2586
        %v2645 = vtanh.pop %v2591
        %v2646 = vtanh.pop %v2596
        %v2647 = vtanh.pop %v2601
        %v2648 = vtanh.pop %v2606
        %v2649 = vtanh.pop %v2611
        %v2650 = vtanh.pop %v2616
        %v2651 = vtanh.pop %v2621
        %v2652 = vtanh.pop %v2626
        %v2653 = vtanh.pop %v2631
        %v2654 = vtanh.pop %v2636
        %v2655 = vld [vmem:[%s11] sm:$0xff]
        %v2656 = vld [vmem:[%s11 + $0x8] sm:$0xf]
        %v2657 = vld [vmem:[%s12] sm:$0x1]
        %v2659 = vlaneseq
        %v2660 = vshrl.u32 %v2659, 7
        %v2661 = vsub.s32 0, %v2660
        %v2662 = vrot.slane %v2657, %v2661
        %v2665 = vsel %vm2193, %v2639, 0
        %v2668 = vsel %vm2193, %v2640, 0
        %v2671 = vsel %vm2193, %v2641, 0
        %v2674 = vsel %vm2193, %v2642, 0
        %v2677 = vsel %vm2193, %v2643, 0
        %v2680 = vsel %vm2193, %v2644, 0
        %v2683 = vsel %vm2193, %v2645, 0
        %v2686 = vsel %vm2193, %v2646, 0
        %v2689 = vsel %vm2193, %v2647, 0
        %v2692 = vsel %vm2193, %v2648, 0
        %v2695 = vsel %vm2193, %v2649, 0
        %v2698 = vsel %vm2193, %v2650, 0
        %v2701 = vsel %vm2193, %v2651, 0
        %v2704 = vsel %vm2193, %v2652, 0
        %v2707 = vsel %vm2193, %v2653, 0
        %v2710 = vsel %vm2193, %v2654, 0
        %v2713 = vsel %vm2242, %v2656, 0
        %2715 = vmatprep.subr.mxu0 0.0
        %2716 = vmatpush1.msra.mxu0 %v2655
        %2717 = vmatprep.subr.mxu0 0.0
        %2718 = vmatpush1.msra.mxu0 %v2713
        %2719 = vmatprep.subr.mxu0 0.0
        %2720 = vmatpush1.msra.mxu0 0.0
        %2721 = vmatprep.subr.mxu0 0.0
        %2722 = vmatpush1.msra.mxu0 0.0
        %2723 = vmatprep.subr.mxu0 0.0
        %2724 = vmatpush1.msra.mxu0 0.0
        %2725 = vmatprep.subr.mxu0 0.0
        %2726 = vmatpush1.msra.mxu0 0.0
        %2727 = vmatprep.subr.mxu0 0.0
        %2728 = vmatpush1.msra.mxu0 0.0
        %2729 = vmatprep.subr.mxu0 0.0
        %2730 = vmatpush1.msra.mxu0 0.0
        %2731 = vmatprep.subr.mxu0 0.0
        %2732 = vmatpush1.msra.mxu0 0.0
        %2733 = vmatprep.subr.mxu0 0.0
        %2734 = vmatpush1.msra.mxu0 0.0
        %2735 = vmatprep.subr.mxu0 0.0
        %2736 = vmatpush1.msra.mxu0 0.0
        %2737 = vmatprep.subr.mxu0 0.0
        %2738 = vmatpush1.msra.mxu0 0.0
        %2739 = vmatprep.subr.mxu0 0.0
        %2740 = vmatpush1.msra.mxu0 0.0
        %2741 = vmatprep.subr.mxu0 0.0
        %2742 = vmatpush1.msra.mxu0 0.0
        %2743 = vmatprep.subr.mxu0 0.0
        %2744 = vmatpush1.msra.mxu0 0.0
        %2745 = vmatprep.subr.mxu0 0.0
        %2746 = vmatpush1.msra.mxu0 0.0
        %2747 = vmatprep.subr.mxu0 0.0
        %2748 = vmatpush1.msra.mxu0 0.0
        %2749 = vmatprep.subr.mxu0 0.0
        %2750 = vmatpush1.msra.mxu0 0.0
        %2751 = vmatprep.subr.mxu0 0.0
        %2752 = vmatpush1.msra.mxu0 0.0
        %2753 = vmatprep.subr.mxu0 0.0
        %2754 = vmatpush1.msra.mxu0 0.0
        %2755 = vmatprep.subr.mxu0 0.0
        %2756 = vmatpush1.msra.mxu0 0.0
        %2757 = vmatprep.subr.mxu0 0.0
        %2758 = vmatpush1.msra.mxu0 0.0
        %2759 = vmatprep.subr.mxu0 0.0
        %2760 = vmatpush1.msra.mxu0 0.0
        %2761 = vmatprep.subr.mxu0 0.0
        %2762 = vmatpush1.msra.mxu0 0.0
        %2763 = vmatprep.subr.mxu0 0.0
        %2764 = vmatpush1.msra.mxu0 0.0
        %2765 = vmatprep.subr.mxu0 0.0
        %2766 = vmatpush1.msra.mxu0 0.0
        %2767 = vmatprep.subr.mxu0 0.0
        %2768 = vmatpush1.msra.mxu0 0.0
        %2769 = vmatprep.subr.mxu0 0.0
        %2770 = vmatpush1.msra.mxu0 0.0
        %2771 = vmatprep.subr.mxu0 0.0
        %2772 = vmatpush1.msra.mxu0 0.0
        %2773 = vmatprep.subr.mxu0 0.0
        %2774 = vmatpush1.msra.mxu0 0.0
        %2775 = vmatprep.subr.mxu0 0.0
        %2776 = vmatpush1.msra.mxu0 0.0
        %2777 = vmatprep.subr.mxu0 0.0
        %2778 = vmatpush1.msra.mxu0 0.0
        %2779 = vmatprep.mubr.f32.mxu0 0.0
        %2780 = vmatmul.mubr.f32.gmra.mrb[0].mxu0 %v2665
        %v2781 = vpop.f32.mrb[0].mxu0
        %v2782 = vadd.f32 %v2662, %v2781
        %v2783 = vpop.f32.mrb[0].mxu0
        %2784 = vmatprep.mubr.f32.mxu0 0.0
        %2785 = vmatmul.mubr.f32.gmra.mrb[0].mxu0 %v2668
        %v2786 = vpop.f32.mrb[0].mxu0
        %v2787 = vadd.f32 %v2662, %v2786
        %v2788 = vpop.f32.mrb[0].mxu0
        %2789 = vmatprep.mubr.f32.mxu0 0.0
        %2790 = vmatmul.mubr.f32.gmra.mrb[0].mxu0 %v2671
        %v2791 = vpop.f32.mrb[0].mxu0
        %v2792 = vadd.f32 %v2662, %v2791
        %v2793 = vpop.f32.mrb[0].mxu0
        %2794 = vmatprep.mubr.f32.mxu0 0.0
        %2795 = vmatmul.mubr.f32.gmra.mrb[0].mxu0 %v2674
        %v2796 = vpop.f32.mrb[0].mxu0
        %v2797 = vadd.f32 %v2662, %v2796
        %v2798 = vpop.f32.mrb[0].mxu0
        %2799 = vmatprep.mubr.f32.mxu0 0.0
        %2800 = vmatmul.mubr.f32.gmra.mrb[0].mxu0 %v2677
        %v2801 = vpop.f32.mrb[0].mxu0
        %v2802 = vadd.f32 %v2662, %v2801
        %v2803 = vpop.f32.mrb[0].mxu0
        %2804 = vmatprep.mubr.f32.mxu0 0.0
        %2805 = vmatmul.mubr.f32.gmra.mrb[0].mxu0 %v2680
        %v2806 = vpop.f32.mrb[0].mxu0
        %v2807 = vadd.f32 %v2662, %v2806
        %v2808 = vpop.f32.mrb[0].mxu0
        %2809 = vmatprep.mubr.f32.mxu0 0.0
        %2810 = vmatmul.mubr.f32.gmra.mrb[0].mxu0 %v2683
        %v2811 = vpop.f32.mrb[0].mxu0
        %v2812 = vadd.f32 %v2662, %v2811
        %v2813 = vpop.f32.mrb[0].mxu0
        %2814 = vmatprep.mubr.f32.mxu0 0.0
        %2815 = vmatmul.mubr.f32.gmra.mrb[0].mxu0 %v2686
        %v2816 = vpop.f32.mrb[0].mxu0
        %v2817 = vadd.f32 %v2662, %v2816
        %v2818 = vpop.f32.mrb[0].mxu0
        %2819 = vmatprep.mubr.f32.mxu0 0.0
        %2820 = vmatmul.mubr.f32.gmra.mrb[0].mxu0 %v2689
        %v2821 = vpop.f32.mrb[0].mxu0
        %v2822 = vadd.f32 %v2662, %v2821
        %v2823 = vpop.f32.mrb[0].mxu0
        %2824 = vmatprep.mubr.f32.mxu0 0.0
        %2825 = vmatmul.mubr.f32.gmra.mrb[0].mxu0 %v2692
        %v2826 = vpop.f32.mrb[0].mxu0
        %v2827 = vadd.f32 %v2662, %v2826
        %v2828 = vpop.f32.mrb[0].mxu0
        %2829 = vmatprep.mubr.f32.mxu0 0.0
        %2830 = vmatmul.mubr.f32.gmra.mrb[0].mxu0 %v2695
        %v2831 = vpop.f32.mrb[0].mxu0
        %v2832 = vadd.f32 %v2662, %v2831
        %v2833 = vpop.f32.mrb[0].mxu0
        %2834 = vmatprep.mubr.f32.mxu0 0.0
        %2835 = vmatmul.mubr.f32.gmra.mrb[0].mxu0 %v2698
        %v2836 = vpop.f32.mrb[0].mxu0
        %v2837 = vadd.f32 %v2662, %v2836
        %v2838 = vpop.f32.mrb[0].mxu0
        %2839 = vmatprep.mubr.f32.mxu0 0.0
        %2840 = vmatmul.mubr.f32.gmra.mrb[0].mxu0 %v2701
        %v2841 = vpop.f32.mrb[0].mxu0
        %v2842 = vadd.f32 %v2662, %v2841
        %v2843 = vpop.f32.mrb[0].mxu0
        %2844 = vmatprep.mubr.f32.mxu0 0.0
        %2845 = vmatmul.mubr.f32.gmra.mrb[0].mxu0 %v2704
        %v2846 = vpop.f32.mrb[0].mxu0
        %v2847 = vadd.f32 %v2662, %v2846
        %v2848 = vpop.f32.mrb[0].mxu0
        %2849 = vmatprep.mubr.f32.mxu0 0.0
        %2850 = vmatmul.mubr.f32.gmra.mrb[0].mxu0 %v2707
        %v2851 = vpop.f32.mrb[0].mxu0
        %v2852 = vadd.f32 %v2662, %v2851
        %v2853 = vpop.f32.mrb[0].mxu0
        %2854 = vmatprep.mubr.f32.mxu0 0.0
        %2855 = vmatmul.mubr.f32.gmra.mrb[0].mxu0 %v2710
        %v2856 = vpop.f32.mrb[0].mxu0
        %v2857 = vadd.f32 %v2662, %v2856
        %v2858 = vpop.f32.mrb[0].mxu0
        %2859 = vdwg.mxu0
        %v2860 = vtanh.pop %v2782
        %v2861 = vtanh.pop %v2787
        %v2862 = vtanh.pop %v2792
        %v2863 = vtanh.pop %v2797
        %v2864 = vtanh.pop %v2802
        %v2865 = vtanh.pop %v2807
        %v2866 = vtanh.pop %v2812
        %v2867 = vtanh.pop %v2817
        %v2868 = vtanh.pop %v2822
        %v2869 = vtanh.pop %v2827
        %v2870 = vtanh.pop %v2832
        %v2871 = vtanh.pop %v2837
        %v2872 = vtanh.pop %v2842
        %v2873 = vtanh.pop %v2847
        %v2874 = vtanh.pop %v2852
        %v2875 = vtanh.pop %v2857
        %v2876 = vld [vmem:[%s13] sm:$0xff]
        %v2877 = vld [vmem:[%s13 + $0x8] sm:$0xff]
        %v2878 = vld [vmem:[%s13 + $0x10] sm:$0xff]
        %v2879 = vld [vmem:[%s13 + $0x18] sm:$0xff]
        %v2880 = vld [vmem:[%s13 + $0x20] sm:$0xff]
        %v2881 = vld [vmem:[%s13 + $0x28] sm:$0xff]
        %v2882 = vld [vmem:[%s13 + $0x30] sm:$0xff]
        %v2883 = vld [vmem:[%s13 + $0x38] sm:$0xff]
        %v2884 = vld [vmem:[%s14] sm:$0x1]
        %v2886 = vlaneseq
        %v2887 = vshrl.u32 %v2886, 7
        %v2888 = vsub.s32 0, %v2887
        %v2889 = vrot.slane %v2884, %v2888
        %v2892 = vsel %vm1974, %v2860, 0
        %v2895 = vsel %vm1974, %v2861, 0
        %v2898 = vsel %vm1974, %v2862, 0
        %v2901 = vsel %vm1974, %v2863, 0
        %v2904 = vsel %vm1974, %v2864, 0
        %v2907 = vsel %vm1974, %v2865, 0
        %v2910 = vsel %vm1974, %v2866, 0
        %v2913 = vsel %vm1974, %v2867, 0
        %v2916 = vsel %vm1974, %v2868, 0
        %v2919 = vsel %vm1974, %v2869, 0
        %v2922 = vsel %vm1974, %v2870, 0
        %v2925 = vsel %vm1974, %v2871, 0
        %v2928 = vsel %vm1974, %v2872, 0
        %v2931 = vsel %vm1974, %v2873, 0
        %v2934 = vsel %vm1974, %v2874, 0
        %v2937 = vsel %vm1974, %v2875, 0
        %2939 = vmatprep.subr.mxu0 0.0
        %2940 = vmatpush1.msra.mxu0 %v2876
        %2941 = vmatprep.subr.mxu0 0.0
        %2942 = vmatpush1.msra.mxu0 %v2877
        %2943 = vmatprep.subr.mxu0 0.0
        %2944 = vmatpush1.msra.mxu0 %v2878
        %2945 = vmatprep.subr.mxu0 0.0
        %2946 = vmatpush1.msra.mxu0 %v2879
        %2947 = vmatprep.subr.mxu0 0.0
        %2948 = vmatpush1.msra.mxu0 %v2880
        %2949 = vmatprep.subr.mxu0 0.0
        %2950 = vmatpush1.msra.mxu0 %v2881
        %2951 = vmatprep.subr.mxu0 0.0
        %2952 = vmatpush1.msra.mxu0 %v2882
        %2953 = vmatprep.subr.mxu0 0.0
        %2954 = vmatpush1.msra.mxu0 %v2883
        %2955 = vmatprep.subr.mxu0 0.0
        %2956 = vmatpush1.msra.mxu0 0.0
        %2957 = vmatprep.subr.mxu0 0.0
        %2958 = vmatpush1.msra.mxu0 0.0
        %2959 = vmatprep.subr.mxu0 0.0
        %2960 = vmatpush1.msra.mxu0 0.0
        %2961 = vmatprep.subr.mxu0 0.0
        %2962 = vmatpush1.msra.mxu0 0.0
        %2963 = vmatprep.subr.mxu0 0.0
        %2964 = vmatpush1.msra.mxu0 0.0
        %2965 = vmatprep.subr.mxu0 0.0
        %2966 = vmatpush1.msra.mxu0 0.0
        %2967 = vmatprep.subr.mxu0 0.0
        %2968 = vmatpush1.msra.mxu0 0.0
        %2969 = vmatprep.subr.mxu0 0.0
        %2970 = vmatpush1.msra.mxu0 0.0
        %2971 = vmatprep.subr.mxu0 0.0
        %2972 = vmatpush1.msra.mxu0 0.0
        %2973 = vmatprep.subr.mxu0 0.0
        %2974 = vmatpush1.msra.mxu0 0.0
        %2975 = vmatprep.subr.mxu0 0.0
        %2976 = vmatpush1.msra.mxu0 0.0
        %2977 = vmatprep.subr.mxu0 0.0
        %2978 = vmatpush1.msra.mxu0 0.0
        %2979 = vmatprep.subr.mxu0 0.0
        %2980 = vmatpush1.msra.mxu0 0.0
        %2981 = vmatprep.subr.mxu0 0.0
        %2982 = vmatpush1.msra.mxu0 0.0
        %2983 = vmatprep.subr.mxu0 0.0
        %2984 = vmatpush1.msra.mxu0 0.0
        %2985 = vmatprep.subr.mxu0 0.0
        %2986 = vmatpush1.msra.mxu0 0.0
        %2987 = vmatprep.subr.mxu0 0.0
        %2988 = vmatpush1.msra.mxu0 0.0
        %2989 = vmatprep.subr.mxu0 0.0
        %2990 = vmatpush1.msra.mxu0 0.0
        %2991 = vmatprep.subr.mxu0 0.0
        %2992 = vmatpush1.msra.mxu0 0.0
        %2993 = vmatprep.subr.mxu0 0.0
        %2994 = vmatpush1.msra.mxu0 0.0
        %2995 = vmatprep.subr.mxu0 0.0
        %2996 = vmatpush1.msra.mxu0 0.0
        %2997 = vmatprep.subr.mxu0 0.0
        %2998 = vmatpush1.msra.mxu0 0.0
        %2999 = vmatprep.subr.mxu0 0.0
        %3000 = vmatpush1.msra.mxu0 0.0
        %3001 = vmatprep.subr.mxu0 0.0
        %3002 = vmatpush1.msra.mxu0 0.0
        %3003 = vmatprep.mubr.f32.mxu0 0.0
        %3004 = vmatmul.mubr.f32.gmra.mrb[0].mxu0 %v2892
        %v3005 = vpop.f32.mrb[0].mxu0
        %v3006 = vadd.f32 %v2889, %v3005
        %v3007 = vpop.f32.mrb[0].mxu0
        %3008 = vmatprep.mubr.f32.mxu0 0.0
        %3009 = vmatmul.mubr.f32.gmra.mrb[0].mxu0 %v2895
        %v3010 = vpop.f32.mrb[0].mxu0
        %v3011 = vadd.f32 %v2889, %v3010
        %v3012 = vpop.f32.mrb[0].mxu0
        %3013 = vmatprep.mubr.f32.mxu0 0.0
        %3014 = vmatmul.mubr.f32.gmra.mrb[0].mxu0 %v2898
        %v3015 = vpop.f32.mrb[0].mxu0
        %v3016 = vadd.f32 %v2889, %v3015
        %v3017 = vpop.f32.mrb[0].mxu0
        %3018 = vmatprep.mubr.f32.mxu0 0.0
        %3019 = vmatmul.mubr.f32.gmra.mrb[0].mxu0 %v2901
        %v3020 = vpop.f32.mrb[0].mxu0
        %v3021 = vadd.f32 %v2889, %v3020
        %v3022 = vpop.f32.mrb[0].mxu0
        %3023 = vmatprep.mubr.f32.mxu0 0.0
        %3024 = vmatmul.mubr.f32.gmra.mrb[0].mxu0 %v2904
        %v3025 = vpop.f32.mrb[0].mxu0
        %v3026 = vadd.f32 %v2889, %v3025
        %v3027 = vpop.f32.mrb[0].mxu0
        %3028 = vmatprep.mubr.f32.mxu0 0.0
        %3029 = vmatmul.mubr.f32.gmra.mrb[0].mxu0 %v2907
        %v3030 = vpop.f32.mrb[0].mxu0
        %v3031 = vadd.f32 %v2889, %v3030
        %v3032 = vpop.f32.mrb[0].mxu0
        %3033 = vmatprep.mubr.f32.mxu0 0.0
        %3034 = vmatmul.mubr.f32.gmra.mrb[0].mxu0 %v2910
        %v3035 = vpop.f32.mrb[0].mxu0
        %v3036 = vadd.f32 %v2889, %v3035
        %v3037 = vpop.f32.mrb[0].mxu0
        %3038 = vmatprep.mubr.f32.mxu0 0.0
        %3039 = vmatmul.mubr.f32.gmra.mrb[0].mxu0 %v2913
        %v3040 = vpop.f32.mrb[0].mxu0
        %v3041 = vadd.f32 %v2889, %v3040
        %v3042 = vpop.f32.mrb[0].mxu0
        %3043 = vmatprep.mubr.f32.mxu0 0.0
        %3044 = vmatmul.mubr.f32.gmra.mrb[0].mxu0 %v2916
        %v3045 = vpop.f32.mrb[0].mxu0
        %v3046 = vadd.f32 %v2889, %v3045
        %v3047 = vpop.f32.mrb[0].mxu0
        %3048 = vmatprep.mubr.f32.mxu0 0.0
        %3049 = vmatmul.mubr.f32.gmra.mrb[0].mxu0 %v2919
        %v3050 = vpop.f32.mrb[0].mxu0
        %v3051 = vadd.f32 %v2889, %v3050
        %v3052 = vpop.f32.mrb[0].mxu0
        %3053 = vmatprep.mubr.f32.mxu0 0.0
        %3054 = vmatmul.mubr.f32.gmra.mrb[0].mxu0 %v2922
        %v3055 = vpop.f32.mrb[0].mxu0
        %v3056 = vadd.f32 %v2889, %v3055
        %v3057 = vpop.f32.mrb[0].mxu0
        %3058 = vmatprep.mubr.f32.mxu0 0.0
        %3059 = vmatmul.mubr.f32.gmra.mrb[0].mxu0 %v2925
        %v3060 = vpop.f32.mrb[0].mxu0
        %v3061 = vadd.f32 %v2889, %v3060
        %v3062 = vpop.f32.mrb[0].mxu0
        %3063 = vmatprep.mubr.f32.mxu0 0.0
        %3064 = vmatmul.mubr.f32.gmra.mrb[0].mxu0 %v2928
        %v3065 = vpop.f32.mrb[0].mxu0
        %v3066 = vadd.f32 %v2889, %v3065
        %v3067 = vpop.f32.mrb[0].mxu0
        %3068 = vmatprep.mubr.f32.mxu0 0.0
        %3069 = vmatmul.mubr.f32.gmra.mrb[0].mxu0 %v2931
        %v3070 = vpop.f32.mrb[0].mxu0
        %v3071 = vadd.f32 %v2889, %v3070
        %v3072 = vpop.f32.mrb[0].mxu0
        %3073 = vmatprep.mubr.f32.mxu0 0.0
        %3074 = vmatmul.mubr.f32.gmra.mrb[0].mxu0 %v2934
        %v3075 = vpop.f32.mrb[0].mxu0
        %v3076 = vadd.f32 %v2889, %v3075
        %v3077 = vpop.f32.mrb[0].mxu0
        %3078 = vmatprep.mubr.f32.mxu0 0.0
        %3079 = vmatmul.mubr.f32.gmra.mrb[0].mxu0 %v2937
        %v3080 = vpop.f32.mrb[0].mxu0
        %v3081 = vadd.f32 %v2889, %v3080
        %v3082 = vpop.f32.mrb[0].mxu0
        %3083 = vdwg.mxu0
        %v3084 = vtanh.pop %v3006
        %v3085 = vtanh.pop %v3011
        %v3086 = vtanh.pop %v3016
        %v3087 = vtanh.pop %v3021
        %v3088 = vtanh.pop %v3026
        %v3089 = vtanh.pop %v3031
        %v3090 = vtanh.pop %v3036
        %v3091 = vtanh.pop %v3041
        %v3092 = vtanh.pop %v3046
        %v3093 = vtanh.pop %v3051
        %v3094 = vtanh.pop %v3056
        %v3095 = vtanh.pop %v3061
        %v3096 = vtanh.pop %v3066
        %v3097 = vtanh.pop %v3071
        %v3098 = vtanh.pop %v3076
        %v3099 = vtanh.pop %v3081
        %v3100 = vpack.c.bf16 %v3085, %v3084
        %v3101 = vpack.c.bf16 %v3087, %v3086
        %v3102 = vpack.c.bf16 %v3089, %v3088
        %v3103 = vpack.c.bf16 %v3091, %v3090
        %v3104 = vpack.c.bf16 %v3093, %v3092
        %v3105 = vpack.c.bf16 %v3095, %v3094
        %v3106 = vpack.c.bf16 %v3097, %v3096
        %v3107 = vpack.c.bf16 %v3099, %v3098
        %v3108 = vld [vmem:[#allocation7] sm:$0xff]
        %v3109 = vld [vmem:[#allocation7 + $0x8] sm:$0xff]
        %v3110 = vld [vmem:[#allocation7 + $0x10] sm:$0xff]
        %v3111 = vld [vmem:[#allocation7 + $0x18] sm:$0xff]
        %v3112 = vld [vmem:[#allocation7 + $0x20] sm:$0xff]
        %v3113 = vld [vmem:[#allocation7 + $0x28] sm:$0xff]
        %v3114 = vld [vmem:[#allocation7 + $0x30] sm:$0xff]
        %v3115 = vld [vmem:[#allocation7 + $0x38] sm:$0xff]
        %v3116 = vld [vmem:[#allocation7 + $0x40] sm:$0xff]
        %v3117 = vld [vmem:[#allocation7 + $0x48] sm:$0xff]
        %v3118 = vld [vmem:[#allocation7 + $0x50] sm:$0xff]
        %v3119 = vld [vmem:[#allocation7 + $0x58] sm:$0xff]
        %v3120 = vld [vmem:[#allocation7 + $0x60] sm:$0xff]
        %v3121 = vld [vmem:[#allocation7 + $0x68] sm:$0xff]
        %v3122 = vld [vmem:[#allocation7 + $0x70] sm:$0xff]
        %v3123 = vld [vmem:[#allocation7 + $0x78] sm:$0xff]
        %v3124 = vld [vmem:[#allocation7 + $0x80] sm:$0xff]
        %v3125 = vld [vmem:[#allocation7 + $0x88] sm:$0xff]
        %v3126 = vld [vmem:[#allocation7 + $0x90] sm:$0xff]
        %v3127 = vld [vmem:[#allocation7 + $0x98] sm:$0xff]
        %v3128 = vld [vmem:[#allocation7 + $0xa0] sm:$0xff]
        %v3129 = vld [vmem:[#allocation7 + $0xa8] sm:$0xff]
        %v3130 = vld [vmem:[#allocation7 + $0xb0] sm:$0xff]
        %v3131 = vld [vmem:[#allocation7 + $0xb8] sm:$0xff]
        %v3132 = vld [vmem:[#allocation7 + $0xc0] sm:$0xff]
        %v3133 = vld [vmem:[#allocation7 + $0xc8] sm:$0xff]
        %v3134 = vld [vmem:[#allocation7 + $0xd0] sm:$0xff]
        %v3135 = vld [vmem:[#allocation7 + $0xd8] sm:$0xff]
        %v3136 = vld [vmem:[#allocation7 + $0xe0] sm:$0xff]
        %v3137 = vld [vmem:[#allocation7 + $0xe8] sm:$0xff]
        %v3138 = vld [vmem:[#allocation7 + $0xf0] sm:$0xff]
        %v3139 = vld [vmem:[#allocation7 + $0xf8] sm:$0xff]
        %v3140 = vld [vmem:[#allocation7 + $0x100] sm:$0xff]
        %v3141 = vld [vmem:[#allocation7 + $0x108] sm:$0xff]
        %v3142 = vld [vmem:[#allocation7 + $0x110] sm:$0xff]
        %v3143 = vld [vmem:[#allocation7 + $0x118] sm:$0xff]
        %v3144 = vld [vmem:[#allocation7 + $0x120] sm:$0xff]
        %v3145 = vld [vmem:[#allocation7 + $0x128] sm:$0xff]
        %v3146 = vld [vmem:[#allocation7 + $0x130] sm:$0xff]
        %v3147 = vld [vmem:[#allocation7 + $0x138] sm:$0xff]
        %v3148 = vld [vmem:[#allocation7 + $0x140] sm:$0xff]
        %v3149 = vld [vmem:[#allocation7 + $0x148] sm:$0xff]
        %v3150 = vld [vmem:[#allocation7 + $0x150] sm:$0xff]
        %v3151 = vld [vmem:[#allocation7 + $0x158] sm:$0xff]
        %v3152 = vld [vmem:[#allocation7 + $0x160] sm:$0xff]
        %v3153 = vld [vmem:[#allocation7 + $0x168] sm:$0xff]
        %v3154 = vld [vmem:[#allocation7 + $0x170] sm:$0xff]
        %v3155 = vld [vmem:[#allocation7 + $0x178] sm:$0xff]
        %v3156 = vld [vmem:[#allocation7 + $0x180] sm:$0xff]
        %v3157 = vld [vmem:[#allocation7 + $0x188] sm:$0xff]
        %v3158 = vld [vmem:[#allocation7 + $0x190] sm:$0xff]
        %v3159 = vld [vmem:[#allocation7 + $0x198] sm:$0xff]
        %v3160 = vld [vmem:[#allocation7 + $0x1a0] sm:$0xff]
        %v3161 = vld [vmem:[#allocation7 + $0x1a8] sm:$0xff]
        %v3162 = vld [vmem:[#allocation7 + $0x1b0] sm:$0xff]
        %v3163 = vld [vmem:[#allocation7 + $0x1b8] sm:$0xff]
        %v3164 = vld [vmem:[#allocation7 + $0x1c0] sm:$0xff]
        %v3165 = vld [vmem:[#allocation7 + $0x1c8] sm:$0xff]
        %v3166 = vld [vmem:[#allocation7 + $0x1d0] sm:$0xff]
        %v3167 = vld [vmem:[#allocation7 + $0x1d8] sm:$0xff]
        %v3168 = vld [vmem:[#allocation7 + $0x1e0] sm:$0xff]
        %v3169 = vld [vmem:[#allocation7 + $0x1e8] sm:$0xff]
        %v3170 = vld [vmem:[#allocation7 + $0x1f0] sm:$0xff]
        %v3171 = vld [vmem:[#allocation7 + $0x1f8] sm:$0xff]
        %v3172 = vld [vmem:[%s16] sm:$0xff]
        %v3174 = vlaneseq
        %v3175 = vshrl.u32 %v3174, 7
        %v3176 = vsub.s32 0, %v3175
        %v3177 = vrot.slane %v3172, %v3176
        %v3178 = vlaneseq
        %v3179 = vshrl.u32 %v3178, 7
        %v3180 = vsub.s32 1, %v3179
        %v3181 = vrot.slane %v3172, %v3180
        %v3182 = vlaneseq
        %v3183 = vshrl.u32 %v3182, 7
        %v3184 = vsub.s32 2, %v3183
        %v3185 = vrot.slane %v3172, %v3184
        %v3186 = vlaneseq
        %v3187 = vshrl.u32 %v3186, 7
        %v3188 = vsub.s32 3, %v3187
        %v3189 = vrot.slane %v3172, %v3188
        %v3190 = vlaneseq
        %v3191 = vshrl.u32 %v3190, 7
        %v3192 = vsub.s32 4, %v3191
        %v3193 = vrot.slane %v3172, %v3192
        %v3194 = vlaneseq
        %v3195 = vshrl.u32 %v3194, 7
        %v3196 = vsub.s32 5, %v3195
        %v3197 = vrot.slane %v3172, %v3196
        %v3198 = vlaneseq
        %v3199 = vshrl.u32 %v3198, 7
        %v3200 = vsub.s32 6, %v3199
        %v3201 = vrot.slane %v3172, %v3200
        %v3202 = vlaneseq
        %v3203 = vshrl.u32 %v3202, 7
        %v3204 = vsub.s32 7, %v3203
        %v3205 = vrot.slane %v3172, %v3204
        %v3278 = vunpack.c.l.b16 %v3108
        %v3279 = vunpack.c.h.b16 %v3108
        %v3280 = vunpack.c.l.b16 %v3109
        %v3281 = vunpack.c.h.b16 %v3109
        %v3282 = vunpack.c.l.b16 %v3110
        %v3283 = vunpack.c.h.b16 %v3110
        %v3284 = vunpack.c.l.b16 %v3111
        %v3285 = vunpack.c.h.b16 %v3111
        %v3286 = vunpack.c.l.b16 %v3112
        %v3287 = vunpack.c.h.b16 %v3112
        %v3288 = vunpack.c.l.b16 %v3113
        %v3289 = vunpack.c.h.b16 %v3113
        %v3290 = vunpack.c.l.b16 %v3114
        %v3291 = vunpack.c.h.b16 %v3114
        %v3292 = vunpack.c.l.b16 %v3115
        %v3293 = vunpack.c.h.b16 %v3115
        %v3294 = vunpack.c.l.b16 %v3116
        %v3295 = vunpack.c.h.b16 %v3116
        %v3296 = vunpack.c.l.b16 %v3117
        %v3297 = vunpack.c.h.b16 %v3117
        %v3298 = vunpack.c.l.b16 %v3118
        %v3299 = vunpack.c.h.b16 %v3118
        %v3300 = vunpack.c.l.b16 %v3119
        %v3301 = vunpack.c.h.b16 %v3119
        %v3302 = vunpack.c.l.b16 %v3120
        %v3303 = vunpack.c.h.b16 %v3120
        %v3304 = vunpack.c.l.b16 %v3121
        %v3305 = vunpack.c.h.b16 %v3121
        %v3306 = vunpack.c.l.b16 %v3122
        %v3307 = vunpack.c.h.b16 %v3122
        %v3308 = vunpack.c.l.b16 %v3123
        %v3309 = vunpack.c.h.b16 %v3123
        %v3310 = vunpack.c.l.b16 %v3124
        %v3311 = vunpack.c.h.b16 %v3124
        %v3312 = vunpack.c.l.b16 %v3125
        %v3313 = vunpack.c.h.b16 %v3125
        %v3314 = vunpack.c.l.b16 %v3126
        %v3315 = vunpack.c.h.b16 %v3126
        %v3316 = vunpack.c.l.b16 %v3127
        %v3317 = vunpack.c.h.b16 %v3127
        %v3318 = vunpack.c.l.b16 %v3128
        %v3319 = vunpack.c.h.b16 %v3128
        %v3320 = vunpack.c.l.b16 %v3129
        %v3321 = vunpack.c.h.b16 %v3129
        %v3322 = vunpack.c.l.b16 %v3130
        %v3323 = vunpack.c.h.b16 %v3130
        %v3324 = vunpack.c.l.b16 %v3131
        %v3325 = vunpack.c.h.b16 %v3131
        %v3326 = vunpack.c.l.b16 %v3132
        %v3327 = vunpack.c.h.b16 %v3132
        %v3328 = vunpack.c.l.b16 %v3133
        %v3329 = vunpack.c.h.b16 %v3133
        %v3330 = vunpack.c.l.b16 %v3134
        %v3331 = vunpack.c.h.b16 %v3134
        %v3332 = vunpack.c.l.b16 %v3135
        %v3333 = vunpack.c.h.b16 %v3135
        %v3334 = vunpack.c.l.b16 %v3136
        %v3335 = vunpack.c.h.b16 %v3136
        %v3336 = vunpack.c.l.b16 %v3137
        %v3337 = vunpack.c.h.b16 %v3137
        %v3338 = vunpack.c.l.b16 %v3138
        %v3339 = vunpack.c.h.b16 %v3138
        %v3340 = vunpack.c.l.b16 %v3139
        %v3341 = vunpack.c.h.b16 %v3139
        %v3342 = vunpack.c.l.b16 %v3140
        %v3343 = vunpack.c.h.b16 %v3140
        %v3344 = vunpack.c.l.b16 %v3141
        %v3345 = vunpack.c.h.b16 %v3141
        %v3346 = vunpack.c.l.b16 %v3142
        %v3347 = vunpack.c.h.b16 %v3142
        %v3348 = vunpack.c.l.b16 %v3143
        %v3349 = vunpack.c.h.b16 %v3143
        %v3350 = vunpack.c.l.b16 %v3144
        %v3351 = vunpack.c.h.b16 %v3144
        %v3352 = vunpack.c.l.b16 %v3145
        %v3353 = vunpack.c.h.b16 %v3145
        %v3354 = vunpack.c.l.b16 %v3146
        %v3355 = vunpack.c.h.b16 %v3146
        %v3356 = vunpack.c.l.b16 %v3147
        %v3357 = vunpack.c.h.b16 %v3147
        %v3358 = vunpack.c.l.b16 %v3148
        %v3359 = vunpack.c.h.b16 %v3148
        %v3360 = vunpack.c.l.b16 %v3149
        %v3361 = vunpack.c.h.b16 %v3149
        %v3362 = vunpack.c.l.b16 %v3150
        %v3363 = vunpack.c.h.b16 %v3150
        %v3364 = vunpack.c.l.b16 %v3151
        %v3365 = vunpack.c.h.b16 %v3151
        %v3366 = vunpack.c.l.b16 %v3152
        %v3367 = vunpack.c.h.b16 %v3152
        %v3368 = vunpack.c.l.b16 %v3153
        %v3369 = vunpack.c.h.b16 %v3153
        %v3370 = vunpack.c.l.b16 %v3154
        %v3371 = vunpack.c.h.b16 %v3154
        %v3372 = vunpack.c.l.b16 %v3155
        %v3373 = vunpack.c.h.b16 %v3155
        %v3374 = vunpack.c.l.b16 %v3156
        %v3375 = vunpack.c.h.b16 %v3156
        %v3376 = vunpack.c.l.b16 %v3157
        %v3377 = vunpack.c.h.b16 %v3157
        %v3378 = vunpack.c.l.b16 %v3158
        %v3379 = vunpack.c.h.b16 %v3158
        %v3380 = vunpack.c.l.b16 %v3159
        %v3381 = vunpack.c.h.b16 %v3159
        %v3382 = vunpack.c.l.b16 %v3160
        %v3383 = vunpack.c.h.b16 %v3160
        %v3384 = vunpack.c.l.b16 %v3161
        %v3385 = vunpack.c.h.b16 %v3161
        %v3386 = vunpack.c.l.b16 %v3162
        %v3387 = vunpack.c.h.b16 %v3162
        %v3388 = vunpack.c.l.b16 %v3163
        %v3389 = vunpack.c.h.b16 %v3163
        %v3390 = vunpack.c.l.b16 %v3164
        %v3391 = vunpack.c.h.b16 %v3164
        %v3392 = vunpack.c.l.b16 %v3165
        %v3393 = vunpack.c.h.b16 %v3165
        %v3394 = vunpack.c.l.b16 %v3166
        %v3395 = vunpack.c.h.b16 %v3166
        %v3396 = vunpack.c.l.b16 %v3167
        %v3397 = vunpack.c.h.b16 %v3167
        %v3398 = vunpack.c.l.b16 %v3168
        %v3399 = vunpack.c.h.b16 %v3168
        %v3400 = vunpack.c.l.b16 %v3169
        %v3401 = vunpack.c.h.b16 %v3169
        %v3402 = vunpack.c.l.b16 %v3170
        %v3403 = vunpack.c.h.b16 %v3170
        %v3404 = vunpack.c.l.b16 %v3171
        %v3405 = vunpack.c.h.b16 %v3171
        %v3406 = vpack.c.b16 %v3286, %v3278
        %v3407 = vpack.c.b16 %v3287, %v3279
        %v3408 = vpack.c.b16 %v3288, %v3280
        %v3409 = vpack.c.b16 %v3289, %v3281
        %v3410 = vpack.c.b16 %v3290, %v3282
        %v3411 = vpack.c.b16 %v3291, %v3283
        %v3412 = vpack.c.b16 %v3292, %v3284
        %v3413 = vpack.c.b16 %v3293, %v3285
        %v3414 = vpack.c.b16 %v3302, %v3294
        %v3415 = vpack.c.b16 %v3303, %v3295
        %v3416 = vpack.c.b16 %v3304, %v3296
        %v3417 = vpack.c.b16 %v3305, %v3297
        %v3418 = vpack.c.b16 %v3306, %v3298
        %v3419 = vpack.c.b16 %v3307, %v3299
        %v3420 = vpack.c.b16 %v3308, %v3300
        %v3421 = vpack.c.b16 %v3309, %v3301
        %v3422 = vpack.c.b16 %v3318, %v3310
        %v3423 = vpack.c.b16 %v3319, %v3311
        %v3424 = vpack.c.b16 %v3320, %v3312
        %v3425 = vpack.c.b16 %v3321, %v3313
        %v3426 = vpack.c.b16 %v3322, %v3314
        %v3427 = vpack.c.b16 %v3323, %v3315
        %v3428 = vpack.c.b16 %v3324, %v3316
        %v3429 = vpack.c.b16 %v3325, %v3317
        %v3430 = vpack.c.b16 %v3334, %v3326
        %v3431 = vpack.c.b16 %v3335, %v3327
        %v3432 = vpack.c.b16 %v3336, %v3328
        %v3433 = vpack.c.b16 %v3337, %v3329
        %v3434 = vpack.c.b16 %v3338, %v3330
        %v3435 = vpack.c.b16 %v3339, %v3331
        %v3436 = vpack.c.b16 %v3340, %v3332
        %v3437 = vpack.c.b16 %v3341, %v3333
        %v3438 = vpack.c.b16 %v3350, %v3342
        %v3439 = vpack.c.b16 %v3351, %v3343
        %v3440 = vpack.c.b16 %v3352, %v3344
        %v3441 = vpack.c.b16 %v3353, %v3345
        %v3442 = vpack.c.b16 %v3354, %v3346
        %v3443 = vpack.c.b16 %v3355, %v3347
        %v3444 = vpack.c.b16 %v3356, %v3348
        %v3445 = vpack.c.b16 %v3357, %v3349
        %v3446 = vpack.c.b16 %v3366, %v3358
        %v3447 = vpack.c.b16 %v3367, %v3359
        %v3448 = vpack.c.b16 %v3368, %v3360
        %v3449 = vpack.c.b16 %v3369, %v3361
        %v3450 = vpack.c.b16 %v3370, %v3362
        %v3451 = vpack.c.b16 %v3371, %v3363
        %v3452 = vpack.c.b16 %v3372, %v3364
        %v3453 = vpack.c.b16 %v3373, %v3365
        %v3454 = vpack.c.b16 %v3382, %v3374
        %v3455 = vpack.c.b16 %v3383, %v3375
        %v3456 = vpack.c.b16 %v3384, %v3376
        %v3457 = vpack.c.b16 %v3385, %v3377
        %v3458 = vpack.c.b16 %v3386, %v3378
        %v3459 = vpack.c.b16 %v3387, %v3379
        %v3460 = vpack.c.b16 %v3388, %v3380
        %v3461 = vpack.c.b16 %v3389, %v3381
        %v3462 = vpack.c.b16 %v3398, %v3390
        %v3463 = vpack.c.b16 %v3399, %v3391
        %v3464 = vpack.c.b16 %v3400, %v3392
        %v3465 = vpack.c.b16 %v3401, %v3393
        %v3466 = vpack.c.b16 %v3402, %v3394
        %v3467 = vpack.c.b16 %v3403, %v3395
        %v3468 = vpack.c.b16 %v3404, %v3396
        %v3469 = vpack.c.b16 %v3405, %v3397
        %3534 = vmatprep.subr.bf16.mxu0 %v3407
        %3535 = vmatpush1.bf16.msra.mxu0 %v3406
        %3536 = vmatprep.subr.bf16.mxu0 %v3415
        %3537 = vmatpush1.bf16.msra.mxu0 %v3414
        %3538 = vmatprep.subr.bf16.mxu0 %v3423
        %3539 = vmatpush1.bf16.msra.mxu0 %v3422
        %3540 = vmatprep.subr.bf16.mxu0 %v3431
        %3541 = vmatpush1.bf16.msra.mxu0 %v3430
        %3542 = vmatprep.subr.bf16.mxu0 %v3439
        %3543 = vmatpush1.bf16.msra.mxu0 %v3438
        %3544 = vmatprep.subr.bf16.mxu0 %v3447
        %3545 = vmatpush1.bf16.msra.mxu0 %v3446
        %3546 = vmatprep.subr.bf16.mxu0 %v3455
        %3547 = vmatpush1.bf16.msra.mxu0 %v3454
        %3548 = vmatprep.subr.bf16.mxu0 %v3463
        %3549 = vmatpush1.bf16.msra.mxu0 %v3462
        %3550 = vmatprep.subr.bf16.mxu0 0
        %3551 = vmatpush1.bf16.msra.mxu0 0
        %3552 = vmatprep.subr.bf16.mxu0 0
        %3553 = vmatpush1.bf16.msra.mxu0 0
        %3554 = vmatprep.subr.bf16.mxu0 0
        %3555 = vmatpush1.bf16.msra.mxu0 0
        %3556 = vmatprep.subr.bf16.mxu0 0
        %3557 = vmatpush1.bf16.msra.mxu0 0
        %3558 = vmatprep.subr.bf16.mxu0 0
        %3559 = vmatpush1.bf16.msra.mxu0 0
        %3560 = vmatprep.subr.bf16.mxu0 0
        %3561 = vmatpush1.bf16.msra.mxu0 0
        %3562 = vmatprep.subr.bf16.mxu0 0
        %3563 = vmatpush1.bf16.msra.mxu0 0
        %3564 = vmatprep.subr.bf16.mxu0 0
        %3565 = vmatpush1.bf16.msra.mxu0 0
        %3566 = vmatprep.mubr.bf16.mxu0 0
        %3567 = vmatmul.mubr.bf16.gmra.mrb[0].mxu0 %v3100
        %v3568 = vpop.f32.mrb[0].mxu0
        %v3569 = vadd.f32 %v3177, %v3568
        %v3570 = vpop.f32.mrb[0].mxu0
        %v3571 = vadd.f32 %v3181, %v3570
        %v3572 = vpop.f32.mrb[0].mxu0
        %v3573 = vadd.f32 %v3177, %v3572
        %v3574 = vpop.f32.mrb[0].mxu0
        %v3575 = vadd.f32 %v3181, %v3574
        %3576 = vmatprep.mubr.bf16.mxu0 0
        %3577 = vmatmul.mubr.bf16.gmra.mrb[0].mxu0 %v3101
        %v3578 = vpop.f32.mrb[0].mxu0
        %v3579 = vadd.f32 %v3177, %v3578
        %v3580 = vpop.f32.mrb[0].mxu0
        %v3581 = vadd.f32 %v3181, %v3580
        %v3582 = vpop.f32.mrb[0].mxu0
        %v3583 = vadd.f32 %v3177, %v3582
        %v3584 = vpop.f32.mrb[0].mxu0
        %v3585 = vadd.f32 %v3181, %v3584
        %3586 = vmatprep.mubr.bf16.mxu0 0
        %3587 = vmatmul.mubr.bf16.gmra.mrb[0].mxu0 %v3102
        %v3588 = vpop.f32.mrb[0].mxu0
        %v3589 = vadd.f32 %v3177, %v3588
        %v3590 = vpop.f32.mrb[0].mxu0
        %v3591 = vadd.f32 %v3181, %v3590
        %v3592 = vpop.f32.mrb[0].mxu0
        %v3593 = vadd.f32 %v3177, %v3592
        %v3594 = vpop.f32.mrb[0].mxu0
        %v3595 = vadd.f32 %v3181, %v3594
        %3596 = vmatprep.mubr.bf16.mxu0 0
        %3597 = vmatmul.mubr.bf16.gmra.mrb[0].mxu0 %v3103
        %v3598 = vpop.f32.mrb[0].mxu0
        %v3599 = vadd.f32 %v3177, %v3598
        %v3600 = vpop.f32.mrb[0].mxu0
        %v3601 = vadd.f32 %v3181, %v3600
        %v3602 = vpop.f32.mrb[0].mxu0
        %v3603 = vadd.f32 %v3177, %v3602
        %v3604 = vpop.f32.mrb[0].mxu0
        %v3605 = vadd.f32 %v3181, %v3604
        %3606 = vmatprep.mubr.bf16.mxu0 0
        %3607 = vmatmul.mubr.bf16.gmra.mrb[0].mxu0 %v3104
        %v3608 = vpop.f32.mrb[0].mxu0
        %v3609 = vadd.f32 %v3177, %v3608
        %v3610 = vpop.f32.mrb[0].mxu0
        %v3611 = vadd.f32 %v3181, %v3610
        %v3612 = vpop.f32.mrb[0].mxu0
        %v3613 = vadd.f32 %v3177, %v3612
        %v3614 = vpop.f32.mrb[0].mxu0
        %v3615 = vadd.f32 %v3181, %v3614
        %3616 = vmatprep.mubr.bf16.mxu0 0
        %3617 = vmatmul.mubr.bf16.gmra.mrb[0].mxu0 %v3105
        %v3618 = vpop.f32.mrb[0].mxu0
        %v3619 = vadd.f32 %v3177, %v3618
        %v3620 = vpop.f32.mrb[0].mxu0
        %v3621 = vadd.f32 %v3181, %v3620
        %v3622 = vpop.f32.mrb[0].mxu0
        %v3623 = vadd.f32 %v3177, %v3622
        %v3624 = vpop.f32.mrb[0].mxu0
        %v3625 = vadd.f32 %v3181, %v3624
        %3626 = vmatprep.mubr.bf16.mxu0 0
        %3627 = vmatmul.mubr.bf16.gmra.mrb[0].mxu0 %v3106
        %v3628 = vpop.f32.mrb[0].mxu0
        %v3629 = vadd.f32 %v3177, %v3628
        %v3630 = vpop.f32.mrb[0].mxu0
        %v3631 = vadd.f32 %v3181, %v3630
        %v3632 = vpop.f32.mrb[0].mxu0
        %v3633 = vadd.f32 %v3177, %v3632
        %v3634 = vpop.f32.mrb[0].mxu0
        %v3635 = vadd.f32 %v3181, %v3634
        %3636 = vmatprep.mubr.bf16.mxu0 0
        %3637 = vmatmul.mubr.bf16.gmra.mrb[0].mxu0 %v3107
        %v3638 = vpop.f32.mrb[0].mxu0
        %v3639 = vadd.f32 %v3177, %v3638
        %v3640 = vpop.f32.mrb[0].mxu0
        %v3641 = vadd.f32 %v3181, %v3640
        %v3642 = vpop.f32.mrb[0].mxu0
        %v3643 = vadd.f32 %v3177, %v3642
        %v3644 = vpop.f32.mrb[0].mxu0
        %v3645 = vadd.f32 %v3181, %v3644
        %3646 = vdwg.mxu0
        %3647 = vmatprep.subr.bf16.mxu0 %v3409
        %3648 = vmatpush1.bf16.msra.mxu0 %v3408
        %3649 = vmatprep.subr.bf16.mxu0 %v3417
        %3650 = vmatpush1.bf16.msra.mxu0 %v3416
        %3651 = vmatprep.subr.bf16.mxu0 %v3425
        %3652 = vmatpush1.bf16.msra.mxu0 %v3424
        %3653 = vmatprep.subr.bf16.mxu0 %v3433
        %3654 = vmatpush1.bf16.msra.mxu0 %v3432
        %3655 = vmatprep.subr.bf16.mxu0 %v3441
        %3656 = vmatpush1.bf16.msra.mxu0 %v3440
        %3657 = vmatprep.subr.bf16.mxu0 %v3449
        %3658 = vmatpush1.bf16.msra.mxu0 %v3448
        %3659 = vmatprep.subr.bf16.mxu0 %v3457
        %3660 = vmatpush1.bf16.msra.mxu0 %v3456
        %3661 = vmatprep.subr.bf16.mxu0 %v3465
        %3662 = vmatpush1.bf16.msra.mxu0 %v3464
        %3663 = vmatprep.subr.bf16.mxu0 0
        %3664 = vmatpush1.bf16.msra.mxu0 0
        %3665 = vmatprep.subr.bf16.mxu0 0
        %3666 = vmatpush1.bf16.msra.mxu0 0
        %3667 = vmatprep.subr.bf16.mxu0 0
        %3668 = vmatpush1.bf16.msra.mxu0 0
        %3669 = vmatprep.subr.bf16.mxu0 0
        %3670 = vmatpush1.bf16.msra.mxu0 0
        %3671 = vmatprep.subr.bf16.mxu0 0
        %3672 = vmatpush1.bf16.msra.mxu0 0
        %3673 = vmatprep.subr.bf16.mxu0 0
        %3674 = vmatpush1.bf16.msra.mxu0 0
        %3675 = vmatprep.subr.bf16.mxu0 0
        %3676 = vmatpush1.bf16.msra.mxu0 0
        %3677 = vmatprep.subr.bf16.mxu0 0
        %3678 = vmatpush1.bf16.msra.mxu0 0
        %3679 = vmatprep.mubr.bf16.mxu0 0
        %3680 = vmatmul.mubr.bf16.gmra.mrb[0].mxu0 %v3100
        %v3681 = vpop.f32.mrb[0].mxu0
        %v3682 = vadd.f32 %v3185, %v3681
        %v3683 = vpop.f32.mrb[0].mxu0
        %v3684 = vadd.f32 %v3189, %v3683
        %v3685 = vpop.f32.mrb[0].mxu0
        %v3686 = vadd.f32 %v3185, %v3685
        %v3687 = vpop.f32.mrb[0].mxu0
        %v3688 = vadd.f32 %v3189, %v3687
        %3689 = vmatprep.mubr.bf16.mxu0 0
        %3690 = vmatmul.mubr.bf16.gmra.mrb[0].mxu0 %v3101
        %v3691 = vpop.f32.mrb[0].mxu0
        %v3692 = vadd.f32 %v3185, %v3691
        %v3693 = vpop.f32.mrb[0].mxu0
        %v3694 = vadd.f32 %v3189, %v3693
        %v3695 = vpop.f32.mrb[0].mxu0
        %v3696 = vadd.f32 %v3185, %v3695
        %v3697 = vpop.f32.mrb[0].mxu0
        %v3698 = vadd.f32 %v3189, %v3697
        %3699 = vmatprep.mubr.bf16.mxu0 0
        %3700 = vmatmul.mubr.bf16.gmra.mrb[0].mxu0 %v3102
        %v3701 = vpop.f32.mrb[0].mxu0
        %v3702 = vadd.f32 %v3185, %v3701
        %v3703 = vpop.f32.mrb[0].mxu0
        %v3704 = vadd.f32 %v3189, %v3703
        %v3705 = vpop.f32.mrb[0].mxu0
        %v3706 = vadd.f32 %v3185, %v3705
        %v3707 = vpop.f32.mrb[0].mxu0
        %v3708 = vadd.f32 %v3189, %v3707
        %3709 = vmatprep.mubr.bf16.mxu0 0
        %3710 = vmatmul.mubr.bf16.gmra.mrb[0].mxu0 %v3103
        %v3711 = vpop.f32.mrb[0].mxu0
        %v3712 = vadd.f32 %v3185, %v3711
        %v3713 = vpop.f32.mrb[0].mxu0
        %v3714 = vadd.f32 %v3189, %v3713
        %v3715 = vpop.f32.mrb[0].mxu0
        %v3716 = vadd.f32 %v3185, %v3715
        %v3717 = vpop.f32.mrb[0].mxu0
        %v3718 = vadd.f32 %v3189, %v3717
        %3719 = vmatprep.mubr.bf16.mxu0 0
        %3720 = vmatmul.mubr.bf16.gmra.mrb[0].mxu0 %v3104
        %v3721 = vpop.f32.mrb[0].mxu0
        %v3722 = vadd.f32 %v3185, %v3721
        %v3723 = vpop.f32.mrb[0].mxu0
        %v3724 = vadd.f32 %v3189, %v3723
        %v3725 = vpop.f32.mrb[0].mxu0
        %v3726 = vadd.f32 %v3185, %v3725
        %v3727 = vpop.f32.mrb[0].mxu0
        %v3728 = vadd.f32 %v3189, %v3727
        %3729 = vmatprep.mubr.bf16.mxu0 0
        %3730 = vmatmul.mubr.bf16.gmra.mrb[0].mxu0 %v3105
        %v3731 = vpop.f32.mrb[0].mxu0
        %v3732 = vadd.f32 %v3185, %v3731
        %v3733 = vpop.f32.mrb[0].mxu0
        %v3734 = vadd.f32 %v3189, %v3733
        %v3735 = vpop.f32.mrb[0].mxu0
        %v3736 = vadd.f32 %v3185, %v3735
        %v3737 = vpop.f32.mrb[0].mxu0
        %v3738 = vadd.f32 %v3189, %v3737
        %3739 = vmatprep.mubr.bf16.mxu0 0
        %3740 = vmatmul.mubr.bf16.gmra.mrb[0].mxu0 %v3106
        %v3741 = vpop.f32.mrb[0].mxu0
        %v3742 = vadd.f32 %v3185, %v3741
        %v3743 = vpop.f32.mrb[0].mxu0
        %v3744 = vadd.f32 %v3189, %v3743
        %v3745 = vpop.f32.mrb[0].mxu0
        %v3746 = vadd.f32 %v3185, %v3745
        %v3747 = vpop.f32.mrb[0].mxu0
        %v3748 = vadd.f32 %v3189, %v3747
        %3749 = vmatprep.mubr.bf16.mxu0 0
        %3750 = vmatmul.mubr.bf16.gmra.mrb[0].mxu0 %v3107
        %v3751 = vpop.f32.mrb[0].mxu0
        %v3752 = vadd.f32 %v3185, %v3751
        %v3753 = vpop.f32.mrb[0].mxu0
        %v3754 = vadd.f32 %v3189, %v3753
        %v3755 = vpop.f32.mrb[0].mxu0
        %v3756 = vadd.f32 %v3185, %v3755
        %v3757 = vpop.f32.mrb[0].mxu0
        %v3758 = vadd.f32 %v3189, %v3757
        %3759 = vdwg.mxu0
        %3760 = vmatprep.subr.bf16.mxu0 %v3411
        %3761 = vmatpush1.bf16.msra.mxu0 %v3410
        %3762 = vmatprep.subr.bf16.mxu0 %v3419
        %3763 = vmatpush1.bf16.msra.mxu0 %v3418
        %3764 = vmatprep.subr.bf16.mxu0 %v3427
        %3765 = vmatpush1.bf16.msra.mxu0 %v3426
        %3766 = vmatprep.subr.bf16.mxu0 %v3435
        %3767 = vmatpush1.bf16.msra.mxu0 %v3434
        %3768 = vmatprep.subr.bf16.mxu0 %v3443
        %3769 = vmatpush1.bf16.msra.mxu0 %v3442
        %3770 = vmatprep.subr.bf16.mxu0 %v3451
        %3771 = vmatpush1.bf16.msra.mxu0 %v3450
        %3772 = vmatprep.subr.bf16.mxu0 %v3459
        %3773 = vmatpush1.bf16.msra.mxu0 %v3458
        %3774 = vmatprep.subr.bf16.mxu0 %v3467
        %3775 = vmatpush1.bf16.msra.mxu0 %v3466
        %3776 = vmatprep.subr.bf16.mxu0 0
        %3777 = vmatpush1.bf16.msra.mxu0 0
        %3778 = vmatprep.subr.bf16.mxu0 0
        %3779 = vmatpush1.bf16.msra.mxu0 0
        %3780 = vmatprep.subr.bf16.mxu0 0
        %3781 = vmatpush1.bf16.msra.mxu0 0
        %3782 = vmatprep.subr.bf16.mxu0 0
        %3783 = vmatpush1.bf16.msra.mxu0 0
        %3784 = vmatprep.subr.bf16.mxu0 0
        %3785 = vmatpush1.bf16.msra.mxu0 0
        %3786 = vmatprep.subr.bf16.mxu0 0
        %3787 = vmatpush1.bf16.msra.mxu0 0
        %3788 = vmatprep.subr.bf16.mxu0 0
        %3789 = vmatpush1.bf16.msra.mxu0 0
        %3790 = vmatprep.subr.bf16.mxu0 0
        %3791 = vmatpush1.bf16.msra.mxu0 0
        %3792 = vmatprep.mubr.bf16.mxu0 0
        %3793 = vmatmul.mubr.bf16.gmra.mrb[0].mxu0 %v3100
        %v3794 = vpop.f32.mrb[0].mxu0
        %v3795 = vadd.f32 %v3193, %v3794
        %v3796 = vpop.f32.mrb[0].mxu0
        %v3797 = vadd.f32 %v3197, %v3796
        %v3798 = vpop.f32.mrb[0].mxu0
        %v3799 = vadd.f32 %v3193, %v3798
        %v3800 = vpop.f32.mrb[0].mxu0
        %v3801 = vadd.f32 %v3197, %v3800
        %3802 = vmatprep.mubr.bf16.mxu0 0
        %3803 = vmatmul.mubr.bf16.gmra.mrb[0].mxu0 %v3101
        %v3804 = vpop.f32.mrb[0].mxu0
        %v3805 = vadd.f32 %v3193, %v3804
        %v3806 = vpop.f32.mrb[0].mxu0
        %v3807 = vadd.f32 %v3197, %v3806
        %v3808 = vpop.f32.mrb[0].mxu0
        %v3809 = vadd.f32 %v3193, %v3808
        %v3810 = vpop.f32.mrb[0].mxu0
        %v3811 = vadd.f32 %v3197, %v3810
        %3812 = vmatprep.mubr.bf16.mxu0 0
        %3813 = vmatmul.mubr.bf16.gmra.mrb[0].mxu0 %v3102
        %v3814 = vpop.f32.mrb[0].mxu0
        %v3815 = vadd.f32 %v3193, %v3814
        %v3816 = vpop.f32.mrb[0].mxu0
        %v3817 = vadd.f32 %v3197, %v3816
        %v3818 = vpop.f32.mrb[0].mxu0
        %v3819 = vadd.f32 %v3193, %v3818
        %v3820 = vpop.f32.mrb[0].mxu0
        %v3821 = vadd.f32 %v3197, %v3820
        %3822 = vmatprep.mubr.bf16.mxu0 0
        %3823 = vmatmul.mubr.bf16.gmra.mrb[0].mxu0 %v3103
        %v3824 = vpop.f32.mrb[0].mxu0
        %v3825 = vadd.f32 %v3193, %v3824
        %v3826 = vpop.f32.mrb[0].mxu0
        %v3827 = vadd.f32 %v3197, %v3826
        %v3828 = vpop.f32.mrb[0].mxu0
        %v3829 = vadd.f32 %v3193, %v3828
        %v3830 = vpop.f32.mrb[0].mxu0
        %v3831 = vadd.f32 %v3197, %v3830
        %3832 = vmatprep.mubr.bf16.mxu0 0
        %3833 = vmatmul.mubr.bf16.gmra.mrb[0].mxu0 %v3104
        %v3834 = vpop.f32.mrb[0].mxu0
        %v3835 = vadd.f32 %v3193, %v3834
        %v3836 = vpop.f32.mrb[0].mxu0
        %v3837 = vadd.f32 %v3197, %v3836
        %v3838 = vpop.f32.mrb[0].mxu0
        %v3839 = vadd.f32 %v3193, %v3838
        %v3840 = vpop.f32.mrb[0].mxu0
        %v3841 = vadd.f32 %v3197, %v3840
        %3842 = vmatprep.mubr.bf16.mxu0 0
        %3843 = vmatmul.mubr.bf16.gmra.mrb[0].mxu0 %v3105
        %v3844 = vpop.f32.mrb[0].mxu0
        %v3845 = vadd.f32 %v3193, %v3844
        %v3846 = vpop.f32.mrb[0].mxu0
        %v3847 = vadd.f32 %v3197, %v3846
        %v3848 = vpop.f32.mrb[0].mxu0
        %v3849 = vadd.f32 %v3193, %v3848
        %v3850 = vpop.f32.mrb[0].mxu0
        %v3851 = vadd.f32 %v3197, %v3850
        %3852 = vmatprep.mubr.bf16.mxu0 0
        %3853 = vmatmul.mubr.bf16.gmra.mrb[0].mxu0 %v3106
        %v3854 = vpop.f32.mrb[0].mxu0
        %v3855 = vadd.f32 %v3193, %v3854
        %v3856 = vpop.f32.mrb[0].mxu0
        %v3857 = vadd.f32 %v3197, %v3856
        %v3858 = vpop.f32.mrb[0].mxu0
        %v3859 = vadd.f32 %v3193, %v3858
        %v3860 = vpop.f32.mrb[0].mxu0
        %v3861 = vadd.f32 %v3197, %v3860
        %3862 = vmatprep.mubr.bf16.mxu0 0
        %3863 = vmatmul.mubr.bf16.gmra.mrb[0].mxu0 %v3107
        %v3864 = vpop.f32.mrb[0].mxu0
        %v3865 = vadd.f32 %v3193, %v3864
        %v3866 = vpop.f32.mrb[0].mxu0
        %v3867 = vadd.f32 %v3197, %v3866
        %v3868 = vpop.f32.mrb[0].mxu0
        %v3869 = vadd.f32 %v3193, %v3868
        %v3870 = vpop.f32.mrb[0].mxu0
        %v3871 = vadd.f32 %v3197, %v3870
        %3872 = vdwg.mxu0
        %3873 = vmatprep.subr.bf16.mxu0 %v3413
        %3874 = vmatpush1.bf16.msra.mxu0 %v3412
        %3875 = vmatprep.subr.bf16.mxu0 %v3421
        %3876 = vmatpush1.bf16.msra.mxu0 %v3420
        %3877 = vmatprep.subr.bf16.mxu0 %v3429
        %3878 = vmatpush1.bf16.msra.mxu0 %v3428
        %3879 = vmatprep.subr.bf16.mxu0 %v3437
        %3880 = vmatpush1.bf16.msra.mxu0 %v3436
        %3881 = vmatprep.subr.bf16.mxu0 %v3445
        %3882 = vmatpush1.bf16.msra.mxu0 %v3444
        %3883 = vmatprep.subr.bf16.mxu0 %v3453
        %3884 = vmatpush1.bf16.msra.mxu0 %v3452
        %3885 = vmatprep.subr.bf16.mxu0 %v3461
        %3886 = vmatpush1.bf16.msra.mxu0 %v3460
        %3887 = vmatprep.subr.bf16.mxu0 %v3469
        %3888 = vmatpush1.bf16.msra.mxu0 %v3468
        %3889 = vmatprep.subr.bf16.mxu0 0
        %3890 = vmatpush1.bf16.msra.mxu0 0
        %3891 = vmatprep.subr.bf16.mxu0 0
        %3892 = vmatpush1.bf16.msra.mxu0 0
        %3893 = vmatprep.subr.bf16.mxu0 0
        %3894 = vmatpush1.bf16.msra.mxu0 0
        %3895 = vmatprep.subr.bf16.mxu0 0
        %3896 = vmatpush1.bf16.msra.mxu0 0
        %3897 = vmatprep.subr.bf16.mxu0 0
        %3898 = vmatpush1.bf16.msra.mxu0 0
        %3899 = vmatprep.subr.bf16.mxu0 0
        %3900 = vmatpush1.bf16.msra.mxu0 0
        %3901 = vmatprep.subr.bf16.mxu0 0
        %3902 = vmatpush1.bf16.msra.mxu0 0
        %3903 = vmatprep.subr.bf16.mxu0 0
        %3904 = vmatpush1.bf16.msra.mxu0 0
        %3905 = vmatprep.mubr.bf16.mxu0 0
        %3906 = vmatmul.mubr.bf16.gmra.mrb[0].mxu0 %v3100
        %v3907 = vpop.f32.mrb[0].mxu0
        %v3908 = vadd.f32 %v3201, %v3907
        %v3909 = vpop.f32.mrb[0].mxu0
        %v3910 = vadd.f32 %v3205, %v3909
        %v3911 = vpop.f32.mrb[0].mxu0
        %v3912 = vadd.f32 %v3201, %v3911
        %v3913 = vpop.f32.mrb[0].mxu0
        %v3914 = vadd.f32 %v3205, %v3913
        %3915 = vmatprep.mubr.bf16.mxu0 0
        %3916 = vmatmul.mubr.bf16.gmra.mrb[0].mxu0 %v3101
        %v3917 = vpop.f32.mrb[0].mxu0
        %v3918 = vadd.f32 %v3201, %v3917
        %v3919 = vpop.f32.mrb[0].mxu0
        %v3920 = vadd.f32 %v3205, %v3919
        %v3921 = vpop.f32.mrb[0].mxu0
        %v3922 = vadd.f32 %v3201, %v3921
        %v3923 = vpop.f32.mrb[0].mxu0
        %v3924 = vadd.f32 %v3205, %v3923
        %3925 = vmatprep.mubr.bf16.mxu0 0
        %3926 = vmatmul.mubr.bf16.gmra.mrb[0].mxu0 %v3102
        %v3927 = vpop.f32.mrb[0].mxu0
        %v3928 = vadd.f32 %v3201, %v3927
        %v3929 = vpop.f32.mrb[0].mxu0
        %v3930 = vadd.f32 %v3205, %v3929
        %v3931 = vpop.f32.mrb[0].mxu0
        %v3932 = vadd.f32 %v3201, %v3931
        %v3933 = vpop.f32.mrb[0].mxu0
        %v3934 = vadd.f32 %v3205, %v3933
        %3935 = vmatprep.mubr.bf16.mxu0 0
        %3936 = vmatmul.mubr.bf16.gmra.mrb[0].mxu0 %v3103
        %v3937 = vpop.f32.mrb[0].mxu0
        %v3938 = vadd.f32 %v3201, %v3937
        %v3939 = vpop.f32.mrb[0].mxu0
        %v3940 = vadd.f32 %v3205, %v3939
        %v3941 = vpop.f32.mrb[0].mxu0
        %v3942 = vadd.f32 %v3201, %v3941
        %v3943 = vpop.f32.mrb[0].mxu0
        %v3944 = vadd.f32 %v3205, %v3943
        %3945 = vmatprep.mubr.bf16.mxu0 0
        %3946 = vmatmul.mubr.bf16.gmra.mrb[0].mxu0 %v3104
        %v3947 = vpop.f32.mrb[0].mxu0
        %v3948 = vadd.f32 %v3201, %v3947
        %v3949 = vpop.f32.mrb[0].mxu0
        %v3950 = vadd.f32 %v3205, %v3949
        %v3951 = vpop.f32.mrb[0].mxu0
        %v3952 = vadd.f32 %v3201, %v3951
        %v3953 = vpop.f32.mrb[0].mxu0
        %v3954 = vadd.f32 %v3205, %v3953
        %3955 = vmatprep.mubr.bf16.mxu0 0
        %3956 = vmatmul.mubr.bf16.gmra.mrb[0].mxu0 %v3105
        %v3957 = vpop.f32.mrb[0].mxu0
        %v3958 = vadd.f32 %v3201, %v3957
        %v3959 = vpop.f32.mrb[0].mxu0
        %v3960 = vadd.f32 %v3205, %v3959
        %v3961 = vpop.f32.mrb[0].mxu0
        %v3962 = vadd.f32 %v3201, %v3961
        %v3963 = vpop.f32.mrb[0].mxu0
        %v3964 = vadd.f32 %v3205, %v3963
        %3965 = vmatprep.mubr.bf16.mxu0 0
        %3966 = vmatmul.mubr.bf16.gmra.mrb[0].mxu0 %v3106
        %v3967 = vpop.f32.mrb[0].mxu0
        %v3968 = vadd.f32 %v3201, %v3967
        %v3969 = vpop.f32.mrb[0].mxu0
        %v3970 = vadd.f32 %v3205, %v3969
        %v3971 = vpop.f32.mrb[0].mxu0
        %v3972 = vadd.f32 %v3201, %v3971
        %v3973 = vpop.f32.mrb[0].mxu0
        %v3974 = vadd.f32 %v3205, %v3973
        %3975 = vmatprep.mubr.bf16.mxu0 0
        %3976 = vmatmul.mubr.bf16.gmra.mrb[0].mxu0 %v3107
        %v3977 = vpop.f32.mrb[0].mxu0
        %v3978 = vadd.f32 %v3201, %v3977
        %v3979 = vpop.f32.mrb[0].mxu0
        %v3980 = vadd.f32 %v3205, %v3979
        %v3981 = vpop.f32.mrb[0].mxu0
        %v3982 = vadd.f32 %v3201, %v3981
        %v3983 = vpop.f32.mrb[0].mxu0
        %v3984 = vadd.f32 %v3205, %v3983
        %3985 = vdwg.mxu0
        %v3986 = vxor.u32 %v3569, 2147483648
        %v3987 = vxor.u32 %v3571, 2147483648
        %v3988 = vxor.u32 %v3682, 2147483648
        %v3989 = vxor.u32 %v3684, 2147483648
        %v3990 = vxor.u32 %v3795, 2147483648
        %v3991 = vxor.u32 %v3797, 2147483648
        %v3992 = vxor.u32 %v3908, 2147483648
        %v3993 = vxor.u32 %v3910, 2147483648
        %v3994 = vxor.u32 %v3573, 2147483648
        %v3995 = vxor.u32 %v3575, 2147483648
        %v3996 = vxor.u32 %v3686, 2147483648
        %v3997 = vxor.u32 %v3688, 2147483648
        %v3998 = vxor.u32 %v3799, 2147483648
        %v3999 = vxor.u32 %v3801, 2147483648
        %v4000 = vxor.u32 %v3912, 2147483648
        %v4001 = vxor.u32 %v3914, 2147483648
        %v4002 = vxor.u32 %v3579, 2147483648
        %v4003 = vxor.u32 %v3581, 2147483648
        %v4004 = vxor.u32 %v3692, 2147483648
        %v4005 = vxor.u32 %v3694, 2147483648
        %v4006 = vxor.u32 %v3805, 2147483648
        %v4007 = vxor.u32 %v3807, 2147483648
        %v4008 = vxor.u32 %v3918, 2147483648
        %v4009 = vxor.u32 %v3920, 2147483648
        %v4010 = vxor.u32 %v3583, 2147483648
        %v4011 = vxor.u32 %v3585, 2147483648
        %v4012 = vxor.u32 %v3696, 2147483648
        %v4013 = vxor.u32 %v3698, 2147483648
        %v4014 = vxor.u32 %v3809, 2147483648
        %v4015 = vxor.u32 %v3811, 2147483648
        %v4016 = vxor.u32 %v3922, 2147483648
        %v4017 = vxor.u32 %v3924, 2147483648
        %v4018 = vxor.u32 %v3589, 2147483648
        %v4019 = vxor.u32 %v3591, 2147483648
        %v4020 = vxor.u32 %v3702, 2147483648
        %v4021 = vxor.u32 %v3704, 2147483648
        %v4022 = vxor.u32 %v3815, 2147483648
        %v4023 = vxor.u32 %v3817, 2147483648
        %v4024 = vxor.u32 %v3928, 2147483648
        %v4025 = vxor.u32 %v3930, 2147483648
        %v4026 = vxor.u32 %v3593, 2147483648
        %v4027 = vxor.u32 %v3595, 2147483648
        %v4028 = vxor.u32 %v3706, 2147483648
        %v4029 = vxor.u32 %v3708, 2147483648
        %v4030 = vxor.u32 %v3819, 2147483648
        %v4031 = vxor.u32 %v3821, 2147483648
        %v4032 = vxor.u32 %v3932, 2147483648
        %v4033 = vxor.u32 %v3934, 2147483648
        %v4034 = vxor.u32 %v3599, 2147483648
        %v4035 = vxor.u32 %v3601, 2147483648
        %v4036 = vxor.u32 %v3712, 2147483648
        %v4037 = vxor.u32 %v3714, 2147483648
        %v4038 = vxor.u32 %v3825, 2147483648
        %v4039 = vxor.u32 %v3827, 2147483648
        %v4040 = vxor.u32 %v3938, 2147483648
        %v4041 = vxor.u32 %v3940, 2147483648
        %v4042 = vxor.u32 %v3603, 2147483648
        %v4043 = vxor.u32 %v3605, 2147483648
        %v4044 = vxor.u32 %v3716, 2147483648
        %v4045 = vxor.u32 %v3718, 2147483648
        %v4046 = vxor.u32 %v3829, 2147483648
        %v4047 = vxor.u32 %v3831, 2147483648
        %v4048 = vxor.u32 %v3942, 2147483648
        %v4049 = vxor.u32 %v3944, 2147483648
        %v4050 = vxor.u32 %v3609, 2147483648
        %v4051 = vxor.u32 %v3611, 2147483648
        %v4052 = vxor.u32 %v3722, 2147483648
        %v4053 = vxor.u32 %v3724, 2147483648
        %v4054 = vxor.u32 %v3835, 2147483648
        %v4055 = vxor.u32 %v3837, 2147483648
        %v4056 = vxor.u32 %v3948, 2147483648
        %v4057 = vxor.u32 %v3950, 2147483648
        %v4058 = vxor.u32 %v3613, 2147483648
        %v4059 = vxor.u32 %v3615, 2147483648
        %v4060 = vxor.u32 %v3726, 2147483648
        %v4061 = vxor.u32 %v3728, 2147483648
        %v4062 = vxor.u32 %v3839, 2147483648
        %v4063 = vxor.u32 %v3841, 2147483648
        %v4064 = vxor.u32 %v3952, 2147483648
        %v4065 = vxor.u32 %v3954, 2147483648
        %v4066 = vxor.u32 %v3619, 2147483648
        %v4067 = vxor.u32 %v3621, 2147483648
        %v4068 = vxor.u32 %v3732, 2147483648
        %v4069 = vxor.u32 %v3734, 2147483648
        %v4070 = vxor.u32 %v3845, 2147483648
        %v4071 = vxor.u32 %v3847, 2147483648
        %v4072 = vxor.u32 %v3958, 2147483648
        %v4073 = vxor.u32 %v3960, 2147483648
        %v4074 = vxor.u32 %v3623, 2147483648
        %v4075 = vxor.u32 %v3625, 2147483648
        %v4076 = vxor.u32 %v3736, 2147483648
        %v4077 = vxor.u32 %v3738, 2147483648
        %v4078 = vxor.u32 %v3849, 2147483648
        %v4079 = vxor.u32 %v3851, 2147483648
        %v4080 = vxor.u32 %v3962, 2147483648
        %v4081 = vxor.u32 %v3964, 2147483648
        %v4082 = vxor.u32 %v3629, 2147483648
        %v4083 = vxor.u32 %v3631, 2147483648
        %v4084 = vxor.u32 %v3742, 2147483648
        %v4085 = vxor.u32 %v3744, 2147483648
        %v4086 = vxor.u32 %v3855, 2147483648
        %v4087 = vxor.u32 %v3857, 2147483648
        %v4088 = vxor.u32 %v3968, 2147483648
        %v4089 = vxor.u32 %v3970, 2147483648
        %v4090 = vxor.u32 %v3633, 2147483648
        %v4091 = vxor.u32 %v3635, 2147483648
        %v4092 = vxor.u32 %v3746, 2147483648
        %v4093 = vxor.u32 %v3748, 2147483648
        %v4094 = vxor.u32 %v3859, 2147483648
        %v4095 = vxor.u32 %v3861, 2147483648
        %v4096 = vxor.u32 %v3972, 2147483648
        %v4097 = vxor.u32 %v3974, 2147483648
        %v4098 = vxor.u32 %v3639, 2147483648
        %v4099 = vxor.u32 %v3641, 2147483648
        %v4100 = vxor.u32 %v3752, 2147483648
        %v4101 = vxor.u32 %v3754, 2147483648
        %v4102 = vxor.u32 %v3865, 2147483648
        %v4103 = vxor.u32 %v3867, 2147483648
        %v4104 = vxor.u32 %v3978, 2147483648
        %v4105 = vxor.u32 %v3980, 2147483648
        %v4106 = vxor.u32 %v3643, 2147483648
        %v4107 = vxor.u32 %v3645, 2147483648
        %v4108 = vxor.u32 %v3756, 2147483648
        %v4109 = vxor.u32 %v3758, 2147483648
        %v4110 = vxor.u32 %v3869, 2147483648
        %v4111 = vxor.u32 %v3871, 2147483648
        %v4112 = vxor.u32 %v3982, 2147483648
        %v4113 = vxor.u32 %v3984, 2147483648
        %v4114 = vmul.f32 %v3986, 1.442695
        %v4115 = vpow.pop %v4114
        %v4116 = vmul.f32 %v3987, 1.442695
        %v4117 = vpow.pop %v4116
        %v4118 = vmul.f32 %v3988, 1.442695
        %v4119 = vpow.pop %v4118
        %v4120 = vmul.f32 %v3989, 1.442695
        %v4121 = vpow.pop %v4120
        %v4122 = vmul.f32 %v3990, 1.442695
        %v4123 = vpow.pop %v4122
        %v4124 = vmul.f32 %v3991, 1.442695
        %v4125 = vpow.pop %v4124
        %v4126 = vmul.f32 %v3992, 1.442695
        %v4127 = vpow.pop %v4126
        %v4128 = vmul.f32 %v3993, 1.442695
        %v4129 = vpow.pop %v4128
        %v4130 = vmul.f32 %v3994, 1.442695
        %v4131 = vpow.pop %v4130
        %v4132 = vmul.f32 %v3995, 1.442695
        %v4133 = vpow.pop %v4132
        %v4134 = vmul.f32 %v3996, 1.442695
        %v4135 = vpow.pop %v4134
        %v4136 = vmul.f32 %v3997, 1.442695
        %v4137 = vpow.pop %v4136
        %v4138 = vmul.f32 %v3998, 1.442695
        %v4139 = vpow.pop %v4138
        %v4140 = vmul.f32 %v3999, 1.442695
        %v4141 = vpow.pop %v4140
        %v4142 = vmul.f32 %v4000, 1.442695
        %v4143 = vpow.pop %v4142
        %v4144 = vmul.f32 %v4001, 1.442695
        %v4145 = vpow.pop %v4144
        %v4146 = vmul.f32 %v4002, 1.442695
        %v4147 = vpow.pop %v4146
        %v4148 = vmul.f32 %v4003, 1.442695
        %v4149 = vpow.pop %v4148
        %v4150 = vmul.f32 %v4004, 1.442695
        %v4151 = vpow.pop %v4150
        %v4152 = vmul.f32 %v4005, 1.442695
        %v4153 = vpow.pop %v4152
        %v4154 = vmul.f32 %v4006, 1.442695
        %v4155 = vpow.pop %v4154
        %v4156 = vmul.f32 %v4007, 1.442695
        %v4157 = vpow.pop %v4156
        %v4158 = vmul.f32 %v4008, 1.442695
        %v4159 = vpow.pop %v4158
        %v4160 = vmul.f32 %v4009, 1.442695
        %v4161 = vpow.pop %v4160
        %v4162 = vmul.f32 %v4010, 1.442695
        %v4163 = vpow.pop %v4162
        %v4164 = vmul.f32 %v4011, 1.442695
        %v4165 = vpow.pop %v4164
        %v4166 = vmul.f32 %v4012, 1.442695
        %v4167 = vpow.pop %v4166
        %v4168 = vmul.f32 %v4013, 1.442695
        %v4169 = vpow.pop %v4168
        %v4170 = vmul.f32 %v4014, 1.442695
        %v4171 = vpow.pop %v4170
        %v4172 = vmul.f32 %v4015, 1.442695
        %v4173 = vpow.pop %v4172
        %v4174 = vmul.f32 %v4016, 1.442695
        %v4175 = vpow.pop %v4174
        %v4176 = vmul.f32 %v4017, 1.442695
        %v4177 = vpow.pop %v4176
        %v4178 = vmul.f32 %v4018, 1.442695
        %v4179 = vpow.pop %v4178
        %v4180 = vmul.f32 %v4019, 1.442695
        %v4181 = vpow.pop %v4180
        %v4182 = vmul.f32 %v4020, 1.442695
        %v4183 = vpow.pop %v4182
        %v4184 = vmul.f32 %v4021, 1.442695
        %v4185 = vpow.pop %v4184
        %v4186 = vmul.f32 %v4022, 1.442695
        %v4187 = vpow.pop %v4186
        %v4188 = vmul.f32 %v4023, 1.442695
        %v4189 = vpow.pop %v4188
        %v4190 = vmul.f32 %v4024, 1.442695
        %v4191 = vpow.pop %v4190
        %v4192 = vmul.f32 %v4025, 1.442695
        %v4193 = vpow.pop %v4192
        %v4194 = vmul.f32 %v4026, 1.442695
        %v4195 = vpow.pop %v4194
        %v4196 = vmul.f32 %v4027, 1.442695
        %v4197 = vpow.pop %v4196
        %v4198 = vmul.f32 %v4028, 1.442695
        %v4199 = vpow.pop %v4198
        %v4200 = vmul.f32 %v4029, 1.442695
        %v4201 = vpow.pop %v4200
        %v4202 = vmul.f32 %v4030, 1.442695
        %v4203 = vpow.pop %v4202
        %v4204 = vmul.f32 %v4031, 1.442695
        %v4205 = vpow.pop %v4204
        %v4206 = vmul.f32 %v4032, 1.442695
        %v4207 = vpow.pop %v4206
        %v4208 = vmul.f32 %v4033, 1.442695
        %v4209 = vpow.pop %v4208
        %v4210 = vmul.f32 %v4034, 1.442695
        %v4211 = vpow.pop %v4210
        %v4212 = vmul.f32 %v4035, 1.442695
        %v4213 = vpow.pop %v4212
        %v4214 = vmul.f32 %v4036, 1.442695
        %v4215 = vpow.pop %v4214
        %v4216 = vmul.f32 %v4037, 1.442695
        %v4217 = vpow.pop %v4216
        %v4218 = vmul.f32 %v4038, 1.442695
        %v4219 = vpow.pop %v4218
        %v4220 = vmul.f32 %v4039, 1.442695
        %v4221 = vpow.pop %v4220
        %v4222 = vmul.f32 %v4040, 1.442695
        %v4223 = vpow.pop %v4222
        %v4224 = vmul.f32 %v4041, 1.442695
        %v4225 = vpow.pop %v4224
        %v4226 = vmul.f32 %v4042, 1.442695
        %v4227 = vpow.pop %v4226
        %v4228 = vmul.f32 %v4043, 1.442695
        %v4229 = vpow.pop %v4228
        %v4230 = vmul.f32 %v4044, 1.442695
        %v4231 = vpow.pop %v4230
        %v4232 = vmul.f32 %v4045, 1.442695
        %v4233 = vpow.pop %v4232
        %v4234 = vmul.f32 %v4046, 1.442695
        %v4235 = vpow.pop %v4234
        %v4236 = vmul.f32 %v4047, 1.442695
        %v4237 = vpow.pop %v4236
        %v4238 = vmul.f32 %v4048, 1.442695
        %v4239 = vpow.pop %v4238
        %v4240 = vmul.f32 %v4049, 1.442695
        %v4241 = vpow.pop %v4240
        %v4242 = vmul.f32 %v4050, 1.442695
        %v4243 = vpow.pop %v4242
        %v4244 = vmul.f32 %v4051, 1.442695
        %v4245 = vpow.pop %v4244
        %v4246 = vmul.f32 %v4052, 1.442695
        %v4247 = vpow.pop %v4246
        %v4248 = vmul.f32 %v4053, 1.442695
        %v4249 = vpow.pop %v4248
        %v4250 = vmul.f32 %v4054, 1.442695
        %v4251 = vpow.pop %v4250
        %v4252 = vmul.f32 %v4055, 1.442695
        %v4253 = vpow.pop %v4252
        %v4254 = vmul.f32 %v4056, 1.442695
        %v4255 = vpow.pop %v4254
        %v4256 = vmul.f32 %v4057, 1.442695
        %v4257 = vpow.pop %v4256
        %v4258 = vmul.f32 %v4058, 1.442695
        %v4259 = vpow.pop %v4258
        %v4260 = vmul.f32 %v4059, 1.442695
        %v4261 = vpow.pop %v4260
        %v4262 = vmul.f32 %v4060, 1.442695
        %v4263 = vpow.pop %v4262
        %v4264 = vmul.f32 %v4061, 1.442695
        %v4265 = vpow.pop %v4264
        %v4266 = vmul.f32 %v4062, 1.442695
        %v4267 = vpow.pop %v4266
        %v4268 = vmul.f32 %v4063, 1.442695
        %v4269 = vpow.pop %v4268
        %v4270 = vmul.f32 %v4064, 1.442695
        %v4271 = vpow.pop %v4270
        %v4272 = vmul.f32 %v4065, 1.442695
        %v4273 = vpow.pop %v4272
        %v4274 = vmul.f32 %v4066, 1.442695
        %v4275 = vpow.pop %v4274
        %v4276 = vmul.f32 %v4067, 1.442695
        %v4277 = vpow.pop %v4276
        %v4278 = vmul.f32 %v4068, 1.442695
        %v4279 = vpow.pop %v4278
        %v4280 = vmul.f32 %v4069, 1.442695
        %v4281 = vpow.pop %v4280
        %v4282 = vmul.f32 %v4070, 1.442695
        %v4283 = vpow.pop %v4282
        %v4284 = vmul.f32 %v4071, 1.442695
        %v4285 = vpow.pop %v4284
        %v4286 = vmul.f32 %v4072, 1.442695
        %v4287 = vpow.pop %v4286
        %v4288 = vmul.f32 %v4073, 1.442695
        %v4289 = vpow.pop %v4288
        %v4290 = vmul.f32 %v4074, 1.442695
        %v4291 = vpow.pop %v4290
        %v4292 = vmul.f32 %v4075, 1.442695
        %v4293 = vpow.pop %v4292
        %v4294 = vmul.f32 %v4076, 1.442695
        %v4295 = vpow.pop %v4294
        %v4296 = vmul.f32 %v4077, 1.442695
        %v4297 = vpow.pop %v4296
        %v4298 = vmul.f32 %v4078, 1.442695
        %v4299 = vpow.pop %v4298
        %v4300 = vmul.f32 %v4079, 1.442695
        %v4301 = vpow.pop %v4300
        %v4302 = vmul.f32 %v4080, 1.442695
        %v4303 = vpow.pop %v4302
        %v4304 = vmul.f32 %v4081, 1.442695
        %v4305 = vpow.pop %v4304
        %v4306 = vmul.f32 %v4082, 1.442695
        %v4307 = vpow.pop %v4306
        %v4308 = vmul.f32 %v4083, 1.442695
        %v4309 = vpow.pop %v4308
        %v4310 = vmul.f32 %v4084, 1.442695
        %v4311 = vpow.pop %v4310
        %v4312 = vmul.f32 %v4085, 1.442695
        %v4313 = vpow.pop %v4312
        %v4314 = vmul.f32 %v4086, 1.442695
        %v4315 = vpow.pop %v4314
        %v4316 = vmul.f32 %v4087, 1.442695
        %v4317 = vpow.pop %v4316
        %v4318 = vmul.f32 %v4088, 1.442695
        %v4319 = vpow.pop %v4318
        %v4320 = vmul.f32 %v4089, 1.442695
        %v4321 = vpow.pop %v4320
        %v4322 = vmul.f32 %v4090, 1.442695
        %v4323 = vpow.pop %v4322
        %v4324 = vmul.f32 %v4091, 1.442695
        %v4325 = vpow.pop %v4324
        %v4326 = vmul.f32 %v4092, 1.442695
        %v4327 = vpow.pop %v4326
        %v4328 = vmul.f32 %v4093, 1.442695
        %v4329 = vpow.pop %v4328
        %v4330 = vmul.f32 %v4094, 1.442695
        %v4331 = vpow.pop %v4330
        %v4332 = vmul.f32 %v4095, 1.442695
        %v4333 = vpow.pop %v4332
        %v4334 = vmul.f32 %v4096, 1.442695
        %v4335 = vpow.pop %v4334
        %v4336 = vmul.f32 %v4097, 1.442695
        %v4337 = vpow.pop %v4336
        %v4338 = vmul.f32 %v4098, 1.442695
        %v4339 = vpow.pop %v4338
        %v4340 = vmul.f32 %v4099, 1.442695
        %v4341 = vpow.pop %v4340
        %v4342 = vmul.f32 %v4100, 1.442695
        %v4343 = vpow.pop %v4342
        %v4344 = vmul.f32 %v4101, 1.442695
        %v4345 = vpow.pop %v4344
        %v4346 = vmul.f32 %v4102, 1.442695
        %v4347 = vpow.pop %v4346
        %v4348 = vmul.f32 %v4103, 1.442695
        %v4349 = vpow.pop %v4348
        %v4350 = vmul.f32 %v4104, 1.442695
        %v4351 = vpow.pop %v4350
        %v4352 = vmul.f32 %v4105, 1.442695
        %v4353 = vpow.pop %v4352
        %v4354 = vmul.f32 %v4106, 1.442695
        %v4355 = vpow.pop %v4354
        %v4356 = vmul.f32 %v4107, 1.442695
        %v4357 = vpow.pop %v4356
        %v4358 = vmul.f32 %v4108, 1.442695
        %v4359 = vpow.pop %v4358
        %v4360 = vmul.f32 %v4109, 1.442695
        %v4361 = vpow.pop %v4360
        %v4362 = vmul.f32 %v4110, 1.442695
        %v4363 = vpow.pop %v4362
        %v4364 = vmul.f32 %v4111, 1.442695
        %v4365 = vpow.pop %v4364
        %v4366 = vmul.f32 %v4112, 1.442695
        %v4367 = vpow.pop %v4366
        %v4368 = vmul.f32 %v4113, 1.442695
        %v4369 = vpow.pop %v4368
        %v4370 = vadd.f32 %v4115, 1.0
        %v4371 = vadd.f32 %v4117, 1.0
        %v4372 = vadd.f32 %v4119, 1.0
        %v4373 = vadd.f32 %v4121, 1.0
        %v4374 = vadd.f32 %v4123, 1.0
        %v4375 = vadd.f32 %v4125, 1.0
        %v4376 = vadd.f32 %v4127, 1.0
        %v4377 = vadd.f32 %v4129, 1.0
        %v4378 = vadd.f32 %v4131, 1.0
        %v4379 = vadd.f32 %v4133, 1.0
        %v4380 = vadd.f32 %v4135, 1.0
        %v4381 = vadd.f32 %v4137, 1.0
        %v4382 = vadd.f32 %v4139, 1.0
        %v4383 = vadd.f32 %v4141, 1.0
        %v4384 = vadd.f32 %v4143, 1.0
        %v4385 = vadd.f32 %v4145, 1.0
        %v4386 = vadd.f32 %v4147, 1.0
        %v4387 = vadd.f32 %v4149, 1.0
        %v4388 = vadd.f32 %v4151, 1.0
        %v4389 = vadd.f32 %v4153, 1.0
        %v4390 = vadd.f32 %v4155, 1.0
        %v4391 = vadd.f32 %v4157, 1.0
        %v4392 = vadd.f32 %v4159, 1.0
        %v4393 = vadd.f32 %v4161, 1.0
        %v4394 = vadd.f32 %v4163, 1.0
        %v4395 = vadd.f32 %v4165, 1.0
        %v4396 = vadd.f32 %v4167, 1.0
        %v4397 = vadd.f32 %v4169, 1.0
        %v4398 = vadd.f32 %v4171, 1.0
        %v4399 = vadd.f32 %v4173, 1.0
        %v4400 = vadd.f32 %v4175, 1.0
        %v4401 = vadd.f32 %v4177, 1.0
        %v4402 = vadd.f32 %v4179, 1.0
        %v4403 = vadd.f32 %v4181, 1.0
        %v4404 = vadd.f32 %v4183, 1.0
        %v4405 = vadd.f32 %v4185, 1.0
        %v4406 = vadd.f32 %v4187, 1.0
        %v4407 = vadd.f32 %v4189, 1.0
        %v4408 = vadd.f32 %v4191, 1.0
        %v4409 = vadd.f32 %v4193, 1.0
        %v4410 = vadd.f32 %v4195, 1.0
        %v4411 = vadd.f32 %v4197, 1.0
        %v4412 = vadd.f32 %v4199, 1.0
        %v4413 = vadd.f32 %v4201, 1.0
        %v4414 = vadd.f32 %v4203, 1.0
        %v4415 = vadd.f32 %v4205, 1.0
        %v4416 = vadd.f32 %v4207, 1.0
        %v4417 = vadd.f32 %v4209, 1.0
        %v4418 = vadd.f32 %v4211, 1.0
        %v4419 = vadd.f32 %v4213, 1.0
        %v4420 = vadd.f32 %v4215, 1.0
        %v4421 = vadd.f32 %v4217, 1.0
        %v4422 = vadd.f32 %v4219, 1.0
        %v4423 = vadd.f32 %v4221, 1.0
        %v4424 = vadd.f32 %v4223, 1.0
        %v4425 = vadd.f32 %v4225, 1.0
        %v4426 = vadd.f32 %v4227, 1.0
        %v4427 = vadd.f32 %v4229, 1.0
        %v4428 = vadd.f32 %v4231, 1.0
        %v4429 = vadd.f32 %v4233, 1.0
        %v4430 = vadd.f32 %v4235, 1.0
        %v4431 = vadd.f32 %v4237, 1.0
        %v4432 = vadd.f32 %v4239, 1.0
        %v4433 = vadd.f32 %v4241, 1.0
        %v4434 = vadd.f32 %v4243, 1.0
        %v4435 = vadd.f32 %v4245, 1.0
        %v4436 = vadd.f32 %v4247, 1.0
        %v4437 = vadd.f32 %v4249, 1.0
        %v4438 = vadd.f32 %v4251, 1.0
        %v4439 = vadd.f32 %v4253, 1.0
        %v4440 = vadd.f32 %v4255, 1.0
        %v4441 = vadd.f32 %v4257, 1.0
        %v4442 = vadd.f32 %v4259, 1.0
        %v4443 = vadd.f32 %v4261, 1.0
        %v4444 = vadd.f32 %v4263, 1.0
        %v4445 = vadd.f32 %v4265, 1.0
        %v4446 = vadd.f32 %v4267, 1.0
        %v4447 = vadd.f32 %v4269, 1.0
        %v4448 = vadd.f32 %v4271, 1.0
        %v4449 = vadd.f32 %v4273, 1.0
        %v4450 = vadd.f32 %v4275, 1.0
        %v4451 = vadd.f32 %v4277, 1.0
        %v4452 = vadd.f32 %v4279, 1.0
        %v4453 = vadd.f32 %v4281, 1.0
        %v4454 = vadd.f32 %v4283, 1.0
        %v4455 = vadd.f32 %v4285, 1.0
        %v4456 = vadd.f32 %v4287, 1.0
        %v4457 = vadd.f32 %v4289, 1.0
        %v4458 = vadd.f32 %v4291, 1.0
        %v4459 = vadd.f32 %v4293, 1.0
        %v4460 = vadd.f32 %v4295, 1.0
        %v4461 = vadd.f32 %v4297, 1.0
        %v4462 = vadd.f32 %v4299, 1.0
        %v4463 = vadd.f32 %v4301, 1.0
        %v4464 = vadd.f32 %v4303, 1.0
        %v4465 = vadd.f32 %v4305, 1.0
        %v4466 = vadd.f32 %v4307, 1.0
        %v4467 = vadd.f32 %v4309, 1.0
        %v4468 = vadd.f32 %v4311, 1.0
        %v4469 = vadd.f32 %v4313, 1.0
        %v4470 = vadd.f32 %v4315, 1.0
        %v4471 = vadd.f32 %v4317, 1.0
        %v4472 = vadd.f32 %v4319, 1.0
        %v4473 = vadd.f32 %v4321, 1.0
        %v4474 = vadd.f32 %v4323, 1.0
        %v4475 = vadd.f32 %v4325, 1.0
        %v4476 = vadd.f32 %v4327, 1.0
        %v4477 = vadd.f32 %v4329, 1.0
        %v4478 = vadd.f32 %v4331, 1.0
        %v4479 = vadd.f32 %v4333, 1.0
        %v4480 = vadd.f32 %v4335, 1.0
        %v4481 = vadd.f32 %v4337, 1.0
        %v4482 = vadd.f32 %v4339, 1.0
        %v4483 = vadd.f32 %v4341, 1.0
        %v4484 = vadd.f32 %v4343, 1.0
        %v4485 = vadd.f32 %v4345, 1.0
        %v4486 = vadd.f32 %v4347, 1.0
        %v4487 = vadd.f32 %v4349, 1.0
        %v4488 = vadd.f32 %v4351, 1.0
        %v4489 = vadd.f32 %v4353, 1.0
        %v4490 = vadd.f32 %v4355, 1.0
        %v4491 = vadd.f32 %v4357, 1.0
        %v4492 = vadd.f32 %v4359, 1.0
        %v4493 = vadd.f32 %v4361, 1.0
        %v4494 = vadd.f32 %v4363, 1.0
        %v4495 = vadd.f32 %v4365, 1.0
        %v4496 = vadd.f32 %v4367, 1.0
        %v4497 = vadd.f32 %v4369, 1.0
        %v4498 = vrcp.pop %v4370
        %v4499 = vmul.f32 1.0, %v4498
        %v4500 = vrcp.pop %v4371
        %v4501 = vmul.f32 1.0, %v4500
        %v4502 = vrcp.pop %v4372
        %v4503 = vmul.f32 1.0, %v4502
        %v4504 = vrcp.pop %v4373
        %v4505 = vmul.f32 1.0, %v4504
        %v4506 = vrcp.pop %v4374
        %v4507 = vmul.f32 1.0, %v4506
        %v4508 = vrcp.pop %v4375
        %v4509 = vmul.f32 1.0, %v4508
        %v4510 = vrcp.pop %v4376
        %v4511 = vmul.f32 1.0, %v4510
        %v4512 = vrcp.pop %v4377
        %v4513 = vmul.f32 1.0, %v4512
        %v4514 = vrcp.pop %v4378
        %v4515 = vmul.f32 1.0, %v4514
        %v4516 = vrcp.pop %v4379
        %v4517 = vmul.f32 1.0, %v4516
        %v4518 = vrcp.pop %v4380
        %v4519 = vmul.f32 1.0, %v4518
        %v4520 = vrcp.pop %v4381
        %v4521 = vmul.f32 1.0, %v4520
        %v4522 = vrcp.pop %v4382
        %v4523 = vmul.f32 1.0, %v4522
        %v4524 = vrcp.pop %v4383
        %v4525 = vmul.f32 1.0, %v4524
        %v4526 = vrcp.pop %v4384
        %v4527 = vmul.f32 1.0, %v4526
        %v4528 = vrcp.pop %v4385
        %v4529 = vmul.f32 1.0, %v4528
        %v4530 = vrcp.pop %v4386
        %v4531 = vmul.f32 1.0, %v4530
        %v4532 = vrcp.pop %v4387
        %v4533 = vmul.f32 1.0, %v4532
        %v4534 = vrcp.pop %v4388
        %v4535 = vmul.f32 1.0, %v4534
        %v4536 = vrcp.pop %v4389
        %v4537 = vmul.f32 1.0, %v4536
        %v4538 = vrcp.pop %v4390
        %v4539 = vmul.f32 1.0, %v4538
        %v4540 = vrcp.pop %v4391
        %v4541 = vmul.f32 1.0, %v4540
        %v4542 = vrcp.pop %v4392
        %v4543 = vmul.f32 1.0, %v4542
        %v4544 = vrcp.pop %v4393
        %v4545 = vmul.f32 1.0, %v4544
        %v4546 = vrcp.pop %v4394
        %v4547 = vmul.f32 1.0, %v4546
        %v4548 = vrcp.pop %v4395
        %v4549 = vmul.f32 1.0, %v4548
        %v4550 = vrcp.pop %v4396
        %v4551 = vmul.f32 1.0, %v4550
        %v4552 = vrcp.pop %v4397
        %v4553 = vmul.f32 1.0, %v4552
        %v4554 = vrcp.pop %v4398
        %v4555 = vmul.f32 1.0, %v4554
        %v4556 = vrcp.pop %v4399
        %v4557 = vmul.f32 1.0, %v4556
        %v4558 = vrcp.pop %v4400
        %v4559 = vmul.f32 1.0, %v4558
        %v4560 = vrcp.pop %v4401
        %v4561 = vmul.f32 1.0, %v4560
        %v4562 = vrcp.pop %v4402
        %v4563 = vmul.f32 1.0, %v4562
        %v4564 = vrcp.pop %v4403
        %v4565 = vmul.f32 1.0, %v4564
        %v4566 = vrcp.pop %v4404
        %v4567 = vmul.f32 1.0, %v4566
        %v4568 = vrcp.pop %v4405
        %v4569 = vmul.f32 1.0, %v4568
        %v4570 = vrcp.pop %v4406
        %v4571 = vmul.f32 1.0, %v4570
        %v4572 = vrcp.pop %v4407
        %v4573 = vmul.f32 1.0, %v4572
        %v4574 = vrcp.pop %v4408
        %v4575 = vmul.f32 1.0, %v4574
        %v4576 = vrcp.pop %v4409
        %v4577 = vmul.f32 1.0, %v4576
        %v4578 = vrcp.pop %v4410
        %v4579 = vmul.f32 1.0, %v4578
        %v4580 = vrcp.pop %v4411
        %v4581 = vmul.f32 1.0, %v4580
        %v4582 = vrcp.pop %v4412
        %v4583 = vmul.f32 1.0, %v4582
        %v4584 = vrcp.pop %v4413
        %v4585 = vmul.f32 1.0, %v4584
        %v4586 = vrcp.pop %v4414
        %v4587 = vmul.f32 1.0, %v4586
        %v4588 = vrcp.pop %v4415
        %v4589 = vmul.f32 1.0, %v4588
        %v4590 = vrcp.pop %v4416
        %v4591 = vmul.f32 1.0, %v4590
        %v4592 = vrcp.pop %v4417
        %v4593 = vmul.f32 1.0, %v4592
        %v4594 = vrcp.pop %v4418
        %v4595 = vmul.f32 1.0, %v4594
        %v4596 = vrcp.pop %v4419
        %v4597 = vmul.f32 1.0, %v4596
        %v4598 = vrcp.pop %v4420
        %v4599 = vmul.f32 1.0, %v4598
        %v4600 = vrcp.pop %v4421
        %v4601 = vmul.f32 1.0, %v4600
        %v4602 = vrcp.pop %v4422
        %v4603 = vmul.f32 1.0, %v4602
        %v4604 = vrcp.pop %v4423
        %v4605 = vmul.f32 1.0, %v4604
        %v4606 = vrcp.pop %v4424
        %v4607 = vmul.f32 1.0, %v4606
        %v4608 = vrcp.pop %v4425
        %v4609 = vmul.f32 1.0, %v4608
        %v4610 = vrcp.pop %v4426
        %v4611 = vmul.f32 1.0, %v4610
        %v4612 = vrcp.pop %v4427
        %v4613 = vmul.f32 1.0, %v4612
        %v4614 = vrcp.pop %v4428
        %v4615 = vmul.f32 1.0, %v4614
        %v4616 = vrcp.pop %v4429
        %v4617 = vmul.f32 1.0, %v4616
        %v4618 = vrcp.pop %v4430
        %v4619 = vmul.f32 1.0, %v4618
        %v4620 = vrcp.pop %v4431
        %v4621 = vmul.f32 1.0, %v4620
        %v4622 = vrcp.pop %v4432
        %v4623 = vmul.f32 1.0, %v4622
        %v4624 = vrcp.pop %v4433
        %v4625 = vmul.f32 1.0, %v4624
        %v4626 = vrcp.pop %v4434
        %v4627 = vmul.f32 1.0, %v4626
        %v4628 = vrcp.pop %v4435
        %v4629 = vmul.f32 1.0, %v4628
        %v4630 = vrcp.pop %v4436
        %v4631 = vmul.f32 1.0, %v4630
        %v4632 = vrcp.pop %v4437
        %v4633 = vmul.f32 1.0, %v4632
        %v4634 = vrcp.pop %v4438
        %v4635 = vmul.f32 1.0, %v4634
        %v4636 = vrcp.pop %v4439
        %v4637 = vmul.f32 1.0, %v4636
        %v4638 = vrcp.pop %v4440
        %v4639 = vmul.f32 1.0, %v4638
        %v4640 = vrcp.pop %v4441
        %v4641 = vmul.f32 1.0, %v4640
        %v4642 = vrcp.pop %v4442
        %v4643 = vmul.f32 1.0, %v4642
        %v4644 = vrcp.pop %v4443
        %v4645 = vmul.f32 1.0, %v4644
        %v4646 = vrcp.pop %v4444
        %v4647 = vmul.f32 1.0, %v4646
        %v4648 = vrcp.pop %v4445
        %v4649 = vmul.f32 1.0, %v4648
        %v4650 = vrcp.pop %v4446
        %v4651 = vmul.f32 1.0, %v4650
        %v4652 = vrcp.pop %v4447
        %v4653 = vmul.f32 1.0, %v4652
        %v4654 = vrcp.pop %v4448
        %v4655 = vmul.f32 1.0, %v4654
        %v4656 = vrcp.pop %v4449
        %v4657 = vmul.f32 1.0, %v4656
        %v4658 = vrcp.pop %v4450
        %v4659 = vmul.f32 1.0, %v4658
        %v4660 = vrcp.pop %v4451
        %v4661 = vmul.f32 1.0, %v4660
        %v4662 = vrcp.pop %v4452
        %v4663 = vmul.f32 1.0, %v4662
        %v4664 = vrcp.pop %v4453
        %v4665 = vmul.f32 1.0, %v4664
        %v4666 = vrcp.pop %v4454
        %v4667 = vmul.f32 1.0, %v4666
        %v4668 = vrcp.pop %v4455
        %v4669 = vmul.f32 1.0, %v4668
        %v4670 = vrcp.pop %v4456
        %v4671 = vmul.f32 1.0, %v4670
        %v4672 = vrcp.pop %v4457
        %v4673 = vmul.f32 1.0, %v4672
        %v4674 = vrcp.pop %v4458
        %v4675 = vmul.f32 1.0, %v4674
        %v4676 = vrcp.pop %v4459
        %v4677 = vmul.f32 1.0, %v4676
        %v4678 = vrcp.pop %v4460
        %v4679 = vmul.f32 1.0, %v4678
        %v4680 = vrcp.pop %v4461
        %v4681 = vmul.f32 1.0, %v4680
        %v4682 = vrcp.pop %v4462
        %v4683 = vmul.f32 1.0, %v4682
        %v4684 = vrcp.pop %v4463
        %v4685 = vmul.f32 1.0, %v4684
        %v4686 = vrcp.pop %v4464
        %v4687 = vmul.f32 1.0, %v4686
        %v4688 = vrcp.pop %v4465
        %v4689 = vmul.f32 1.0, %v4688
        %v4690 = vrcp.pop %v4466
        %v4691 = vmul.f32 1.0, %v4690
        %v4692 = vrcp.pop %v4467
        %v4693 = vmul.f32 1.0, %v4692
        %v4694 = vrcp.pop %v4468
        %v4695 = vmul.f32 1.0, %v4694
        %v4696 = vrcp.pop %v4469
        %v4697 = vmul.f32 1.0, %v4696
        %v4698 = vrcp.pop %v4470
        %v4699 = vmul.f32 1.0, %v4698
        %v4700 = vrcp.pop %v4471
        %v4701 = vmul.f32 1.0, %v4700
        %v4702 = vrcp.pop %v4472
        %v4703 = vmul.f32 1.0, %v4702
        %v4704 = vrcp.pop %v4473
        %v4705 = vmul.f32 1.0, %v4704
        %v4706 = vrcp.pop %v4474
        %v4707 = vmul.f32 1.0, %v4706
        %v4708 = vrcp.pop %v4475
        %v4709 = vmul.f32 1.0, %v4708
        %v4710 = vrcp.pop %v4476
        %v4711 = vmul.f32 1.0, %v4710
        %v4712 = vrcp.pop %v4477
        %v4713 = vmul.f32 1.0, %v4712
        %v4714 = vrcp.pop %v4478
        %v4715 = vmul.f32 1.0, %v4714
        %v4716 = vrcp.pop %v4479
        %v4717 = vmul.f32 1.0, %v4716
        %v4718 = vrcp.pop %v4480
        %v4719 = vmul.f32 1.0, %v4718
        %v4720 = vrcp.pop %v4481
        %v4721 = vmul.f32 1.0, %v4720
        %v4722 = vrcp.pop %v4482
        %v4723 = vmul.f32 1.0, %v4722
        %v4724 = vrcp.pop %v4483
        %v4725 = vmul.f32 1.0, %v4724
        %v4726 = vrcp.pop %v4484
        %v4727 = vmul.f32 1.0, %v4726
        %v4728 = vrcp.pop %v4485
        %v4729 = vmul.f32 1.0, %v4728
        %v4730 = vrcp.pop %v4486
        %v4731 = vmul.f32 1.0, %v4730
        %v4732 = vrcp.pop %v4487
        %v4733 = vmul.f32 1.0, %v4732
        %v4734 = vrcp.pop %v4488
        %v4735 = vmul.f32 1.0, %v4734
        %v4736 = vrcp.pop %v4489
        %v4737 = vmul.f32 1.0, %v4736
        %v4738 = vrcp.pop %v4490
        %v4739 = vmul.f32 1.0, %v4738
        %v4740 = vrcp.pop %v4491
        %v4741 = vmul.f32 1.0, %v4740
        %v4742 = vrcp.pop %v4492
        %v4743 = vmul.f32 1.0, %v4742
        %v4744 = vrcp.pop %v4493
        %v4745 = vmul.f32 1.0, %v4744
        %v4746 = vrcp.pop %v4494
        %v4747 = vmul.f32 1.0, %v4746
        %v4748 = vrcp.pop %v4495
        %v4749 = vmul.f32 1.0, %v4748
        %v4750 = vrcp.pop %v4496
        %v4751 = vmul.f32 1.0, %v4750
        %v4752 = vrcp.pop %v4497
        %v4753 = vmul.f32 1.0, %v4752
        %v4754 = vpack.c.bf16 %v4515, %v4499
        %v4755 = vpack.c.bf16 %v4517, %v4501
        %v4756 = vpack.c.bf16 %v4519, %v4503
        %v4757 = vpack.c.bf16 %v4521, %v4505
        %v4758 = vpack.c.bf16 %v4523, %v4507
        %v4759 = vpack.c.bf16 %v4525, %v4509
        %v4760 = vpack.c.bf16 %v4527, %v4511
        %v4761 = vpack.c.bf16 %v4529, %v4513
        %v4762 = vpack.c.bf16 %v4547, %v4531
        %v4763 = vpack.c.bf16 %v4549, %v4533
        %v4764 = vpack.c.bf16 %v4551, %v4535
        %v4765 = vpack.c.bf16 %v4553, %v4537
        %v4766 = vpack.c.bf16 %v4555, %v4539
        %v4767 = vpack.c.bf16 %v4557, %v4541
        %v4768 = vpack.c.bf16 %v4559, %v4543
        %v4769 = vpack.c.bf16 %v4561, %v4545
        %v4770 = vpack.c.bf16 %v4579, %v4563
        %v4771 = vpack.c.bf16 %v4581, %v4565
        %v4772 = vpack.c.bf16 %v4583, %v4567
        %v4773 = vpack.c.bf16 %v4585, %v4569
        %v4774 = vpack.c.bf16 %v4587, %v4571
        %v4775 = vpack.c.bf16 %v4589, %v4573
        %v4776 = vpack.c.bf16 %v4591, %v4575
        %v4777 = vpack.c.bf16 %v4593, %v4577
        %v4778 = vpack.c.bf16 %v4611, %v4595
        %v4779 = vpack.c.bf16 %v4613, %v4597
        %v4780 = vpack.c.bf16 %v4615, %v4599
        %v4781 = vpack.c.bf16 %v4617, %v4601
        %v4782 = vpack.c.bf16 %v4619, %v4603
        %v4783 = vpack.c.bf16 %v4621, %v4605
        %v4784 = vpack.c.bf16 %v4623, %v4607
        %v4785 = vpack.c.bf16 %v4625, %v4609
        %v4786 = vpack.c.bf16 %v4643, %v4627
        %v4787 = vpack.c.bf16 %v4645, %v4629
        %v4788 = vpack.c.bf16 %v4647, %v4631
        %v4789 = vpack.c.bf16 %v4649, %v4633
        %v4790 = vpack.c.bf16 %v4651, %v4635
        %v4791 = vpack.c.bf16 %v4653, %v4637
        %v4792 = vpack.c.bf16 %v4655, %v4639
        %v4793 = vpack.c.bf16 %v4657, %v4641
        %v4794 = vpack.c.bf16 %v4675, %v4659
        %v4795 = vpack.c.bf16 %v4677, %v4661
        %v4796 = vpack.c.bf16 %v4679, %v4663
        %v4797 = vpack.c.bf16 %v4681, %v4665
        %v4798 = vpack.c.bf16 %v4683, %v4667
        %v4799 = vpack.c.bf16 %v4685, %v4669
        %v4800 = vpack.c.bf16 %v4687, %v4671
        %v4801 = vpack.c.bf16 %v4689, %v4673
        %v4802 = vpack.c.bf16 %v4707, %v4691
        %v4803 = vpack.c.bf16 %v4709, %v4693
        %v4804 = vpack.c.bf16 %v4711, %v4695
        %v4805 = vpack.c.bf16 %v4713, %v4697
        %v4806 = vpack.c.bf16 %v4715, %v4699
        %v4807 = vpack.c.bf16 %v4717, %v4701
        %v4808 = vpack.c.bf16 %v4719, %v4703
        %v4809 = vpack.c.bf16 %v4721, %v4705
        %v4810 = vpack.c.bf16 %v4739, %v4723
        %v4811 = vpack.c.bf16 %v4741, %v4725
        %v4812 = vpack.c.bf16 %v4743, %v4727
        %v4813 = vpack.c.bf16 %v4745, %v4729
        %v4814 = vpack.c.bf16 %v4747, %v4731
        %v4815 = vpack.c.bf16 %v4749, %v4733
        %v4816 = vpack.c.bf16 %v4751, %v4735
        %v4817 = vpack.c.bf16 %v4753, %v4737
        %v4882 = vunpack.c.l.b16 %v4754
        %v4883 = vunpack.c.l.b16 %v4755
        %v4884 = vunpack.c.l.b16 %v4756
        %v4885 = vunpack.c.l.b16 %v4757
        %v4886 = vunpack.c.l.b16 %v4758
        %v4887 = vunpack.c.l.b16 %v4759
        %v4888 = vunpack.c.l.b16 %v4760
        %v4889 = vunpack.c.l.b16 %v4761
        %v4890 = vunpack.c.h.b16 %v4754
        %v4891 = vunpack.c.h.b16 %v4755
        %v4892 = vunpack.c.h.b16 %v4756
        %v4893 = vunpack.c.h.b16 %v4757
        %v4894 = vunpack.c.h.b16 %v4758
        %v4895 = vunpack.c.h.b16 %v4759
        %v4896 = vunpack.c.h.b16 %v4760
        %v4897 = vunpack.c.h.b16 %v4761
        %v4898 = vunpack.c.l.b16 %v4762
        %v4899 = vunpack.c.l.b16 %v4763
        %v4900 = vunpack.c.l.b16 %v4764
        %v4901 = vunpack.c.l.b16 %v4765
        %v4902 = vunpack.c.l.b16 %v4766
        %v4903 = vunpack.c.l.b16 %v4767
        %v4904 = vunpack.c.l.b16 %v4768
        %v4905 = vunpack.c.l.b16 %v4769
        %v4906 = vunpack.c.h.b16 %v4762
        %v4907 = vunpack.c.h.b16 %v4763
        %v4908 = vunpack.c.h.b16 %v4764
        %v4909 = vunpack.c.h.b16 %v4765
        %v4910 = vunpack.c.h.b16 %v4766
        %v4911 = vunpack.c.h.b16 %v4767
        %v4912 = vunpack.c.h.b16 %v4768
        %v4913 = vunpack.c.h.b16 %v4769
        %v4914 = vunpack.c.l.b16 %v4770
        %v4915 = vunpack.c.l.b16 %v4771
        %v4916 = vunpack.c.l.b16 %v4772
        %v4917 = vunpack.c.l.b16 %v4773
        %v4918 = vunpack.c.l.b16 %v4774
        %v4919 = vunpack.c.l.b16 %v4775
        %v4920 = vunpack.c.l.b16 %v4776
        %v4921 = vunpack.c.l.b16 %v4777
        %v4922 = vunpack.c.h.b16 %v4770
        %v4923 = vunpack.c.h.b16 %v4771
        %v4924 = vunpack.c.h.b16 %v4772
        %v4925 = vunpack.c.h.b16 %v4773
        %v4926 = vunpack.c.h.b16 %v4774
        %v4927 = vunpack.c.h.b16 %v4775
        %v4928 = vunpack.c.h.b16 %v4776
        %v4929 = vunpack.c.h.b16 %v4777
        %v4930 = vunpack.c.l.b16 %v4778
        %v4931 = vunpack.c.l.b16 %v4779
        %v4932 = vunpack.c.l.b16 %v4780
        %v4933 = vunpack.c.l.b16 %v4781
        %v4934 = vunpack.c.l.b16 %v4782
        %v4935 = vunpack.c.l.b16 %v4783
        %v4936 = vunpack.c.l.b16 %v4784
        %v4937 = vunpack.c.l.b16 %v4785
        %v4938 = vunpack.c.h.b16 %v4778
        %v4939 = vunpack.c.h.b16 %v4779
        %v4940 = vunpack.c.h.b16 %v4780
        %v4941 = vunpack.c.h.b16 %v4781
        %v4942 = vunpack.c.h.b16 %v4782
        %v4943 = vunpack.c.h.b16 %v4783
        %v4944 = vunpack.c.h.b16 %v4784
        %v4945 = vunpack.c.h.b16 %v4785
        %v4946 = vunpack.c.l.b16 %v4786
        %v4947 = vunpack.c.l.b16 %v4787
        %v4948 = vunpack.c.l.b16 %v4788
        %v4949 = vunpack.c.l.b16 %v4789
        %v4950 = vunpack.c.l.b16 %v4790
        %v4951 = vunpack.c.l.b16 %v4791
        %v4952 = vunpack.c.l.b16 %v4792
        %v4953 = vunpack.c.l.b16 %v4793
        %v4954 = vunpack.c.h.b16 %v4786
        %v4955 = vunpack.c.h.b16 %v4787
        %v4956 = vunpack.c.h.b16 %v4788
        %v4957 = vunpack.c.h.b16 %v4789
        %v4958 = vunpack.c.h.b16 %v4790
        %v4959 = vunpack.c.h.b16 %v4791
        %v4960 = vunpack.c.h.b16 %v4792
        %v4961 = vunpack.c.h.b16 %v4793
        %v4962 = vunpack.c.l.b16 %v4794
        %v4963 = vunpack.c.l.b16 %v4795
        %v4964 = vunpack.c.l.b16 %v4796
        %v4965 = vunpack.c.l.b16 %v4797
        %v4966 = vunpack.c.l.b16 %v4798
        %v4967 = vunpack.c.l.b16 %v4799
        %v4968 = vunpack.c.l.b16 %v4800
        %v4969 = vunpack.c.l.b16 %v4801
        %v4970 = vunpack.c.h.b16 %v4794
        %v4971 = vunpack.c.h.b16 %v4795
        %v4972 = vunpack.c.h.b16 %v4796
        %v4973 = vunpack.c.h.b16 %v4797
        %v4974 = vunpack.c.h.b16 %v4798
        %v4975 = vunpack.c.h.b16 %v4799
        %v4976 = vunpack.c.h.b16 %v4800
        %v4977 = vunpack.c.h.b16 %v4801
        %v4978 = vunpack.c.l.b16 %v4802
        %v4979 = vunpack.c.l.b16 %v4803
        %v4980 = vunpack.c.l.b16 %v4804
        %v4981 = vunpack.c.l.b16 %v4805
        %v4982 = vunpack.c.l.b16 %v4806
        %v4983 = vunpack.c.l.b16 %v4807
        %v4984 = vunpack.c.l.b16 %v4808
        %v4985 = vunpack.c.l.b16 %v4809
        %v4986 = vunpack.c.h.b16 %v4802
        %v4987 = vunpack.c.h.b16 %v4803
        %v4988 = vunpack.c.h.b16 %v4804
        %v4989 = vunpack.c.h.b16 %v4805
        %v4990 = vunpack.c.h.b16 %v4806
        %v4991 = vunpack.c.h.b16 %v4807
        %v4992 = vunpack.c.h.b16 %v4808
        %v4993 = vunpack.c.h.b16 %v4809
        %v4994 = vunpack.c.l.b16 %v4810
        %v4995 = vunpack.c.l.b16 %v4811
        %v4996 = vunpack.c.l.b16 %v4812
        %v4997 = vunpack.c.l.b16 %v4813
        %v4998 = vunpack.c.l.b16 %v4814
        %v4999 = vunpack.c.l.b16 %v4815
        %v5000 = vunpack.c.l.b16 %v4816
        %v5001 = vunpack.c.l.b16 %v4817
        %v5002 = vunpack.c.h.b16 %v4810
        %v5003 = vunpack.c.h.b16 %v4811
        %v5004 = vunpack.c.h.b16 %v4812
        %v5005 = vunpack.c.h.b16 %v4813
        %v5006 = vunpack.c.h.b16 %v4814
        %v5007 = vunpack.c.h.b16 %v4815
        %v5008 = vunpack.c.h.b16 %v4816
        %v5009 = vunpack.c.h.b16 %v4817
        %v5010 = vpack.c.b16 %v4883, %v4882
        %v5011 = vpack.c.b16 %v4885, %v4884
        %v5012 = vpack.c.b16 %v4887, %v4886
        %v5013 = vpack.c.b16 %v4889, %v4888
        %v5014 = vpack.c.b16 %v4891, %v4890
        %v5015 = vpack.c.b16 %v4893, %v4892
        %v5016 = vpack.c.b16 %v4895, %v4894
        %v5017 = vpack.c.b16 %v4897, %v4896
        %v5018 = vpack.c.b16 %v4899, %v4898
        %v5019 = vpack.c.b16 %v4901, %v4900
        %v5020 = vpack.c.b16 %v4903, %v4902
        %v5021 = vpack.c.b16 %v4905, %v4904
        %v5022 = vpack.c.b16 %v4907, %v4906
        %v5023 = vpack.c.b16 %v4909, %v4908
        %v5024 = vpack.c.b16 %v4911, %v4910
        %v5025 = vpack.c.b16 %v4913, %v4912
        %v5026 = vpack.c.b16 %v4915, %v4914
        %v5027 = vpack.c.b16 %v4917, %v4916
        %v5028 = vpack.c.b16 %v4919, %v4918
        %v5029 = vpack.c.b16 %v4921, %v4920
        %v5030 = vpack.c.b16 %v4923, %v4922
        %v5031 = vpack.c.b16 %v4925, %v4924
        %v5032 = vpack.c.b16 %v4927, %v4926
        %v5033 = vpack.c.b16 %v4929, %v4928
        %v5034 = vpack.c.b16 %v4931, %v4930
        %v5035 = vpack.c.b16 %v4933, %v4932
        %v5036 = vpack.c.b16 %v4935, %v4934
        %v5037 = vpack.c.b16 %v4937, %v4936
        %v5038 = vpack.c.b16 %v4939, %v4938
        %v5039 = vpack.c.b16 %v4941, %v4940
        %v5040 = vpack.c.b16 %v4943, %v4942
        %v5041 = vpack.c.b16 %v4945, %v4944
        %v5042 = vpack.c.b16 %v4947, %v4946
        %v5043 = vpack.c.b16 %v4949, %v4948
        %v5044 = vpack.c.b16 %v4951, %v4950
        %v5045 = vpack.c.b16 %v4953, %v4952
        %v5046 = vpack.c.b16 %v4955, %v4954
        %v5047 = vpack.c.b16 %v4957, %v4956
        %v5048 = vpack.c.b16 %v4959, %v4958
        %v5049 = vpack.c.b16 %v4961, %v4960
        %v5050 = vpack.c.b16 %v4963, %v4962
        %v5051 = vpack.c.b16 %v4965, %v4964
        %v5052 = vpack.c.b16 %v4967, %v4966
        %v5053 = vpack.c.b16 %v4969, %v4968
        %v5054 = vpack.c.b16 %v4971, %v4970
        %v5055 = vpack.c.b16 %v4973, %v4972
        %v5056 = vpack.c.b16 %v4975, %v4974
        %v5057 = vpack.c.b16 %v4977, %v4976
        %v5058 = vpack.c.b16 %v4979, %v4978
        %v5059 = vpack.c.b16 %v4981, %v4980
        %v5060 = vpack.c.b16 %v4983, %v4982
        %v5061 = vpack.c.b16 %v4985, %v4984
        %v5062 = vpack.c.b16 %v4987, %v4986
        %v5063 = vpack.c.b16 %v4989, %v4988
        %v5064 = vpack.c.b16 %v4991, %v4990
        %v5065 = vpack.c.b16 %v4993, %v4992
        %v5066 = vpack.c.b16 %v4995, %v4994
        %v5067 = vpack.c.b16 %v4997, %v4996
        %v5068 = vpack.c.b16 %v4999, %v4998
        %v5069 = vpack.c.b16 %v5001, %v5000
        %v5070 = vpack.c.b16 %v5003, %v5002
        %v5071 = vpack.c.b16 %v5005, %v5004
        %v5072 = vpack.c.b16 %v5007, %v5006
        %v5073 = vpack.c.b16 %v5009, %v5008
        %5138 = vst [vmem:[%s641] sm:$0xff] %v5010
        %5139 = vst [vmem:[%s641 + $0x8] sm:$0xff] %v5011
        %5140 = vst [vmem:[%s641 + $0x10] sm:$0xff] %v5012
        %5141 = vst [vmem:[%s641 + $0x18] sm:$0xff] %v5013
        %5142 = vst [vmem:[%s641 + $0x20] sm:$0xff] %v5014
        %5143 = vst [vmem:[%s641 + $0x28] sm:$0xff] %v5015
        %5144 = vst [vmem:[%s641 + $0x30] sm:$0xff] %v5016
        %5145 = vst [vmem:[%s641 + $0x38] sm:$0xff] %v5017
        %5146 = vst [vmem:[%s641 + $0x40] sm:$0xff] %v5018
        %5147 = vst [vmem:[%s641 + $0x48] sm:$0xff] %v5019
        %5148 = vst [vmem:[%s641 + $0x50] sm:$0xff] %v5020
        %5149 = vst [vmem:[%s641 + $0x58] sm:$0xff] %v5021
        %5150 = vst [vmem:[%s641 + $0x60] sm:$0xff] %v5022
        %5151 = vst [vmem:[%s641 + $0x68] sm:$0xff] %v5023
        %5152 = vst [vmem:[%s641 + $0x70] sm:$0xff] %v5024
        %5153 = vst [vmem:[%s641 + $0x78] sm:$0xff] %v5025
        %5154 = vst [vmem:[%s641 + $0x80] sm:$0xff] %v5026
        %5155 = vst [vmem:[%s641 + $0x88] sm:$0xff] %v5027
        %5156 = vst [vmem:[%s641 + $0x90] sm:$0xff] %v5028
        %5157 = vst [vmem:[%s641 + $0x98] sm:$0xff] %v5029
        %5158 = vst [vmem:[%s641 + $0xa0] sm:$0xff] %v5030
        %5159 = vst [vmem:[%s641 + $0xa8] sm:$0xff] %v5031
        %5160 = vst [vmem:[%s641 + $0xb0] sm:$0xff] %v5032
        %5161 = vst [vmem:[%s641 + $0xb8] sm:$0xff] %v5033
        %5162 = vst [vmem:[%s641 + $0xc0] sm:$0xff] %v5034
        %5163 = vst [vmem:[%s641 + $0xc8] sm:$0xff] %v5035
        %5164 = vst [vmem:[%s641 + $0xd0] sm:$0xff] %v5036
        %5165 = vst [vmem:[%s641 + $0xd8] sm:$0xff] %v5037
        %5166 = vst [vmem:[%s641 + $0xe0] sm:$0xff] %v5038
        %5167 = vst [vmem:[%s641 + $0xe8] sm:$0xff] %v5039
        %5168 = vst [vmem:[%s641 + $0xf0] sm:$0xff] %v5040
        %5169 = vst [vmem:[%s641 + $0xf8] sm:$0xff] %v5041
        %5170 = vst [vmem:[%s641 + $0x100] sm:$0xff] %v5042
        %5171 = vst [vmem:[%s641 + $0x108] sm:$0xff] %v5043
        %5172 = vst [vmem:[%s641 + $0x110] sm:$0xff] %v5044
        %5173 = vst [vmem:[%s641 + $0x118] sm:$0xff] %v5045
        %5174 = vst [vmem:[%s641 + $0x120] sm:$0xff] %v5046
        %5175 = vst [vmem:[%s641 + $0x128] sm:$0xff] %v5047
        %5176 = vst [vmem:[%s641 + $0x130] sm:$0xff] %v5048
        %5177 = vst [vmem:[%s641 + $0x138] sm:$0xff] %v5049
        %5178 = vst [vmem:[%s641 + $0x140] sm:$0xff] %v5050
        %5179 = vst [vmem:[%s641 + $0x148] sm:$0xff] %v5051
        %5180 = vst [vmem:[%s641 + $0x150] sm:$0xff] %v5052
        %5181 = vst [vmem:[%s641 + $0x158] sm:$0xff] %v5053
        %5182 = vst [vmem:[%s641 + $0x160] sm:$0xff] %v5054
        %5183 = vst [vmem:[%s641 + $0x168] sm:$0xff] %v5055
        %5184 = vst [vmem:[%s641 + $0x170] sm:$0xff] %v5056
        %5185 = vst [vmem:[%s641 + $0x178] sm:$0xff] %v5057
        %5186 = vst [vmem:[%s641 + $0x180] sm:$0xff] %v5058
        %5187 = vst [vmem:[%s641 + $0x188] sm:$0xff] %v5059
        %5188 = vst [vmem:[%s641 + $0x190] sm:$0xff] %v5060
        %5189 = vst [vmem:[%s641 + $0x198] sm:$0xff] %v5061
        %5190 = vst [vmem:[%s641 + $0x1a0] sm:$0xff] %v5062
        %5191 = vst [vmem:[%s641 + $0x1a8] sm:$0xff] %v5063
        %5192 = vst [vmem:[%s641 + $0x1b0] sm:$0xff] %v5064
        %5193 = vst [vmem:[%s641 + $0x1b8] sm:$0xff] %v5065
        %5194 = vst [vmem:[%s641 + $0x1c0] sm:$0xff] %v5066
        %5195 = vst [vmem:[%s641 + $0x1c8] sm:$0xff] %v5067
        %5196 = vst [vmem:[%s641 + $0x1d0] sm:$0xff] %v5068
        %5197 = vst [vmem:[%s641 + $0x1d8] sm:$0xff] %v5069
        %5198 = vst [vmem:[%s641 + $0x1e0] sm:$0xff] %v5070
        %5199 = vst [vmem:[%s641 + $0x1e8] sm:$0xff] %v5071
        %5200 = vst [vmem:[%s641 + $0x1f0] sm:$0xff] %v5072
        %5201 = vst [vmem:[%s641 + $0x1f8] sm:$0xff] %v5073
        %s5202 = sand.u32 %s410, 1
        %s5203 = scalar_lea.sflag [#allocation4], %s5202
        %s5204 = sand.u32 %s410, 1
        %s5205 = smul.addr %s5204, 64
        %s5206 = scalar_lea.vmem [#allocation8], %s5205
        %s5207 = sand.u32 %s436, 1
        %s5208 = scalar_lea.sflag [#allocation10], %s5207
        %s5209 = sand.u32 %s436, 1
        %s5210 = smul.addr %s5209, 512
        %s5211 = scalar_lea.vmem [#allocation9], %s5210
        // Predicated region
        $region101: #{tpu_custom_call.1} parent=87 // pred_check
          %p5212 = pneg %p420
        $region102: #{tpu_custom_call.1} parent=87 // pred_check_branch
          %5214 = sbr.rel (%p5212) target = $region104
        $region103: #{tpu_custom_call.1} parent=87 // pred_region
          %s5215 = smul.u32 16, %s40
          %s5216 = ssub.s32 25, %s5215
          %p5217 = scmp.lt.s32.totalorder %s5216, 16
          %s5218 = scalar_select %p5217, %s5216, 16
          %s5219 = smul.u32 64, %s5218
          %s5221 = ssub.s32 1024, %s5219
          %5222 = vsyncadd %s5203, %s5221
          %p5223 = scmp.ne.s32.totalorder 0, %s5219
          %s5224 = smul.addr %s5215, 64
          %s5225 = scalar_lea.hbm %s17, %s5224
          %s5226 = smul.u32 4, %s5218
          %s5227 = sshll.u32 %s5206, 4
          %s5228 = int_to_ptr.vmem [resolvable:$true] %s5227
          %s5229 = sshll.u32 %s5226, 4
          %5233 = dma.vmem_to_hbm [thread:$0]  (%p5223), %s5228, %s5229, %s5225, %s5203, 64, 64, 4
        $region104: #{tpu_custom_call.1} parent=87 // pred_fallthru
          _
        // Predicated region
        $region105: #{tpu_custom_call.1} parent=87 // pred_check
          %p5234 = pneg %p446
        $region106: #{tpu_custom_call.1} parent=87 // pred_check_branch
          %5236 = sbr.rel (%p5234) target = $region108
        $region107: #{tpu_custom_call.1} parent=87 // pred_region
          %s5237 = smul.u32 16, %s40
          %s5238 = ssub.s32 25, %s5237
          %p5239 = scmp.lt.s32.totalorder %s5238, 16
          %s5240 = scalar_select %p5239, %s5238, 16
          %s5241 = smul.u32 64, %s5240
          %s5242 = smul.u32 %s5241, 8
          %s5244 = ssub.s32 8192, %s5242
          %5245 = vsyncadd %s5208, %s5244
          %p5246 = scmp.ne.s32.totalorder 0, %s5242
          %s5247 = smul.addr %s5237, 8
          %s5248 = smul.addr %s5247, 64
          %s5249 = scalar_lea.hbm %s18, %s5248
          %s5250 = smul.u32 32, %s5240
          %s5251 = sshll.u32 %s5211, 4
          %s5252 = int_to_ptr.vmem [resolvable:$true] %s5251
          %s5253 = sshll.u32 %s5250, 4
          %5257 = dma.vmem_to_hbm [thread:$0]  (%p5246), %s5252, %s5253, %s5249, %s5208, 512, 512, 32
        $region108: #{tpu_custom_call.1} parent=87 // pred_fallthru
          _
      $region88: #{tpu_custom_call.1} parent=5 // pred_fallthru
        _
      %p5258 = scmp.le.s32.totalorder 2, %s35
      // Predicated region
      $region109: #{tpu_custom_call.1} parent=5 // pred_check
        %p5259 = pneg %p5258
      $region110: #{tpu_custom_call.1} parent=5 // pred_check_branch
        %5261 = sbr.rel (%p5259) target = $region112
      $region111: #{tpu_custom_call.1} parent=5 // pred_region
        %s5262 = ssub.s32 %s35, 2
        // Predicated region
        $region113: #{tpu_custom_call.1} parent=111 // pred_check
          %p5263 = pneg %p426
        $region114: #{tpu_custom_call.1} parent=111 // pred_check_branch
          %5265 = sbr.rel (%p5263) target = $region116
        $region115: #{tpu_custom_call.1} parent=111 // pred_region
          %s5266 = sand.u32 %s411, 1
          %s5267 = scalar_lea.sflag [#allocation4], %s5266
          %s5268 = sand.u32 %s411, 1
          %s5269 = smul.addr %s5268, 64
          %s5270 = scalar_lea.vmem [#allocation8], %s5269
          %5271 = dma.done %s5267, 1024
        $region116: #{tpu_custom_call.1} parent=111 // pred_fallthru
          _
        // Predicated region
        $region117: #{tpu_custom_call.1} parent=111 // pred_check
          %p5272 = pneg %p452
        $region118: #{tpu_custom_call.1} parent=111 // pred_check_branch
          %5274 = sbr.rel (%p5272) target = $region120
        $region119: #{tpu_custom_call.1} parent=111 // pred_region
          %s5275 = sand.u32 %s437, 1
          %s5276 = scalar_lea.sflag [#allocation10], %s5275
          %s5277 = sand.u32 %s437, 1
          %s5278 = smul.addr %s5277, 512
          %s5279 = scalar_lea.vmem [#allocation9], %s5278
          %5280 = dma.done %s5276, 8192
        $region120: #{tpu_custom_call.1} parent=111 // pred_fallthru
          _
      $region112: #{tpu_custom_call.1} parent=5 // pred_fallthru
        _
    $region6: #{tpu_custom_call.1} parent=1 // loop_footer
      %s39 = sadd.s32 1, %s35
    $region7: #{tpu_custom_call.1} parent=1 // loop_footer_branch
      %34 = sbr.rel target = $region3
    $region8: #{tpu_custom_call.1} parent=1 // loop_exit
      _
    %5281 = vsyncpa [#allocation3], 1
    %s5282 = scalar_lea.sflag [#allocation3], 1
    %5283 = vsyncpa %s5282, 1
    %5284 = vsyncpa [#allocation6], 1
    %5285 = vsyncpa [#allocation4], 1
    %s5286 = scalar_lea.sflag [#allocation4], 1
    %5287 = vsyncpa %s5286, 1
    %5288 = vsyncpa [#allocation10], 1
    %s5289 = scalar_lea.sflag [#allocation10], 1
    %5290 = vsyncpa %s5289, 1

</llo_original>
